<compile_context>
chip_gen: v7x
topology: tpu7x:2x2x1
jax: 0.10.0
libtpu: 0.0.40
codegen_flags: <defaults>
</compile_context>

<pallas_src>
import jax
import jax.numpy as jnp
import numpy as np
from jax.experimental import pallas as pl
from jax.experimental.pallas import tpu as pltpu


# ------------------------------ Pallas kernel -------------------------------
def encoder_lstm_kernel(x_ref, wih_ref, whh_ref, b_ref, h0_ref, c0_ref,
                        out_ref, hf_ref, cf_ref, xg_ref, h_sc, c_sc):
    Tt, Bb, E = x_ref.shape
    H = whh_ref.shape[0]
    t_chunk = pl.program_id(1)

    # (Re)initialise the carried state at the start of each batch-chunk's
    # time loop.
    @pl.when(t_chunk == 0)
    def _():
        h_sc[...] = h0_ref[0]
        c_sc[...] = c0_ref[0]

    # (1) Hoisted, non-recurrent input projection for this time chunk:
    # one MXU matmul with M = Tt*Bb (bf16 inputs, f32 accumulation).
    x_all = x_ref[...].reshape(Tt * Bb, E)                     # bf16
    xg = jnp.dot(x_all, wih_ref[...],
                 preferred_element_type=jnp.float32)           # (Tt*Bb, 4H) f32
    xg_ref[...] = (xg + b_ref[...]).reshape(Tt, Bb, 4 * H)

    # One EUP push per gate: sigmoid(x) = 0.5 * tanh(0.5*x) + 0.5
    def sig(v):
        return 0.5 * jnp.tanh(0.5 * v) + 0.5

    # (2) Recurrence: only h @ W_hh per step; h/c carried in vregs within the
    # chunk (Tt <= 8, fully unrolled), W_hh streamed from VMEM each step.
    def step(t, carry):
        h, c = carry
        gates = xg_ref[t] + jnp.dot(h.astype(jnp.bfloat16), whh_ref[...],
                                    preferred_element_type=jnp.float32)
        i = sig(gates[:, 0 * H:1 * H])
        f = sig(gates[:, 1 * H:2 * H])
        g = jnp.tanh(gates[:, 2 * H:3 * H])
        o = sig(gates[:, 3 * H:4 * H])
        c_new = f * c + i * g
        h_new = o * jnp.tanh(c_new)
        out_ref[t] = h_new                                     # lane-dense store
        return h_new, c_new

    h_f, c_f = jax.lax.fori_loop(0, Tt, step, (h_sc[...], c_sc[...]),
                                 unroll=True)
    h_sc[...] = h_f
    c_sc[...] = c_f

    # Final states: write only once, on the last time chunk.
    @pl.when(t_chunk == pl.num_programs(1) - 1)
    def _():
        hf_ref[0] = h_sc[...]
        cf_ref[0] = c_sc[...]


def _pick_time_chunk(T, max_chunk=8):
    for tt in range(min(T, max_chunk), 0, -1):
        if T % tt == 0:
            return tt
    return 1


def _vmem_limit_bytes(Tt, Bb, E, H):
    x_bytes = 2 * Tt * Bb * E * 2          # bf16 input chunk, double-buffered
    out_bytes = 2 * Tt * Bb * H * 4        # f32 output chunk, double-buffered
    xg_bytes = Tt * Bb * 4 * H * 4         # gate scratch
    w_bytes = 2 * (E * 4 * H + H * 4 * H) * 2   # bf16 weights (+ buffers)
    st_bytes = 2 * Bb * H * 4              # h/c scratch
    io_bytes = 2 * 4 * Bb * H * 4 + 2 * 4 * H * 4
    total = x_bytes + out_bytes + xg_bytes + w_bytes + st_bytes + io_bytes
    return int(min(max(2 * total, 8 << 20), 48 << 20))   # v7x: 64 MiB physical


def run_encoder(emb_t, wih, whh, b, h0, c0, *, Tt, Bb):
    """emb_t: (T, Bp, Ep) time-major bf16, batch/E already padded."""
    T, Bp, E = emb_t.shape
    H = whh.shape[0]
    nt = T // Tt
    nb = Bp // Bb

    grid_spec = pltpu.PrefetchScalarGridSpec(
        num_scalar_prefetch=0,
        grid=(nb, nt),
        in_specs=[
            pl.BlockSpec((Tt, Bb, E), lambda bi, ti: (ti, bi, 0)),   # x chunk
            pl.BlockSpec((E, 4 * H), lambda bi, ti: (0, 0)),         # W_ih
            pl.BlockSpec((H, 4 * H), lambda bi, ti: (0, 0)),         # W_hh
            pl.BlockSpec((1, 4 * H), lambda bi, ti: (0, 0)),         # bias
            pl.BlockSpec((1, Bb, H), lambda bi, ti: (0, bi, 0)),     # h0
            pl.BlockSpec((1, Bb, H), lambda bi, ti: (0, bi, 0)),     # c0
        ],
        out_specs=[
            pl.BlockSpec((Tt, Bb, H), lambda bi, ti: (ti, bi, 0)),   # lstm_output
            pl.BlockSpec((1, Bb, H), lambda bi, ti: (0, bi, 0)),     # state_h
            pl.BlockSpec((1, Bb, H), lambda bi, ti: (0, bi, 0)),     # state_c
        ],
        scratch_shapes=[
            pltpu.VMEM((Tt, Bb, 4 * H), jnp.float32),   # per-chunk gate slab
            pltpu.VMEM((Bb, H), jnp.float32),           # carried h
            pltpu.VMEM((Bb, H), jnp.float32),           # carried c
        ],
    )
    return pl.pallas_call(
        encoder_lstm_kernel,
        out_shape=(jax.ShapeDtypeStruct((T, Bp, H), jnp.float32),
                   jax.ShapeDtypeStruct((1, Bp, H), jnp.float32),
                   jax.ShapeDtypeStruct((1, Bp, H), jnp.float32)),
        grid_spec=grid_spec,
        compiler_params=pltpu.CompilerParams(
            dimension_semantics=("parallel", "arbitrary"),
            vmem_limit_bytes=_vmem_limit_bytes(Tt, Bb, E, H)),
    )(emb_t, wih, whh, b, h0, c0)


# ------------------------------- Full module --------------------------------
def initialize_states(batch_size, lstm_units):
    h = jnp.zeros((1, batch_size, lstm_units), jnp.float32)
    c = jnp.zeros((1, batch_size, lstm_units), jnp.float32)
    return h, c


def encoder_forward(params, input_sequence, states):
    """Matches Encoder.forward: returns (lstm_output, state_h, state_c)."""
    h0, c0 = states                                              # (1, B, H)
    emb = jnp.take(params["embedding"], input_sequence, axis=0)  # (B, T, E)
    B, T, E = emb.shape
    H = params["whh"].shape[0]
    assert H % 128 == 0, "lstm_units must be a multiple of 128 for this kernel"

    # Pad E to a lane multiple (dense vregs, full MXU K tiles).
    Ep = ((E + 127) // 128) * 128
    # Pad batch to a sublane group; split into <=128-row chunks if large.
    Bp = max(8, ((B + 7) // 8) * 8)
    Bb = Bp if Bp <= 128 else 128
    Bp = ((Bp + Bb - 1) // Bb) * Bb
    Tt = _pick_time_chunk(T)

    emb_t = jnp.transpose(emb, (1, 0, 2))                        # (T, B, E)
    emb_t = jnp.pad(emb_t, ((0, 0), (0, Bp - B), (0, Ep - E)))
    emb_t = emb_t.astype(jnp.bfloat16)

    wih = jnp.pad(params["wih"], ((0, Ep - E), (0, 0))).astype(jnp.bfloat16)
    whh = params["whh"].astype(jnp.bfloat16)
    bias = params["b"].astype(jnp.float32)

    h0_p = jnp.pad(h0, ((0, 0), (0, Bp - B), (0, 0)))
    c0_p = jnp.pad(c0, ((0, 0), (0, Bp - B), (0, 0)))

    out_t, h_f, c_f = run_encoder(emb_t, wih, whh, bias, h0_p, c0_p,
                                  Tt=Tt, Bb=Bb)

    # TODO(synk): keep the output time-major / fold this transpose into the
    # downstream consumer to avoid an extra HBM pass over the output slab.
    lstm_output = jnp.transpose(out_t[:, :B, :], (1, 0, 2))      # (B, T, H)
    return lstm_output, h_f[:, :B, :], c_f[:, :B, :]


# --------------------------- Plain-JAX reference ----------------------------
def reference_forward(params, input_sequence, states):
    h0, c0 = states
    emb = jnp.take(params["embedding"], input_sequence, axis=0)  # (B, T, E)
    H = params["whh"].shape[0]

    def step(carry, x_t):
        h, c = carry
        gates = x_t @ params["wih"] + h @ params["whh"] + params["b"][0]
        i = jax.nn.sigmoid(gates[:, 0 * H:1 * H])
        f = jax.nn.sigmoid(gates[:, 1 * H:2 * H])
        g = jnp.tanh(gates[:, 2 * H:3 * H])
        o = jax.nn.sigmoid(gates[:, 3 * H:4 * H])
        c_new = f * c + i * g
        h_new = o * jnp.tanh(c_new)
        return (h_new, c_new), h_new

    (h_f, c_f), out_t = jax.lax.scan(step, (h0[0], c0[0]),
                                     jnp.transpose(emb, (1, 0, 2)))
    return jnp.transpose(out_t, (1, 0, 2)), h_f[None], c_f[None]


# ---------------------------------- Main ------------------------------------
if __name__ == "__main__":
    # Small, TPU-friendly shapes consistent with the module's forward.
    B, T = 4, 16         # batch, input_length (T=16 -> two time chunks)
    E = 128              # embedding_size (300 in original; scaled down)
    H = 128              # lstm_units
    V = 512              # inp_vocab_size

    key = jax.random.PRNGKey(0)
    ks = jax.random.split(key, 6)

    def init(k, shape, scale=0.1):
        return scale * jax.random.normal(k, shape, dtype=jnp.float32)

    # Frozen pretrained embedding with padding_idx=0 (row 0 zeroed).
    embedding = init(ks[0], (V, E)).at[0].set(0.0)
    params = dict(
        embedding=embedding,
        wih=init(ks[1], (E, 4 * H)),      # W_ih^T, gate order [i, f, g, o]
        whh=init(ks[2], (H, 4 * H)),      # W_hh^T
        b=init(ks[3], (1, 4 * H)),        # b_ih + b_hh combined
    )

    input_sequence = jax.random.randint(ks[4], (B, T), 0, V)
    states = initialize_states(B, H)       # Encoder.initialize_states

    fwd = jax.jit(encoder_forward)
    lstm_out, state_h, state_c = fwd(params, input_sequence, states)
    lstm_out = jax.block_until_ready(lstm_out)
    state_h = jax.block_until_ready(state_h)
    state_c = jax.block_until_ready(state_c)

    ref_out, ref_h, ref_c = jax.jit(reference_forward)(params, input_sequence,
                                                       states)
    ref_out = jax.block_until_ready(ref_out)

    assert lstm_out.shape == (B, T, H), lstm_out.shape
    assert state_h.shape == (1, B, H), state_h.shape
    assert state_c.shape == (1, B, H), state_c.shape
    # bf16 MXU inputs vs the f32 reference -> loosened tolerance.
    np.testing.assert_allclose(np.asarray(lstm_out), np.asarray(ref_out),
                               rtol=2e-2, atol=2e-2)
    np.testing.assert_allclose(np.asarray(state_h), np.asarray(ref_h),
                               rtol=2e-2, atol=2e-2)
    np.testing.assert_allclose(np.asarray(state_c), np.asarray(ref_c),
                               rtol=2e-2, atol=2e-2)
    print("KERNEL_OK")
</pallas_src>

<mosaic_0001>
module attributes {stable_mosaic.version = 11 : i64} {
  func.func @encoder_lstm_kernel(%arg0: i32, %arg1: i32, %arg2: memref<8x8x128xbf16, #tpu.memory_space<vmem>>, %arg3: memref<128x512xbf16, #tpu.memory_space<vmem>>, %arg4: memref<128x512xbf16, #tpu.memory_space<vmem>>, %arg5: memref<1x512xf32, #tpu.memory_space<vmem>>, %arg6: memref<1x8x128xf32, #tpu.memory_space<vmem>>, %arg7: memref<1x8x128xf32, #tpu.memory_space<vmem>>, %arg8: memref<8x8x128xf32, #tpu.memory_space<vmem>>, %arg9: memref<1x8x128xf32, #tpu.memory_space<vmem>>, %arg10: memref<1x8x128xf32, #tpu.memory_space<vmem>>, %arg11: memref<8x8x512xf32, #tpu.memory_space<vmem>>, %arg12: memref<8x128xf32, #tpu.memory_space<vmem>>, %arg13: memref<8x128xf32, #tpu.memory_space<vmem>>) attributes {dimension_semantics = [#tpu.dimension_semantics<parallel>, #tpu.dimension_semantics<arbitrary>], iteration_bounds = array<i64: 1, 2>, scalar_prefetch = 0 : i64, scratch_operands = 3 : i64, tpu.core_type = #tpu.core_type<tc>, window_params = [{transform_indices = @transform_0, window_bounds = array<i64: 8, 8, 128>}, {pipeline_mode = #tpu.pipeline_mode<synchronous>, transform_indices = @transform_1, window_bounds = array<i64: 128, 512>}, {pipeline_mode = #tpu.pipeline_mode<synchronous>, transform_indices = @transform_2, window_bounds = array<i64: 128, 512>}, {pipeline_mode = #tpu.pipeline_mode<synchronous>, transform_indices = @transform_3, window_bounds = array<i64: 1, 512>}, {transform_indices = @transform_4, window_bounds = array<i64: 1, 8, 128>}, {transform_indices = @transform_5, window_bounds = array<i64: 1, 8, 128>}, {transform_indices = @transform_6, window_bounds = array<i64: 8, 8, 128>}, {transform_indices = @transform_7, window_bounds = array<i64: 1, 8, 128>}, {transform_indices = @transform_8, window_bounds = array<i64: 1, 8, 128>}]} {
    %c0_i32 = arith.constant 0 : i32
    %0 = arith.cmpi eq, %arg1, %c0_i32 : i32
    %1 = arith.extui %0 : i1 to i32
    %c0_i32_0 = arith.constant 0 : i32
    %2 = arith.cmpi ne, %1, %c0_i32_0 : i32
    scf.if %2 {
      %c0_149 = arith.constant 0 : index
      %c0_150 = arith.constant 0 : index
      %c0_151 = arith.constant 0 : index
      %355 = vector.load %arg6[%c0_149, %c0_150, %c0_151] : memref<1x8x128xf32, #tpu.memory_space<vmem>>, vector<1x8x128xf32>
      %356 = vector.shape_cast %355 : vector<1x8x128xf32> to vector<8x128xf32>
      %c0_152 = arith.constant 0 : index
      %c0_153 = arith.constant 0 : index
      %357 = vector.load %arg12[%c0_152, %c0_153] : memref<8x128xf32, #tpu.memory_space<vmem>>, vector<8x128xf32>
      tpu.vector_store %arg12[%c0_152, %c0_153], %356 {strides = array<i32>} : memref<8x128xf32, #tpu.memory_space<vmem>>, vector<8x128xf32>,
      %c0_154 = arith.constant 0 : index
      %c0_155 = arith.constant 0 : index
      %c0_156 = arith.constant 0 : index
      %358 = vector.load %arg7[%c0_154, %c0_155, %c0_156] : memref<1x8x128xf32, #tpu.memory_space<vmem>>, vector<1x8x128xf32>
      %359 = vector.shape_cast %358 : vector<1x8x128xf32> to vector<8x128xf32>
      %c0_157 = arith.constant 0 : index
      %c0_158 = arith.constant 0 : index
      %360 = vector.load %arg13[%c0_157, %c0_158] : memref<8x128xf32, #tpu.memory_space<vmem>>, vector<8x128xf32>
      tpu.vector_store %arg13[%c0_157, %c0_158], %359 {strides = array<i32>} : memref<8x128xf32, #tpu.memory_space<vmem>>, vector<8x128xf32>,
    } else {
    }
    %c0 = arith.constant 0 : index
    %c0_1 = arith.constant 0 : index
    %c0_2 = arith.constant 0 : index
    %3 = vector.load %arg2[%c0, %c0_1, %c0_2] : memref<8x8x128xbf16, #tpu.memory_space<vmem>>, vector<8x8x128xbf16>
    %4 = vector.shape_cast %3 : vector<8x8x128xbf16> to vector<64x128xbf16>
    %c0_3 = arith.constant 0 : index
    %c0_4 = arith.constant 0 : index
    %5 = vector.load %arg3[%c0_3, %c0_4] : memref<128x512xbf16, #tpu.memory_space<vmem>>, vector<128x512xbf16>
    %cst = arith.constant dense<0.000000e+00> : vector<64x512xf32>
    %6 = tpu.matmul %4, %5, %cst {dimension_numbers = #tpu.dot_dimension_numbers<[1], [0], [0], [1], [0, 0, 1, 1], [], []>} : vector<64x128xbf16>, vector<128x512xbf16>, vector<64x512xf32> -> vector<64x512xf32>
    %c0_5 = arith.constant 0 : index
    %c0_6 = arith.constant 0 : index
    %7 = vector.load %arg5[%c0_5, %c0_6] : memref<1x512xf32, #tpu.memory_space<vmem>>, vector<1x512xf32>
    %8 = vector.broadcast %7 : vector<1x512xf32> to vector<64x512xf32>
    %9 = arith.addf %6, %8 : vector<64x512xf32>
    %10 = vector.shape_cast %9 : vector<64x512xf32> to vector<8x8x512xf32>
    %c0_7 = arith.constant 0 : index
    %c0_8 = arith.constant 0 : index
    %c0_9 = arith.constant 0 : index
    %11 = vector.load %arg11[%c0_7, %c0_8, %c0_9] : memref<8x8x512xf32, #tpu.memory_space<vmem>>, vector<8x8x512xf32>
    tpu.vector_store %arg11[%c0_7, %c0_8, %c0_9], %10 {strides = array<i32>} : memref<8x8x512xf32, #tpu.memory_space<vmem>>, vector<8x8x512xf32>,
    %c0_10 = arith.constant 0 : index
    %c0_11 = arith.constant 0 : index
    %12 = vector.load %arg12[%c0_10, %c0_11] : memref<8x128xf32, #tpu.memory_space<vmem>>, vector<8x128xf32>
    %c0_12 = arith.constant 0 : index
    %c0_13 = arith.constant 0 : index
    %13 = vector.load %arg13[%c0_12, %c0_13] : memref<8x128xf32, #tpu.memory_space<vmem>>, vector<8x128xf32>
    %c0_i32_14 = arith.constant 0 : i32
    %14 = arith.index_cast %c0_i32_14 : i32 to index
    %c0_15 = arith.constant 0 : index
    %c0_16 = arith.constant 0 : index
    %15 = vector.load %arg11[%14, %c0_15, %c0_16] : memref<8x8x512xf32, #tpu.memory_space<vmem>>, vector<1x8x512xf32>
    %16 = vector.shape_cast %15 : vector<1x8x512xf32> to vector<8x512xf32>
    %17 = arith.truncf %12 : vector<8x128xf32> to vector<8x128xbf16>
    %c0_17 = arith.constant 0 : index
    %c0_18 = arith.constant 0 : index
    %18 = vector.load %arg4[%c0_17, %c0_18] : memref<128x512xbf16, #tpu.memory_space<vmem>>, vector<128x512xbf16>
    %cst_19 = arith.constant dense<0.000000e+00> : vector<8x512xf32>
    %19 = tpu.matmul %17, %18, %cst_19 {dimension_numbers = #tpu.dot_dimension_numbers<[1], [0], [0], [1], [0, 0, 1, 1], [], []>} : vector<8x128xbf16>, vector<128x512xbf16>, vector<8x512xf32> -> vector<8x512xf32>
    %20 = arith.addf %16, %19 : vector<8x512xf32>
    %21 = vector.extract_strided_slice %20 {offsets = [0, 0], sizes = [8, 128], strides = [1, 1]} : vector<8x512xf32> to vector<8x128xf32>
    %cst_20 = arith.constant 5.000000e-01 : f32
    %22 = vector.broadcast %cst_20 : f32 to vector<8x128xf32>
    %23 = arith.mulf %22, %21 : vector<8x128xf32>
    %24 = math.tanh %23 : vector<8x128xf32>
    %cst_21 = arith.constant 5.000000e-01 : f32
    %25 = vector.broadcast %cst_21 : f32 to vector<8x128xf32>
    %26 = arith.mulf %25, %24 : vector<8x128xf32>
    %cst_22 = arith.constant 5.000000e-01 : f32
    %27 = vector.broadcast %cst_22 : f32 to vector<8x128xf32>
    %28 = arith.addf %26, %27 : vector<8x128xf32>
    %29 = vector.extract_strided_slice %20 {offsets = [0, 128], sizes = [8, 128], strides = [1, 1]} : vector<8x512xf32> to vector<8x128xf32>
    %cst_23 = arith.constant 5.000000e-01 : f32
    %30 = vector.broadcast %cst_23 : f32 to vector<8x128xf32>
    %31 = arith.mulf %30, %29 : vector<8x128xf32>
    %32 = math.tanh %31 : vector<8x128xf32>
    %cst_24 = arith.constant 5.000000e-01 : f32
    %33 = vector.broadcast %cst_24 : f32 to vector<8x128xf32>
    %34 = arith.mulf %33, %32 : vector<8x128xf32>
    %cst_25 = arith.constant 5.000000e-01 : f32
    %35 = vector.broadcast %cst_25 : f32 to vector<8x128xf32>
    %36 = arith.addf %34, %35 : vector<8x128xf32>
    %37 = vector.extract_strided_slice %20 {offsets = [0, 256], sizes = [8, 128], strides = [1, 1]} : vector<8x512xf32> to vector<8x128xf32>
    %38 = math.tanh %37 : vector<8x128xf32>
    %39 = vector.extract_strided_slice %20 {offsets = [0, 384], sizes = [8, 128], strides = [1, 1]} : vector<8x512xf32> to vector<8x128xf32>
    %cst_26 = arith.constant 5.000000e-01 : f32
    %40 = vector.broadcast %cst_26 : f32 to vector<8x128xf32>
    %41 = arith.mulf %40, %39 : vector<8x128xf32>
    %42 = math.tanh %41 : vector<8x128xf32>
    %cst_27 = arith.constant 5.000000e-01 : f32
    %43 = vector.broadcast %cst_27 : f32 to vector<8x128xf32>
    %44 = arith.mulf %43, %42 : vector<8x128xf32>
    %cst_28 = arith.constant 5.000000e-01 : f32
    %45 = vector.broadcast %cst_28 : f32 to vector<8x128xf32>
    %46 = arith.addf %44, %45 : vector<8x128xf32>
    %47 = arith.mulf %36, %13 : vector<8x128xf32>
    %48 = arith.mulf %28, %38 : vector<8x128xf32>
    %49 = arith.addf %47, %48 : vector<8x128xf32>
    %50 = math.tanh %49 : vector<8x128xf32>
    %51 = arith.mulf %46, %50 : vector<8x128xf32>
    %52 = arith.index_cast %c0_i32_14 : i32 to index
    %c0_29 = arith.constant 0 : index
    %c0_30 = arith.constant 0 : index
    %53 = vector.load %arg8[%52, %c0_29, %c0_30] : memref<8x8x128xf32, #tpu.memory_space<vmem>>, vector<1x8x128xf32>
    %54 = vector.shape_cast %53 : vector<1x8x128xf32> to vector<8x128xf32>
    %55 = vector.shape_cast %51 : vector<8x128xf32> to vector<1x8x128xf32>
    tpu.vector_store %arg8[%52, %c0_29, %c0_30], %55 {strides = array<i32>} : memref<8x8x128xf32, #tpu.memory_space<vmem>>, vector<1x8x128xf32>,
    %c1_i32 = arith.constant 1 : i32
    %56 = arith.index_cast %c1_i32 : i32 to index
    %c0_31 = arith.constant 0 : index
    %c0_32 = arith.constant 0 : index
    %57 = vector.load %arg11[%56, %c0_31, %c0_32] : memref<8x8x512xf32, #tpu.memory_space<vmem>>, vector<1x8x512xf32>
    %58 = vector.shape_cast %57 : vector<1x8x512xf32> to vector<8x512xf32>
    %59 = arith.truncf %51 : vector<8x128xf32> to vector<8x128xbf16>
    %c0_33 = arith.constant 0 : index
    %c0_34 = arith.constant 0 : index
    %60 = vector.load %arg4[%c0_33, %c0_34] : memref<128x512xbf16, #tpu.memory_space<vmem>>, vector<128x512xbf16>
    %cst_35 = arith.constant dense<0.000000e+00> : vector<8x512xf32>
    %61 = tpu.matmul %59, %60, %cst_35 {dimension_numbers = #tpu.dot_dimension_numbers<[1], [0], [0], [1], [0, 0, 1, 1], [], []>} : vector<8x128xbf16>, vector<128x512xbf16>, vector<8x512xf32> -> vector<8x512xf32>
    %62 = arith.addf %58, %61 : vector<8x512xf32>
    %63 = vector.extract_strided_slice %62 {offsets = [0, 0], sizes = [8, 128], strides = [1, 1]} : vector<8x512xf32> to vector<8x128xf32>
    %cst_36 = arith.constant 5.000000e-01 : f32
    %64 = vector.broadcast %cst_36 : f32 to vector<8x128xf32>
    %65 = arith.mulf %64, %63 : vector<8x128xf32>
    %66 = math.tanh %65 : vector<8x128xf32>
    %cst_37 = arith.constant 5.000000e-01 : f32
    %67 = vector.broadcast %cst_37 : f32 to vector<8x128xf32>
    %68 = arith.mulf %67, %66 : vector<8x128xf32>
    %cst_38 = arith.constant 5.000000e-01 : f32
    %69 = vector.broadcast %cst_38 : f32 to vector<8x128xf32>
    %70 = arith.addf %68, %69 : vector<8x128xf32>
    %71 = vector.extract_strided_slice %62 {offsets = [0, 128], sizes = [8, 128], strides = [1, 1]} : vector<8x512xf32> to vector<8x128xf32>
    %cst_39 = arith.constant 5.000000e-01 : f32
    %72 = vector.broadcast %cst_39 : f32 to vector<8x128xf32>
    %73 = arith.mulf %72, %71 : vector<8x128xf32>
    %74 = math.tanh %73 : vector<8x128xf32>
    %cst_40 = arith.constant 5.000000e-01 : f32
    %75 = vector.broadcast %cst_40 : f32 to vector<8x128xf32>
    %76 = arith.mulf %75, %74 : vector<8x128xf32>
    %cst_41 = arith.constant 5.000000e-01 : f32
    %77 = vector.broadcast %cst_41 : f32 to vector<8x128xf32>
    %78 = arith.addf %76, %77 : vector<8x128xf32>
    %79 = vector.extract_strided_slice %62 {offsets = [0, 256], sizes = [8, 128], strides = [1, 1]} : vector<8x512xf32> to vector<8x128xf32>
    %80 = math.tanh %79 : vector<8x128xf32>
    %81 = vector.extract_strided_slice %62 {offsets = [0, 384], sizes = [8, 128], strides = [1, 1]} : vector<8x512xf32> to vector<8x128xf32>
    %cst_42 = arith.constant 5.000000e-01 : f32
    %82 = vector.broadcast %cst_42 : f32 to vector<8x128xf32>
    %83 = arith.mulf %82, %81 : vector<8x128xf32>
    %84 = math.tanh %83 : vector<8x128xf32>
    %cst_43 = arith.constant 5.000000e-01 : f32
    %85 = vector.broadcast %cst_43 : f32 to vector<8x128xf32>
    %86 = arith.mulf %85, %84 : vector<8x128xf32>
    %cst_44 = arith.constant 5.000000e-01 : f32
    %87 = vector.broadcast %cst_44 : f32 to vector<8x128xf32>
    %88 = arith.addf %86, %87 : vector<8x128xf32>
    %89 = arith.mulf %78, %49 : vector<8x128xf32>
    %90 = arith.mulf %70, %80 : vector<8x128xf32>
    %91 = arith.addf %89, %90 : vector<8x128xf32>
    %92 = math.tanh %91 : vector<8x128xf32>
    %93 = arith.mulf %88, %92 : vector<8x128xf32>
    %94 = arith.index_cast %c1_i32 : i32 to index
    %c0_45 = arith.constant 0 : index
    %c0_46 = arith.constant 0 : index
    %95 = vector.load %arg8[%94, %c0_45, %c0_46] : memref<8x8x128xf32, #tpu.memory_space<vmem>>, vector<1x8x128xf32>
    %96 = vector.shape_cast %95 : vector<1x8x128xf32> to vector<8x128xf32>
    %97 = vector.shape_cast %93 : vector<8x128xf32> to vector<1x8x128xf32>
    tpu.vector_store %arg8[%94, %c0_45, %c0_46], %97 {strides = array<i32>} : memref<8x8x128xf32, #tpu.memory_space<vmem>>, vector<1x8x128xf32>,
    %c2_i32 = arith.constant 2 : i32
    %98 = arith.index_cast %c2_i32 : i32 to index
    %c0_47 = arith.constant 0 : index
    %c0_48 = arith.constant 0 : index
    %99 = vector.load %arg11[%98, %c0_47, %c0_48] : memref<8x8x512xf32, #tpu.memory_space<vmem>>, vector<1x8x512xf32>
    %100 = vector.shape_cast %99 : vector<1x8x512xf32> to vector<8x512xf32>
    %101 = arith.truncf %93 : vector<8x128xf32> to vector<8x128xbf16>
    %c0_49 = arith.constant 0 : index
    %c0_50 = arith.constant 0 : index
    %102 = vector.load %arg4[%c0_49, %c0_50] : memref<128x512xbf16, #tpu.memory_space<vmem>>, vector<128x512xbf16>
    %cst_51 = arith.constant dense<0.000000e+00> : vector<8x512xf32>
    %103 = tpu.matmul %101, %102, %cst_51 {dimension_numbers = #tpu.dot_dimension_numbers<[1], [0], [0], [1], [0, 0, 1, 1], [], []>} : vector<8x128xbf16>, vector<128x512xbf16>, vector<8x512xf32> -> vector<8x512xf32>
    %104 = arith.addf %100, %103 : vector<8x512xf32>
    %105 = vector.extract_strided_slice %104 {offsets = [0, 0], sizes = [8, 128], strides = [1, 1]} : vector<8x512xf32> to vector<8x128xf32>
    %cst_52 = arith.constant 5.000000e-01 : f32
    %106 = vector.broadcast %cst_52 : f32 to vector<8x128xf32>
    %107 = arith.mulf %106, %105 : vector<8x128xf32>
    %108 = math.tanh %107 : vector<8x128xf32>
    %cst_53 = arith.constant 5.000000e-01 : f32
    %109 = vector.broadcast %cst_53 : f32 to vector<8x128xf32>
    %110 = arith.mulf %109, %108 : vector<8x128xf32>
    %cst_54 = arith.constant 5.000000e-01 : f32
    %111 = vector.broadcast %cst_54 : f32 to vector<8x128xf32>
    %112 = arith.addf %110, %111 : vector<8x128xf32>
    %113 = vector.extract_strided_slice %104 {offsets = [0, 128], sizes = [8, 128], strides = [1, 1]} : vector<8x512xf32> to vector<8x128xf32>
    %cst_55 = arith.constant 5.000000e-01 : f32
    %114 = vector.broadcast %cst_55 : f32 to vector<8x128xf32>
    %115 = arith.mulf %114, %113 : vector<8x128xf32>
    %116 = math.tanh %115 : vector<8x128xf32>
    %cst_56 = arith.constant 5.000000e-01 : f32
    %117 = vector.broadcast %cst_56 : f32 to vector<8x128xf32>
    %118 = arith.mulf %117, %116 : vector<8x128xf32>
    %cst_57 = arith.constant 5.000000e-01 : f32
    %119 = vector.broadcast %cst_57 : f32 to vector<8x128xf32>
    %120 = arith.addf %118, %119 : vector<8x128xf32>
    %121 = vector.extract_strided_slice %104 {offsets = [0, 256], sizes = [8, 128], strides = [1, 1]} : vector<8x512xf32> to vector<8x128xf32>
    %122 = math.tanh %121 : vector<8x128xf32>
    %123 = vector.extract_strided_slice %104 {offsets = [0, 384], sizes = [8, 128], strides = [1, 1]} : vector<8x512xf32> to vector<8x128xf32>
    %cst_58 = arith.constant 5.000000e-01 : f32
    %124 = vector.broadcast %cst_58 : f32 to vector<8x128xf32>
    %125 = arith.mulf %124, %123 : vector<8x128xf32>
    %126 = math.tanh %125 : vector<8x128xf32>
    %cst_59 = arith.constant 5.000000e-01 : f32
    %127 = vector.broadcast %cst_59 : f32 to vector<8x128xf32>
    %128 = arith.mulf %127, %126 : vector<8x128xf32>
    %cst_60 = arith.constant 5.000000e-01 : f32
    %129 = vector.broadcast %cst_60 : f32 to vector<8x128xf32>
    %130 = arith.addf %128, %129 : vector<8x128xf32>
    %131 = arith.mulf %120, %91 : vector<8x128xf32>
    %132 = arith.mulf %112, %122 : vector<8x128xf32>
    %133 = arith.addf %131, %132 : vector<8x128xf32>
    %134 = math.tanh %133 : vector<8x128xf32>
    %135 = arith.mulf %130, %134 : vector<8x128xf32>
    %136 = arith.index_cast %c2_i32 : i32 to index
    %c0_61 = arith.constant 0 : index
    %c0_62 = arith.constant 0 : index
    %137 = vector.load %arg8[%136, %c0_61, %c0_62] : memref<8x8x128xf32, #tpu.memory_space<vmem>>, vector<1x8x128xf32>
    %138 = vector.shape_cast %137 : vector<1x8x128xf32> to vector<8x128xf32>
    %139 = vector.shape_cast %135 : vector<8x128xf32> to vector<1x8x128xf32>
    tpu.vector_store %arg8[%136, %c0_61, %c0_62], %139 {strides = array<i32>} : memref<8x8x128xf32, #tpu.memory_space<vmem>>, vector<1x8x128xf32>,
    %c3_i32 = arith.constant 3 : i32
    %140 = arith.index_cast %c3_i32 : i32 to index
    %c0_63 = arith.constant 0 : index
    %c0_64 = arith.constant 0 : index
    %141 = vector.load %arg11[%140, %c0_63, %c0_64] : memref<8x8x512xf32, #tpu.memory_space<vmem>>, vector<1x8x512xf32>
    %142 = vector.shape_cast %141 : vector<1x8x512xf32> to vector<8x512xf32>
    %143 = arith.truncf %135 : vector<8x128xf32> to vector<8x128xbf16>
    %c0_65 = arith.constant 0 : index
    %c0_66 = arith.constant 0 : index
    %144 = vector.load %arg4[%c0_65, %c0_66] : memref<128x512xbf16, #tpu.memory_space<vmem>>, vector<128x512xbf16>
    %cst_67 = arith.constant dense<0.000000e+00> : vector<8x512xf32>
    %145 = tpu.matmul %143, %144, %cst_67 {dimension_numbers = #tpu.dot_dimension_numbers<[1], [0], [0], [1], [0, 0, 1, 1], [], []>} : vector<8x128xbf16>, vector<128x512xbf16>, vector<8x512xf32> -> vector<8x512xf32>
    %146 = arith.addf %142, %145 : vector<8x512xf32>
    %147 = vector.extract_strided_slice %146 {offsets = [0, 0], sizes = [8, 128], strides = [1, 1]} : vector<8x512xf32> to vector<8x128xf32>
    %cst_68 = arith.constant 5.000000e-01 : f32
    %148 = vector.broadcast %cst_68 : f32 to vector<8x128xf32>
    %149 = arith.mulf %148, %147 : vector<8x128xf32>
    %150 = math.tanh %149 : vector<8x128xf32>
    %cst_69 = arith.constant 5.000000e-01 : f32
    %151 = vector.broadcast %cst_69 : f32 to vector<8x128xf32>
    %152 = arith.mulf %151, %150 : vector<8x128xf32>
    %cst_70 = arith.constant 5.000000e-01 : f32
    %153 = vector.broadcast %cst_70 : f32 to vector<8x128xf32>
    %154 = arith.addf %152, %153 : vector<8x128xf32>
    %155 = vector.extract_strided_slice %146 {offsets = [0, 128], sizes = [8, 128], strides = [1, 1]} : vector<8x512xf32> to vector<8x128xf32>
    %cst_71 = arith.constant 5.000000e-01 : f32
    %156 = vector.broadcast %cst_71 : f32 to vector<8x128xf32>
    %157 = arith.mulf %156, %155 : vector<8x128xf32>
    %158 = math.tanh %157 : vector<8x128xf32>
    %cst_72 = arith.constant 5.000000e-01 : f32
    %159 = vector.broadcast %cst_72 : f32 to vector<8x128xf32>
    %160 = arith.mulf %159, %158 : vector<8x128xf32>
    %cst_73 = arith.constant 5.000000e-01 : f32
    %161 = vector.broadcast %cst_73 : f32 to vector<8x128xf32>
    %162 = arith.addf %160, %161 : vector<8x128xf32>
    %163 = vector.extract_strided_slice %146 {offsets = [0, 256], sizes = [8, 128], strides = [1, 1]} : vector<8x512xf32> to vector<8x128xf32>
    %164 = math.tanh %163 : vector<8x128xf32>
    %165 = vector.extract_strided_slice %146 {offsets = [0, 384], sizes = [8, 128], strides = [1, 1]} : vector<8x512xf32> to vector<8x128xf32>
    %cst_74 = arith.constant 5.000000e-01 : f32
    %166 = vector.broadcast %cst_74 : f32 to vector<8x128xf32>
    %167 = arith.mulf %166, %165 : vector<8x128xf32>
    %168 = math.tanh %167 : vector<8x128xf32>
    %cst_75 = arith.constant 5.000000e-01 : f32
    %169 = vector.broadcast %cst_75 : f32 to vector<8x128xf32>
    %170 = arith.mulf %169, %168 : vector<8x128xf32>
    %cst_76 = arith.constant 5.000000e-01 : f32
    %171 = vector.broadcast %cst_76 : f32 to vector<8x128xf32>
    %172 = arith.addf %170, %171 : vector<8x128xf32>
    %173 = arith.mulf %162, %133 : vector<8x128xf32>
    %174 = arith.mulf %154, %164 : vector<8x128xf32>
    %175 = arith.addf %173, %174 : vector<8x128xf32>
    %176 = math.tanh %175 : vector<8x128xf32>
    %177 = arith.mulf %172, %176 : vector<8x128xf32>
    %178 = arith.index_cast %c3_i32 : i32 to index
    %c0_77 = arith.constant 0 : index
    %c0_78 = arith.constant 0 : index
    %179 = vector.load %arg8[%178, %c0_77, %c0_78] : memref<8x8x128xf32, #tpu.memory_space<vmem>>, vector<1x8x128xf32>
    %180 = vector.shape_cast %179 : vector<1x8x128xf32> to vector<8x128xf32>
    %181 = vector.shape_cast %177 : vector<8x128xf32> to vector<1x8x128xf32>
    tpu.vector_store %arg8[%178, %c0_77, %c0_78], %181 {strides = array<i32>} : memref<8x8x128xf32, #tpu.memory_space<vmem>>, vector<1x8x128xf32>,
    %c4_i32 = arith.constant 4 : i32
    %182 = arith.index_cast %c4_i32 : i32 to index
    %c0_79 = arith.constant 0 : index
    %c0_80 = arith.constant 0 : index
    %183 = vector.load %arg11[%182, %c0_79, %c0_80] : memref<8x8x512xf32, #tpu.memory_space<vmem>>, vector<1x8x512xf32>
    %184 = vector.shape_cast %183 : vector<1x8x512xf32> to vector<8x512xf32>
    %185 = arith.truncf %177 : vector<8x128xf32> to vector<8x128xbf16>
    %c0_81 = arith.constant 0 : index
    %c0_82 = arith.constant 0 : index
    %186 = vector.load %arg4[%c0_81, %c0_82] : memref<128x512xbf16, #tpu.memory_space<vmem>>, vector<128x512xbf16>
    %cst_83 = arith.constant dense<0.000000e+00> : vector<8x512xf32>
    %187 = tpu.matmul %185, %186, %cst_83 {dimension_numbers = #tpu.dot_dimension_numbers<[1], [0], [0], [1], [0, 0, 1, 1], [], []>} : vector<8x128xbf16>, vector<128x512xbf16>, vector<8x512xf32> -> vector<8x512xf32>
    %188 = arith.addf %184, %187 : vector<8x512xf32>
    %189 = vector.extract_strided_slice %188 {offsets = [0, 0], sizes = [8, 128], strides = [1, 1]} : vector<8x512xf32> to vector<8x128xf32>
    %cst_84 = arith.constant 5.000000e-01 : f32
    %190 = vector.broadcast %cst_84 : f32 to vector<8x128xf32>
    %191 = arith.mulf %190, %189 : vector<8x128xf32>
    %192 = math.tanh %191 : vector<8x128xf32>
    %cst_85 = arith.constant 5.000000e-01 : f32
    %193 = vector.broadcast %cst_85 : f32 to vector<8x128xf32>
    %194 = arith.mulf %193, %192 : vector<8x128xf32>
    %cst_86 = arith.constant 5.000000e-01 : f32
    %195 = vector.broadcast %cst_86 : f32 to vector<8x128xf32>
    %196 = arith.addf %194, %195 : vector<8x128xf32>
    %197 = vector.extract_strided_slice %188 {offsets = [0, 128], sizes = [8, 128], strides = [1, 1]} : vector<8x512xf32> to vector<8x128xf32>
    %cst_87 = arith.constant 5.000000e-01 : f32
    %198 = vector.broadcast %cst_87 : f32 to vector<8x128xf32>
    %199 = arith.mulf %198, %197 : vector<8x128xf32>
    %200 = math.tanh %199 : vector<8x128xf32>
    %cst_88 = arith.constant 5.000000e-01 : f32
    %201 = vector.broadcast %cst_88 : f32 to vector<8x128xf32>
    %202 = arith.mulf %201, %200 : vector<8x128xf32>
    %cst_89 = arith.constant 5.000000e-01 : f32
    %203 = vector.broadcast %cst_89 : f32 to vector<8x128xf32>
    %204 = arith.addf %202, %203 : vector<8x128xf32>
    %205 = vector.extract_strided_slice %188 {offsets = [0, 256], sizes = [8, 128], strides = [1, 1]} : vector<8x512xf32> to vector<8x128xf32>
    %206 = math.tanh %205 : vector<8x128xf32>
    %207 = vector.extract_strided_slice %188 {offsets = [0, 384], sizes = [8, 128], strides = [1, 1]} : vector<8x512xf32> to vector<8x128xf32>
    %cst_90 = arith.constant 5.000000e-01 : f32
    %208 = vector.broadcast %cst_90 : f32 to vector<8x128xf32>
    %209 = arith.mulf %208, %207 : vector<8x128xf32>
    %210 = math.tanh %209 : vector<8x128xf32>
    %cst_91 = arith.constant 5.000000e-01 : f32
    %211 = vector.broadcast %cst_91 : f32 to vector<8x128xf32>
    %212 = arith.mulf %211, %210 : vector<8x128xf32>
    %cst_92 = arith.constant 5.000000e-01 : f32
    %213 = vector.broadcast %cst_92 : f32 to vector<8x128xf32>
    %214 = arith.addf %212, %213 : vector<8x128xf32>
    %215 = arith.mulf %204, %175 : vector<8x128xf32>
    %216 = arith.mulf %196, %206 : vector<8x128xf32>
    %217 = arith.addf %215, %216 : vector<8x128xf32>
    %218 = math.tanh %217 : vector<8x128xf32>
    %219 = arith.mulf %214, %218 : vector<8x128xf32>
    %220 = arith.index_cast %c4_i32 : i32 to index
    %c0_93 = arith.constant 0 : index
    %c0_94 = arith.constant 0 : index
    %221 = vector.load %arg8[%220, %c0_93, %c0_94] : memref<8x8x128xf32, #tpu.memory_space<vmem>>, vector<1x8x128xf32>
    %222 = vector.shape_cast %221 : vector<1x8x128xf32> to vector<8x128xf32>
    %223 = vector.shape_cast %219 : vector<8x128xf32> to vector<1x8x128xf32>
    tpu.vector_store %arg8[%220, %c0_93, %c0_94], %223 {strides = array<i32>} : memref<8x8x128xf32, #tpu.memory_space<vmem>>, vector<1x8x128xf32>,
    %c5_i32 = arith.constant 5 : i32
    %224 = arith.index_cast %c5_i32 : i32 to index
    %c0_95 = arith.constant 0 : index
    %c0_96 = arith.constant 0 : index
    %225 = vector.load %arg11[%224, %c0_95, %c0_96] : memref<8x8x512xf32, #tpu.memory_space<vmem>>, vector<1x8x512xf32>
    %226 = vector.shape_cast %225 : vector<1x8x512xf32> to vector<8x512xf32>
    %227 = arith.truncf %219 : vector<8x128xf32> to vector<8x128xbf16>
    %c0_97 = arith.constant 0 : index
    %c0_98 = arith.constant 0 : index
    %228 = vector.load %arg4[%c0_97, %c0_98] : memref<128x512xbf16, #tpu.memory_space<vmem>>, vector<128x512xbf16>
    %cst_99 = arith.constant dense<0.000000e+00> : vector<8x512xf32>
    %229 = tpu.matmul %227, %228, %cst_99 {dimension_numbers = #tpu.dot_dimension_numbers<[1], [0], [0], [1], [0, 0, 1, 1], [], []>} : vector<8x128xbf16>, vector<128x512xbf16>, vector<8x512xf32> -> vector<8x512xf32>
    %230 = arith.addf %226, %229 : vector<8x512xf32>
    %231 = vector.extract_strided_slice %230 {offsets = [0, 0], sizes = [8, 128], strides = [1, 1]} : vector<8x512xf32> to vector<8x128xf32>
    %cst_100 = arith.constant 5.000000e-01 : f32
    %232 = vector.broadcast %cst_100 : f32 to vector<8x128xf32>
    %233 = arith.mulf %232, %231 : vector<8x128xf32>
    %234 = math.tanh %233 : vector<8x128xf32>
    %cst_101 = arith.constant 5.000000e-01 : f32
    %235 = vector.broadcast %cst_101 : f32 to vector<8x128xf32>
    %236 = arith.mulf %235, %234 : vector<8x128xf32>
    %cst_102 = arith.constant 5.000000e-01 : f32
    %237 = vector.broadcast %cst_102 : f32 to vector<8x128xf32>
    %238 = arith.addf %236, %237 : vector<8x128xf32>
    %239 = vector.extract_strided_slice %230 {offsets = [0, 128], sizes = [8, 128], strides = [1, 1]} : vector<8x512xf32> to vector<8x128xf32>
    %cst_103 = arith.constant 5.000000e-01 : f32
    %240 = vector.broadcast %cst_103 : f32 to vector<8x128xf32>
    %241 = arith.mulf %240, %239 : vector<8x128xf32>
    %242 = math.tanh %241 : vector<8x128xf32>
    %cst_104 = arith.constant 5.000000e-01 : f32
    %243 = vector.broadcast %cst_104 : f32 to vector<8x128xf32>
    %244 = arith.mulf %243, %242 : vector<8x128xf32>
    %cst_105 = arith.constant 5.000000e-01 : f32
    %245 = vector.broadcast %cst_105 : f32 to vector<8x128xf32>
    %246 = arith.addf %244, %245 : vector<8x128xf32>
    %247 = vector.extract_strided_slice %230 {offsets = [0, 256], sizes = [8, 128], strides = [1, 1]} : vector<8x512xf32> to vector<8x128xf32>
    %248 = math.tanh %247 : vector<8x128xf32>
    %249 = vector.extract_strided_slice %230 {offsets = [0, 384], sizes = [8, 128], strides = [1, 1]} : vector<8x512xf32> to vector<8x128xf32>
    %cst_106 = arith.constant 5.000000e-01 : f32
    %250 = vector.broadcast %cst_106 : f32 to vector<8x128xf32>
    %251 = arith.mulf %250, %249 : vector<8x128xf32>
    %252 = math.tanh %251 : vector<8x128xf32>
    %cst_107 = arith.constant 5.000000e-01 : f32
    %253 = vector.broadcast %cst_107 : f32 to vector<8x128xf32>
    %254 = arith.mulf %253, %252 : vector<8x128xf32>
    %cst_108 = arith.constant 5.000000e-01 : f32
    %255 = vector.broadcast %cst_108 : f32 to vector<8x128xf32>
    %256 = arith.addf %254, %255 : vector<8x128xf32>
    %257 = arith.mulf %246, %217 : vector<8x128xf32>
    %258 = arith.mulf %238, %248 : vector<8x128xf32>
    %259 = arith.addf %257, %258 : vector<8x128xf32>
    %260 = math.tanh %259 : vector<8x128xf32>
    %261 = arith.mulf %256, %260 : vector<8x128xf32>
    %262 = arith.index_cast %c5_i32 : i32 to index
    %c0_109 = arith.constant 0 : index
    %c0_110 = arith.constant 0 : index
    %263 = vector.load %arg8[%262, %c0_109, %c0_110] : memref<8x8x128xf32, #tpu.memory_space<vmem>>, vector<1x8x128xf32>
    %264 = vector.shape_cast %263 : vector<1x8x128xf32> to vector<8x128xf32>
    %265 = vector.shape_cast %261 : vector<8x128xf32> to vector<1x8x128xf32>
    tpu.vector_store %arg8[%262, %c0_109, %c0_110], %265 {strides = array<i32>} : memref<8x8x128xf32, #tpu.memory_space<vmem>>, vector<1x8x128xf32>,
    %c6_i32 = arith.constant 6 : i32
    %266 = arith.index_cast %c6_i32 : i32 to index
    %c0_111 = arith.constant 0 : index
    %c0_112 = arith.constant 0 : index
    %267 = vector.load %arg11[%266, %c0_111, %c0_112] : memref<8x8x512xf32, #tpu.memory_space<vmem>>, vector<1x8x512xf32>
    %268 = vector.shape_cast %267 : vector<1x8x512xf32> to vector<8x512xf32>
    %269 = arith.truncf %261 : vector<8x128xf32> to vector<8x128xbf16>
    %c0_113 = arith.constant 0 : index
    %c0_114 = arith.constant 0 : index
    %270 = vector.load %arg4[%c0_113, %c0_114] : memref<128x512xbf16, #tpu.memory_space<vmem>>, vector<128x512xbf16>
    %cst_115 = arith.constant dense<0.000000e+00> : vector<8x512xf32>
    %271 = tpu.matmul %269, %270, %cst_115 {dimension_numbers = #tpu.dot_dimension_numbers<[1], [0], [0], [1], [0, 0, 1, 1], [], []>} : vector<8x128xbf16>, vector<128x512xbf16>, vector<8x512xf32> -> vector<8x512xf32>
    %272 = arith.addf %268, %271 : vector<8x512xf32>
    %273 = vector.extract_strided_slice %272 {offsets = [0, 0], sizes = [8, 128], strides = [1, 1]} : vector<8x512xf32> to vector<8x128xf32>
    %cst_116 = arith.constant 5.000000e-01 : f32
    %274 = vector.broadcast %cst_116 : f32 to vector<8x128xf32>
    %275 = arith.mulf %274, %273 : vector<8x128xf32>
    %276 = math.tanh %275 : vector<8x128xf32>
    %cst_117 = arith.constant 5.000000e-01 : f32
    %277 = vector.broadcast %cst_117 : f32 to vector<8x128xf32>
    %278 = arith.mulf %277, %276 : vector<8x128xf32>
    %cst_118 = arith.constant 5.000000e-01 : f32
    %279 = vector.broadcast %cst_118 : f32 to vector<8x128xf32>
    %280 = arith.addf %278, %279 : vector<8x128xf32>
    %281 = vector.extract_strided_slice %272 {offsets = [0, 128], sizes = [8, 128], strides = [1, 1]} : vector<8x512xf32> to vector<8x128xf32>
    %cst_119 = arith.constant 5.000000e-01 : f32
    %282 = vector.broadcast %cst_119 : f32 to vector<8x128xf32>
    %283 = arith.mulf %282, %281 : vector<8x128xf32>
    %284 = math.tanh %283 : vector<8x128xf32>
    %cst_120 = arith.constant 5.000000e-01 : f32
    %285 = vector.broadcast %cst_120 : f32 to vector<8x128xf32>
    %286 = arith.mulf %285, %284 : vector<8x128xf32>
    %cst_121 = arith.constant 5.000000e-01 : f32
    %287 = vector.broadcast %cst_121 : f32 to vector<8x128xf32>
    %288 = arith.addf %286, %287 : vector<8x128xf32>
    %289 = vector.extract_strided_slice %272 {offsets = [0, 256], sizes = [8, 128], strides = [1, 1]} : vector<8x512xf32> to vector<8x128xf32>
    %290 = math.tanh %289 : vector<8x128xf32>
    %291 = vector.extract_strided_slice %272 {offsets = [0, 384], sizes = [8, 128], strides = [1, 1]} : vector<8x512xf32> to vector<8x128xf32>
    %cst_122 = arith.constant 5.000000e-01 : f32
    %292 = vector.broadcast %cst_122 : f32 to vector<8x128xf32>
    %293 = arith.mulf %292, %291 : vector<8x128xf32>
    %294 = math.tanh %293 : vector<8x128xf32>
    %cst_123 = arith.constant 5.000000e-01 : f32
    %295 = vector.broadcast %cst_123 : f32 to vector<8x128xf32>
    %296 = arith.mulf %295, %294 : vector<8x128xf32>
    %cst_124 = arith.constant 5.000000e-01 : f32
    %297 = vector.broadcast %cst_124 : f32 to vector<8x128xf32>
    %298 = arith.addf %296, %297 : vector<8x128xf32>
    %299 = arith.mulf %288, %259 : vector<8x128xf32>
    %300 = arith.mulf %280, %290 : vector<8x128xf32>
    %301 = arith.addf %299, %300 : vector<8x128xf32>
    %302 = math.tanh %301 : vector<8x128xf32>
    %303 = arith.mulf %298, %302 : vector<8x128xf32>
    %304 = arith.index_cast %c6_i32 : i32 to index
    %c0_125 = arith.constant 0 : index
    %c0_126 = arith.constant 0 : index
    %305 = vector.load %arg8[%304, %c0_125, %c0_126] : memref<8x8x128xf32, #tpu.memory_space<vmem>>, vector<1x8x128xf32>
    %306 = vector.shape_cast %305 : vector<1x8x128xf32> to vector<8x128xf32>
    %307 = vector.shape_cast %303 : vector<8x128xf32> to vector<1x8x128xf32>
    tpu.vector_store %arg8[%304, %c0_125, %c0_126], %307 {strides = array<i32>} : memref<8x8x128xf32, #tpu.memory_space<vmem>>, vector<1x8x128xf32>,
    %c7_i32 = arith.constant 7 : i32
    %308 = arith.index_cast %c7_i32 : i32 to index
    %c0_127 = arith.constant 0 : index
    %c0_128 = arith.constant 0 : index
    %309 = vector.load %arg11[%308, %c0_127, %c0_128] : memref<8x8x512xf32, #tpu.memory_space<vmem>>, vector<1x8x512xf32>
    %310 = vector.shape_cast %309 : vector<1x8x512xf32> to vector<8x512xf32>
    %311 = arith.truncf %303 : vector<8x128xf32> to vector<8x128xbf16>
    %c0_129 = arith.constant 0 : index
    %c0_130 = arith.constant 0 : index
    %312 = vector.load %arg4[%c0_129, %c0_130] : memref<128x512xbf16, #tpu.memory_space<vmem>>, vector<128x512xbf16>
    %cst_131 = arith.constant dense<0.000000e+00> : vector<8x512xf32>
    %313 = tpu.matmul %311, %312, %cst_131 {dimension_numbers = #tpu.dot_dimension_numbers<[1], [0], [0], [1], [0, 0, 1, 1], [], []>} : vector<8x128xbf16>, vector<128x512xbf16>, vector<8x512xf32> -> vector<8x512xf32>
    %314 = arith.addf %310, %313 : vector<8x512xf32>
    %315 = vector.extract_strided_slice %314 {offsets = [0, 0], sizes = [8, 128], strides = [1, 1]} : vector<8x512xf32> to vector<8x128xf32>
    %cst_132 = arith.constant 5.000000e-01 : f32
    %316 = vector.broadcast %cst_132 : f32 to vector<8x128xf32>
    %317 = arith.mulf %316, %315 : vector<8x128xf32>
    %318 = math.tanh %317 : vector<8x128xf32>
    %cst_133 = arith.constant 5.000000e-01 : f32
    %319 = vector.broadcast %cst_133 : f32 to vector<8x128xf32>
    %320 = arith.mulf %319, %318 : vector<8x128xf32>
    %cst_134 = arith.constant 5.000000e-01 : f32
    %321 = vector.broadcast %cst_134 : f32 to vector<8x128xf32>
    %322 = arith.addf %320, %321 : vector<8x128xf32>
    %323 = vector.extract_strided_slice %314 {offsets = [0, 128], sizes = [8, 128], strides = [1, 1]} : vector<8x512xf32> to vector<8x128xf32>
    %cst_135 = arith.constant 5.000000e-01 : f32
    %324 = vector.broadcast %cst_135 : f32 to vector<8x128xf32>
    %325 = arith.mulf %324, %323 : vector<8x128xf32>
    %326 = math.tanh %325 : vector<8x128xf32>
    %cst_136 = arith.constant 5.000000e-01 : f32
    %327 = vector.broadcast %cst_136 : f32 to vector<8x128xf32>
    %328 = arith.mulf %327, %326 : vector<8x128xf32>
    %cst_137 = arith.constant 5.000000e-01 : f32
    %329 = vector.broadcast %cst_137 : f32 to vector<8x128xf32>
    %330 = arith.addf %328, %329 : vector<8x128xf32>
    %331 = vector.extract_strided_slice %314 {offsets = [0, 256], sizes = [8, 128], strides = [1, 1]} : vector<8x512xf32> to vector<8x128xf32>
    %332 = math.tanh %331 : vector<8x128xf32>
    %333 = vector.extract_strided_slice %314 {offsets = [0, 384], sizes = [8, 128], strides = [1, 1]} : vector<8x512xf32> to vector<8x128xf32>
    %cst_138 = arith.constant 5.000000e-01 : f32
    %334 = vector.broadcast %cst_138 : f32 to vector<8x128xf32>
    %335 = arith.mulf %334, %333 : vector<8x128xf32>
    %336 = math.tanh %335 : vector<8x128xf32>
    %cst_139 = arith.constant 5.000000e-01 : f32
    %337 = vector.broadcast %cst_139 : f32 to vector<8x128xf32>
    %338 = arith.mulf %337, %336 : vector<8x128xf32>
    %cst_140 = arith.constant 5.000000e-01 : f32
    %339 = vector.broadcast %cst_140 : f32 to vector<8x128xf32>
    %340 = arith.addf %338, %339 : vector<8x128xf32>
    %341 = arith.mulf %330, %301 : vector<8x128xf32>
    %342 = arith.mulf %322, %332 : vector<8x128xf32>
    %343 = arith.addf %341, %342 : vector<8x128xf32>
    %344 = math.tanh %343 : vector<8x128xf32>
    %345 = arith.mulf %340, %344 : vector<8x128xf32>
    %346 = arith.index_cast %c7_i32 : i32 to index
    %c0_141 = arith.constant 0 : index
    %c0_142 = arith.constant 0 : index
    %347 = vector.load %arg8[%346, %c0_141, %c0_142] : memref<8x8x128xf32, #tpu.memory_space<vmem>>, vector<1x8x128xf32>
    %348 = vector.shape_cast %347 : vector<1x8x128xf32> to vector<8x128xf32>
    %349 = vector.shape_cast %345 : vector<8x128xf32> to vector<1x8x128xf32>
    tpu.vector_store %arg8[%346, %c0_141, %c0_142], %349 {strides = array<i32>} : memref<8x8x128xf32, #tpu.memory_space<vmem>>, vector<1x8x128xf32>,
    %c8_i32 = arith.constant 8 : i32
    %c0_143 = arith.constant 0 : index
    %c0_144 = arith.constant 0 : index
    %350 = vector.load %arg12[%c0_143, %c0_144] : memref<8x128xf32, #tpu.memory_space<vmem>>, vector<8x128xf32>
    tpu.vector_store %arg12[%c0_143, %c0_144], %345 {strides = array<i32>} : memref<8x128xf32, #tpu.memory_space<vmem>>, vector<8x128xf32>,
    %c0_145 = arith.constant 0 : index
    %c0_146 = arith.constant 0 : index
    %351 = vector.load %arg13[%c0_145, %c0_146] : memref<8x128xf32, #tpu.memory_space<vmem>>, vector<8x128xf32>
    tpu.vector_store %arg13[%c0_145, %c0_146], %343 {strides = array<i32>} : memref<8x128xf32, #tpu.memory_space<vmem>>, vector<8x128xf32>,
    %c1_i32_147 = arith.constant 1 : i32
    %352 = arith.cmpi eq, %arg1, %c1_i32_147 : i32
    %353 = arith.extui %352 : i1 to i32
    %c0_i32_148 = arith.constant 0 : i32
    %354 = arith.cmpi ne, %353, %c0_i32_148 : i32
    scf.if %354 {
      %c0_149 = arith.constant 0 : index
      %c0_150 = arith.constant 0 : index
      %355 = vector.load %arg12[%c0_149, %c0_150] : memref<8x128xf32, #tpu.memory_space<vmem>>, vector<8x128xf32>
      %c0_151 = arith.constant 0 : index
      %c0_152 = arith.constant 0 : index
      %c0_153 = arith.constant 0 : index
      %356 = vector.load %arg9[%c0_151, %c0_152, %c0_153] : memref<1x8x128xf32, #tpu.memory_space<vmem>>, vector<1x8x128xf32>
      %357 = vector.shape_cast %356 : vector<1x8x128xf32> to vector<8x128xf32>
      %358 = vector.shape_cast %355 : vector<8x128xf32> to vector<1x8x128xf32>
      tpu.vector_store %arg9[%c0_151, %c0_152, %c0_153], %358 {strides = array<i32>} : memref<1x8x128xf32, #tpu.memory_space<vmem>>, vector<1x8x128xf32>,
      %c0_154 = arith.constant 0 : index
      %c0_155 = arith.constant 0 : index
      %359 = vector.load %arg13[%c0_154, %c0_155] : memref<8x128xf32, #tpu.memory_space<vmem>>, vector<8x128xf32>
      %c0_156 = arith.constant 0 : index
      %c0_157 = arith.constant 0 : index
      %c0_158 = arith.constant 0 : index
      %360 = vector.load %arg10[%c0_156, %c0_157, %c0_158] : memref<1x8x128xf32, #tpu.memory_space<vmem>>, vector<1x8x128xf32>
      %361 = vector.shape_cast %360 : vector<1x8x128xf32> to vector<8x128xf32>
      %362 = vector.shape_cast %359 : vector<8x128xf32> to vector<1x8x128xf32>
      tpu.vector_store %arg10[%c0_156, %c0_157, %c0_158], %362 {strides = array<i32>} : memref<1x8x128xf32, #tpu.memory_space<vmem>>, vector<1x8x128xf32>,
    } else {
    }
    return
  }
  func.func @transform_0(%arg0: i32, %arg1: i32) -> (i32, i32, i32) {
    %c0_i32 = arith.constant 0 : i32
    %c0_i32_0 = arith.constant 0 : i32
    return %arg1, %arg0, %c0_i32 : i32, i32, i32
  }
  func.func @transform_1(%arg0: i32, %arg1: i32) -> (i32, i32) {
    %c0_i32 = arith.constant 0 : i32
    %c0_i32_0 = arith.constant 0 : i32
    %c0_i32_1 = arith.constant 0 : i32
    return %c0_i32, %c0_i32_0 : i32, i32
  }
  func.func @transform_2(%arg0: i32, %arg1: i32) -> (i32, i32) {
    %c0_i32 = arith.constant 0 : i32
    %c0_i32_0 = arith.constant 0 : i32
    %c0_i32_1 = arith.constant 0 : i32
    return %c0_i32, %c0_i32_0 : i32, i32
  }
  func.func @transform_3(%arg0: i32, %arg1: i32) -> (i32, i32) {
    %c0_i32 = arith.constant 0 : i32
    %c0_i32_0 = arith.constant 0 : i32
    %c0_i32_1 = arith.constant 0 : i32
    return %c0_i32, %c0_i32_0 : i32, i32
  }
  func.func @transform_4(%arg0: i32, %arg1: i32) -> (i32, i32, i32) {
    %c0_i32 = arith.constant 0 : i32
    %c0_i32_0 = arith.constant 0 : i32
    %c0_i32_1 = arith.constant 0 : i32
    return %c0_i32, %arg0, %c0_i32_0 : i32, i32, i32
  }
  func.func @transform_5(%arg0: i32, %arg1: i32) -> (i32, i32, i32) {
    %c0_i32 = arith.constant 0 : i32
    %c0_i32_0 = arith.constant 0 : i32
    %c0_i32_1 = arith.constant 0 : i32
    return %c0_i32, %arg0, %c0_i32_0 : i32, i32, i32
  }
  func.func @transform_6(%arg0: i32, %arg1: i32) -> (i32, i32, i32) {
    %c0_i32 = arith.constant 0 : i32
    %c0_i32_0 = arith.constant 0 : i32
    return %arg1, %arg0, %c0_i32 : i32, i32, i32
  }
  func.func @transform_7(%arg0: i32, %arg1: i32) -> (i32, i32, i32) {
    %c0_i32 = arith.constant 0 : i32
    %c0_i32_0 = arith.constant 0 : i32
    %c0_i32_1 = arith.constant 0 : i32
    return %c0_i32, %arg0, %c0_i32_0 : i32, i32, i32
  }
  func.func @transform_8(%arg0: i32, %arg1: i32) -> (i32, i32, i32) {
    %c0_i32 = arith.constant 0 : i32
    %c0_i32_0 = arith.constant 0 : i32
    %c0_i32_1 = arith.constant 0 : i32
    return %c0_i32, %arg0, %c0_i32_0 : i32, i32, i32
  }
}

</mosaic_0001>

<llo_original>
// kernel: encoder_forward.1
$region0: #{encoder_forward.1}
  #allocation0 [shape = 'u32[]', space=smem, size = 0x4, offset = 0x4, fixed_abs, tag = 'smem constant byte address 0x4 - core index']
  #allocation1 [shape = 'u32[144,128]{1,0:T(1,128)}', space=vmem, size = 0x12000, scoped, tag = 'internal scratch']
  #allocation2 [shape = 'f32[8,8,512]{2,1,0:T(8,128)}', space=vmem, size = 0x20000, scoped, tag = 'scratch operand']
  #allocation3 [shape = 'f32[8,128]{1,0:T(8,128)}', space=vmem, size = 0x1000, scoped, tag = 'scratch operand']
  #allocation4 [shape = 'f32[8,128]{1,0:T(8,128)}', space=vmem, size = 0x1000, scoped, tag = 'scratch operand']
  %s0 = inlined_call_operand.vmem [shape: bf16[16,8,128], index: 0, kind: input, shape index: {}]
  %s1 = inlined_call_operand.vmem [shape: bf16[128,512], index: 1, kind: input, shape index: {}]
  %s2 = inlined_call_operand.vmem [shape: bf16[128,512], index: 2, kind: input, shape index: {}]
  %s3 = inlined_call_operand.vmem [shape: f32[1,512], index: 3, kind: input, shape index: {}]
  %s4 = inlined_call_operand.vmem [shape: f32[1,8,128], index: 4, kind: input, shape index: {}]
  %s5 = inlined_call_operand.vmem [shape: f32[1,8,128], index: 5, kind: input, shape index: {}]
  %s6 = inlined_call_operand.vmem [shape: f32[16,8,128], index: 6, kind: output, shape index: {0}]
  %s7 = inlined_call_operand.vmem [shape: f32[1,8,128], index: 7, kind: output, shape index: {1}]
  %s8 = inlined_call_operand.vmem [shape: f32[1,8,128], index: 8, kind: output, shape index: {2}]
  %9 = xla_tuple %s6, %s7, %s8
  %s10 = sld [smem:[#allocation0]]
  $region81: #{encoder_forward.1} parent=0
    _
  %s12 = ssub.s32 1, %s10
  %s13 = scalar_select 0, %s12, %s10
  loop: start=0, step=1, limit=4
  $region2: #{encoder_forward.1} parent=0 // loop_pre_header
    _
  $region3: #{encoder_forward.1} parent=0 // loop_header
    %s15 = sphi 0, %s19
    %p16 = scmp.ge.s32.totalorder %s15, 4
    %s22 = sphi 0, %s34
    %s23 = sphi 0, %s30
    %s24 = sphi 0, %s22
    %s25 = sphi 0, %s23
    %s26 = sphi 0, %s24
    %s27 = sphi 0, %s25
    %s39 = sphi 0, %s41
    %s42 = sphi 0, %s39
    %s43 = sphi 0, %s42
    %s59 = sphi 0, %s43
    %s63 = sphi 0, %s63
    %s65 = sphi 0, %s63
    %s66 = sphi 0, %s65
    %s80 = sphi 0, %s66
    %s84 = sphi 0, %s84
    %s86 = sphi 0, %s84
    %s87 = sphi 0, %s86
    %s101 = sphi 0, %s87
    %s105 = sphi 0, %s105
    %s107 = sphi 0, %s105
    %s108 = sphi 0, %s107
    %s122 = sphi 0, %s108
    %s128 = sphi 0, %s130
    %s131 = sphi 0, %s128
    %s132 = sphi 0, %s131
    %s148 = sphi 0, %s132
    %s154 = sphi 0, %s156
    %s157 = sphi 0, %s154
    %s158 = sphi 0, %s157
    %s174 = sphi 0, %s158
    %s182 = sphi 0, %s184
    %s185 = sphi 0, %s182
    %s186 = sphi 0, %s185
    %s202 = sphi 0, %s186
    %s208 = sphi 0, %s210
    %s211 = sphi 0, %s208
    %s212 = sphi 0, %s211
    %s228 = sphi 0, %s212
    %s234 = sphi 0, %s236
    %s237 = sphi 0, %s234
    %s238 = sphi 0, %s237
    %s254 = sphi 0, %s238
  $region4: #{encoder_forward.1} parent=0 // loop_header_branch
    %18 = sbr.rel (%p16) target = $region8
  $region5: #{encoder_forward.1} parent=0 // loop_body
    %s20 = ssub.s32 %s15, 1
    %s21 = ssub.s32 %s15, 2
    %s28 = sadd.s32 1, %s23
    %p29 = scmp.ge.s32.totalorder %s28, 2
    %s30 = scalar_select %p29, 0, %s28
    %s31 = sadd.s32 1, %s22
    %s32 = scalar_select %p29, %s31, %s22
    %p33 = scmp.ge.s32.totalorder %s32, 1
    %s34 = scalar_select %p33, 0, %s32
    %s35 = ssub.s32 %s23, %s30
    %s36 = ssub.s32 %s22, %s34
    %s37 = sor.u32 %s35, %s36
    %p38 = scmp.eq.s32.totalorder %s37, 0
    %s40 = sadd.s32 %s39, 1
    %s41 = scalar_select %p38, %s39, %s40
    %p44 = pneg %p38
    %p45 = scmp.eq.s32.totalorder %s15, 1
    %p46 = por %p44, %p45
    %p47 = scmp.ne.s32.totalorder %s39, %s42
    %p48 = scmp.eq.s32.totalorder %s15, 0
    %p49 = por %p47, %p48
    %p50 = scmp.ne.s32.totalorder %s39, %s42
    %p51 = scmp.eq.s32.totalorder %s20, 1
    %p52 = por %p50, %p51
    %p53 = scmp.ne.s32.totalorder %s42, %s43
    %p54 = scmp.eq.s32.totalorder %s20, 0
    %p55 = por %p53, %p54
    %p56 = scmp.ne.s32.totalorder %s42, %s43
    %p57 = scmp.eq.s32.totalorder %s21, 1
    %p58 = por %p56, %p57
    %p60 = scmp.ne.s32.totalorder %s43, %s59
    %p61 = scmp.eq.s32.totalorder %s21, 0
    %p62 = por %p60, %p61
    %s64 = sadd.s32 %s63, 1
    %p67 = scmp.eq.s32.totalorder %s15, 1
    %p68 = scmp.ne.s32.totalorder %s63, %s65
    %p69 = scmp.eq.s32.totalorder %s15, 0
    %p70 = por %p68, %p69
    %p71 = scmp.ne.s32.totalorder %s63, %s65
    %p72 = scmp.eq.s32.totalorder %s20, 1
    %p73 = por %p71, %p72
    %p74 = scmp.ne.s32.totalorder %s65, %s66
    %p75 = scmp.eq.s32.totalorder %s20, 0
    %p76 = por %p74, %p75
    %p77 = scmp.ne.s32.totalorder %s65, %s66
    %p78 = scmp.eq.s32.totalorder %s21, 1
    %p79 = por %p77, %p78
    %p81 = scmp.ne.s32.totalorder %s66, %s80
    %p82 = scmp.eq.s32.totalorder %s21, 0
    %p83 = por %p81, %p82
    %s85 = sadd.s32 %s84, 1
    %p88 = scmp.eq.s32.totalorder %s15, 1
    %p89 = scmp.ne.s32.totalorder %s84, %s86
    %p90 = scmp.eq.s32.totalorder %s15, 0
    %p91 = por %p89, %p90
    %p92 = scmp.ne.s32.totalorder %s84, %s86
    %p93 = scmp.eq.s32.totalorder %s20, 1
    %p94 = por %p92, %p93
    %p95 = scmp.ne.s32.totalorder %s86, %s87
    %p96 = scmp.eq.s32.totalorder %s20, 0
    %p97 = por %p95, %p96
    %p98 = scmp.ne.s32.totalorder %s86, %s87
    %p99 = scmp.eq.s32.totalorder %s21, 1
    %p100 = por %p98, %p99
    %p102 = scmp.ne.s32.totalorder %s87, %s101
    %p103 = scmp.eq.s32.totalorder %s21, 0
    %p104 = por %p102, %p103
    %s106 = sadd.s32 %s105, 1
    %p109 = scmp.eq.s32.totalorder %s15, 1
    %p110 = scmp.ne.s32.totalorder %s105, %s107
    %p111 = scmp.eq.s32.totalorder %s15, 0
    %p112 = por %p110, %p111
    %p113 = scmp.ne.s32.totalorder %s105, %s107
    %p114 = scmp.eq.s32.totalorder %s20, 1
    %p115 = por %p113, %p114
    %p116 = scmp.ne.s32.totalorder %s107, %s108
    %p117 = scmp.eq.s32.totalorder %s20, 0
    %p118 = por %p116, %p117
    %p119 = scmp.ne.s32.totalorder %s107, %s108
    %p120 = scmp.eq.s32.totalorder %s21, 1
    %p121 = por %p119, %p120
    %p123 = scmp.ne.s32.totalorder %s108, %s122
    %p124 = scmp.eq.s32.totalorder %s21, 0
    %p125 = por %p123, %p124
    %s126 = ssub.s32 %s22, %s34
    %p127 = scmp.eq.s32.totalorder %s126, 0
    %s129 = sadd.s32 %s128, 1
    %s130 = scalar_select %p127, %s128, %s129
    %p133 = pneg %p127
    %p134 = scmp.eq.s32.totalorder %s15, 1
    %p135 = por %p133, %p134
    %p136 = scmp.ne.s32.totalorder %s128, %s131
    %p137 = scmp.eq.s32.totalorder %s15, 0
    %p138 = por %p136, %p137
    %p139 = scmp.ne.s32.totalorder %s128, %s131
    %p140 = scmp.eq.s32.totalorder %s20, 1
    %p141 = por %p139, %p140
    %p142 = scmp.ne.s32.totalorder %s131, %s132
    %p143 = scmp.eq.s32.totalorder %s20, 0
    %p144 = por %p142, %p143
    %p145 = scmp.ne.s32.totalorder %s131, %s132
    %p146 = scmp.eq.s32.totalorder %s21, 1
    %p147 = por %p145, %p146
    %p149 = scmp.ne.s32.totalorder %s132, %s148
    %p150 = scmp.eq.s32.totalorder %s21, 0
    %p151 = por %p149, %p150
    %s152 = ssub.s32 %s22, %s34
    %p153 = scmp.eq.s32.totalorder %s152, 0
    %s155 = sadd.s32 %s154, 1
    %s156 = scalar_select %p153, %s154, %s155
    %p159 = pneg %p153
    %p160 = scmp.eq.s32.totalorder %s15, 1
    %p161 = por %p159, %p160
    %p162 = scmp.ne.s32.totalorder %s154, %s157
    %p163 = scmp.eq.s32.totalorder %s15, 0
    %p164 = por %p162, %p163
    %p165 = scmp.ne.s32.totalorder %s154, %s157
    %p166 = scmp.eq.s32.totalorder %s20, 1
    %p167 = por %p165, %p166
    %p168 = scmp.ne.s32.totalorder %s157, %s158
    %p169 = scmp.eq.s32.totalorder %s20, 0
    %p170 = por %p168, %p169
    %p171 = scmp.ne.s32.totalorder %s157, %s158
    %p172 = scmp.eq.s32.totalorder %s21, 1
    %p173 = por %p171, %p172
    %p175 = scmp.ne.s32.totalorder %s158, %s174
    %p176 = scmp.eq.s32.totalorder %s21, 0
    %p177 = por %p175, %p176
    %s178 = ssub.s32 %s23, %s30
    %s179 = ssub.s32 %s22, %s34
    %s180 = sor.u32 %s178, %s179
    %p181 = scmp.eq.s32.totalorder %s180, 0
    %s183 = sadd.s32 %s182, 1
    %s184 = scalar_select %p181, %s182, %s183
    %p187 = pneg %p181
    %p188 = scmp.eq.s32.totalorder %s15, 1
    %p189 = por %p187, %p188
    %p190 = scmp.ne.s32.totalorder %s182, %s185
    %p191 = scmp.eq.s32.totalorder %s15, 0
    %p192 = por %p190, %p191
    %p193 = scmp.ne.s32.totalorder %s182, %s185
    %p194 = scmp.eq.s32.totalorder %s20, 1
    %p195 = por %p193, %p194
    %p196 = scmp.ne.s32.totalorder %s185, %s186
    %p197 = scmp.eq.s32.totalorder %s20, 0
    %p198 = por %p196, %p197
    %p199 = scmp.ne.s32.totalorder %s185, %s186
    %p200 = scmp.eq.s32.totalorder %s21, 1
    %p201 = por %p199, %p200
    %p203 = scmp.ne.s32.totalorder %s186, %s202
    %p204 = scmp.eq.s32.totalorder %s21, 0
    %p205 = por %p203, %p204
    %s206 = ssub.s32 %s22, %s34
    %p207 = scmp.eq.s32.totalorder %s206, 0
    %s209 = sadd.s32 %s208, 1
    %s210 = scalar_select %p207, %s208, %s209
    %p213 = pneg %p207
    %p214 = scmp.eq.s32.totalorder %s15, 1
    %p215 = por %p213, %p214
    %p216 = scmp.ne.s32.totalorder %s208, %s211
    %p217 = scmp.eq.s32.totalorder %s15, 0
    %p218 = por %p216, %p217
    %p219 = scmp.ne.s32.totalorder %s208, %s211
    %p220 = scmp.eq.s32.totalorder %s20, 1
    %p221 = por %p219, %p220
    %p222 = scmp.ne.s32.totalorder %s211, %s212
    %p223 = scmp.eq.s32.totalorder %s20, 0
    %p224 = por %p222, %p223
    %p225 = scmp.ne.s32.totalorder %s211, %s212
    %p226 = scmp.eq.s32.totalorder %s21, 1
    %p227 = por %p225, %p226
    %p229 = scmp.ne.s32.totalorder %s212, %s228
    %p230 = scmp.eq.s32.totalorder %s21, 0
    %p231 = por %p229, %p230
    %s232 = ssub.s32 %s22, %s34
    %p233 = scmp.eq.s32.totalorder %s232, 0
    %s235 = sadd.s32 %s234, 1
    %s236 = scalar_select %p233, %s234, %s235
    %p239 = pneg %p233
    %p240 = scmp.eq.s32.totalorder %s15, 1
    %p241 = por %p239, %p240
    %p242 = scmp.ne.s32.totalorder %s234, %s237
    %p243 = scmp.eq.s32.totalorder %s15, 0
    %p244 = por %p242, %p243
    %p245 = scmp.ne.s32.totalorder %s234, %s237
    %p246 = scmp.eq.s32.totalorder %s20, 1
    %p247 = por %p245, %p246
    %p248 = scmp.ne.s32.totalorder %s237, %s238
    %p249 = scmp.eq.s32.totalorder %s20, 0
    %p250 = por %p248, %p249
    %p251 = scmp.ne.s32.totalorder %s237, %s238
    %p252 = scmp.eq.s32.totalorder %s21, 1
    %p253 = por %p251, %p252
    %p255 = scmp.ne.s32.totalorder %s238, %s254
    %p256 = scmp.eq.s32.totalorder %s21, 0
    %p257 = por %p255, %p256
    %p258 = scmp.le.s32.totalorder 1, %s15
    %p259 = scmp.lt.s32.totalorder %s15, 3
    %p260 = pnand %p258, %p259
    %p261 = pneg %p260
    // Predicated region
    $region9: #{encoder_forward.1} parent=5 // pred_check
      _
    $region10: #{encoder_forward.1} parent=5 // pred_check_branch
      %263 = sbr.rel (%p260) target = $region12
    $region11: #{encoder_forward.1} parent=5 // pred_region
      %s264 = ssub.s32 %s15, 1
      // Predicated region
      $region13: #{encoder_forward.1} parent=11 // pred_check
        %p265 = pneg %p76
      $region14: #{encoder_forward.1} parent=11 // pred_check_branch
        %267 = sbr.rel (%p265) target = $region16
      $region15: #{encoder_forward.1} parent=11 // pred_region
        _
      $region16: #{encoder_forward.1} parent=11 // pred_fallthru
        _
      // Predicated region
      $region17: #{encoder_forward.1} parent=11 // pred_check
        %p268 = pneg %p97
      $region18: #{encoder_forward.1} parent=11 // pred_check_branch
        %270 = sbr.rel (%p268) target = $region20
      $region19: #{encoder_forward.1} parent=11 // pred_region
        _
      $region20: #{encoder_forward.1} parent=11 // pred_fallthru
        _
      // Predicated region
      $region21: #{encoder_forward.1} parent=11 // pred_check
        %p271 = pneg %p118
      $region22: #{encoder_forward.1} parent=11 // pred_check_branch
        %273 = sbr.rel (%p271) target = $region24
      $region23: #{encoder_forward.1} parent=11 // pred_region
        _
      $region24: #{encoder_forward.1} parent=11 // pred_fallthru
        _
      // Predicated region
      $region25: #{encoder_forward.1} parent=11 // pred_check
        %p274 = pneg %p144
      $region26: #{encoder_forward.1} parent=11 // pred_check_branch
        %276 = sbr.rel (%p274) target = $region28
      $region27: #{encoder_forward.1} parent=11 // pred_region
        %p277 = scmp.lt.s32.totalorder %s24, 0
        %s278 = scalar_select %p277, %s24, 0
        %s279 = smul.addr %s278, 8
        %s280 = scalar_lea.vmem %s4, %s279
      $region28: #{encoder_forward.1} parent=11 // pred_fallthru
        _
      // Predicated region
      $region29: #{encoder_forward.1} parent=11 // pred_check
        %p281 = pneg %p170
      $region30: #{encoder_forward.1} parent=11 // pred_check_branch
        %283 = sbr.rel (%p281) target = $region32
      $region31: #{encoder_forward.1} parent=11 // pred_region
        %p284 = scmp.lt.s32.totalorder %s24, 0
        %s285 = scalar_select %p284, %s24, 0
        %s286 = smul.addr %s285, 8
        %s287 = scalar_lea.vmem %s5, %s286
      $region32: #{encoder_forward.1} parent=11 // pred_fallthru
        _
    $region12: #{encoder_forward.1} parent=5 // pred_fallthru
      _
    %p288 = scmp.lt.s32.totalorder %s15, 2
    // Predicated region
    $region33: #{encoder_forward.1} parent=5 // pred_check
      %p289 = pneg %p288
    $region34: #{encoder_forward.1} parent=5 // pred_check_branch
      %291 = sbr.rel (%p289) target = $region36
    $region35: #{encoder_forward.1} parent=5 // pred_region
      // Predicated region
      $region37: #{encoder_forward.1} parent=35 // pred_check
        %p292 = pneg %p49
      $region38: #{encoder_forward.1} parent=35 // pred_check_branch
        %294 = sbr.rel (%p292) target = $region40
      $region39: #{encoder_forward.1} parent=35 // pred_region
        %s295 = smul.u32 8, %s23
        %p296 = scmp.lt.s32.totalorder %s295, 15
        %s297 = scalar_select %p296, %s295, 15
        %p298 = scmp.lt.s32.totalorder %s22, 0
        %s299 = scalar_select %p298, %s22, 0
        %s300 = sadd.s32 %s299, %s297
        %s301 = smul.addr %s300, 4
        %s302 = scalar_lea.vmem %s0, %s301
        %s303 = smul.u32 8, %s23
      $region40: #{encoder_forward.1} parent=35 // pred_fallthru
        _
    $region36: #{encoder_forward.1} parent=5 // pred_fallthru
      _
    %p304 = scmp.le.s32.totalorder 1, %s15
    %p305 = scmp.lt.s32.totalorder %s15, 3
    %p306 = pnand %p304, %p305
    %p307 = pneg %p306
    // Predicated region
    $region41: #{encoder_forward.1} parent=5 // pred_check
      _
    $region42: #{encoder_forward.1} parent=5 // pred_check_branch
      %309 = sbr.rel (%p306) target = $region44
    $region43: #{encoder_forward.1} parent=5 // pred_region
      %s310 = ssub.s32 %s15, 1
      %s311 = smul.u32 8, %s25
      %p312 = scmp.lt.s32.totalorder %s311, 15
      %s313 = scalar_select %p312, %s311, 15
      %p314 = scmp.lt.s32.totalorder %s24, 0
      %s315 = scalar_select %p314, %s24, 0
      %s316 = sadd.s32 %s315, %s313
      %s317 = smul.addr %s316, 4
      %s318 = scalar_lea.vmem %s0, %s317
      %p319 = pneg %p55
      %p320 = pneg %p52
      %p321 = pneg %p76
      %p322 = pneg %p73
      %p323 = pneg %p97
      %p324 = pneg %p94
      %p325 = pneg %p118
      %p326 = pneg %p115
      %p327 = scmp.lt.s32.totalorder %s24, 0
      %s328 = scalar_select %p327, %s24, 0
      %s329 = smul.addr %s328, 8
      %s330 = scalar_lea.vmem %s4, %s329
      %p331 = pneg %p144
      %p332 = pneg %p141
      %p333 = scmp.lt.s32.totalorder %s24, 0
      %s334 = scalar_select %p333, %s24, 0
      %s335 = smul.addr %s334, 8
      %s336 = scalar_lea.vmem %s5, %s335
      %p337 = pneg %p170
      %p338 = pneg %p167
      %p339 = pneg %p198
      %p340 = pneg %p195
      %s341 = smul.u32 8, %s25
      %p342 = scmp.lt.s32.totalorder %s341, 15
      %s343 = scalar_select %p342, %s341, 15
      %p344 = scmp.lt.s32.totalorder %s24, 0
      %s345 = scalar_select %p344, %s24, 0
      %s346 = sadd.s32 %s345, %s343
      %s347 = smul.addr %s346, 8
      %s348 = scalar_lea.vmem %s6, %s347
      %p349 = pneg %p224
      %p350 = pneg %p221
      %p351 = scmp.lt.s32.totalorder %s24, 0
      %s352 = scalar_select %p351, %s24, 0
      %s353 = smul.addr %s352, 8
      %s354 = scalar_lea.vmem %s7, %s353
      %p355 = pneg %p250
      %p356 = pneg %p247
      %p357 = scmp.lt.s32.totalorder %s24, 0
      %s358 = scalar_select %p357, %s24, 0
      %s359 = smul.addr %s358, 8
      %s360 = scalar_lea.vmem %s8, %s359
      %s361 = smul.u32 8, %s25
      %p362 = scmp.lt.s32.totalorder %s361, 15
      %s363 = scalar_select %p362, %s361, 15
      %p364 = scmp.lt.s32.totalorder %s24, 0
      %s365 = scalar_select %p364, %s24, 0
      %s366 = sadd.s32 %s365, %s363
      %s367 = smul.addr %s366, 4
      %s368 = scalar_lea.vmem %s0, %s367
      %s369 = smul.u32 8, %s25
      %p370 = scmp.lt.s32.totalorder %s24, 0
      %s371 = scalar_select %p370, %s24, 0
      %s372 = smul.addr %s371, 8
      %s373 = scalar_lea.vmem %s4, %s372
      %p374 = scmp.lt.s32.totalorder %s24, 0
      %s375 = scalar_select %p374, %s24, 0
      %s376 = smul.addr %s375, 8
      %s377 = scalar_lea.vmem %s5, %s376
      %s378 = smul.u32 8, %s25
      %p379 = scmp.lt.s32.totalorder %s378, 15
      %s380 = scalar_select %p379, %s378, 15
      %p381 = scmp.lt.s32.totalorder %s24, 0
      %s382 = scalar_select %p381, %s24, 0
      %s383 = sadd.s32 %s382, %s380
      %s384 = smul.addr %s383, 8
      %s385 = scalar_lea.vmem %s6, %s384
      %s386 = smul.u32 8, %s25
      %p387 = scmp.lt.s32.totalorder %s24, 0
      %s388 = scalar_select %p387, %s24, 0
      %s389 = smul.addr %s388, 8
      %s390 = scalar_lea.vmem %s7, %s389
      %p391 = scmp.lt.s32.totalorder %s24, 0
      %s392 = scalar_select %p391, %s24, 0
      %s393 = smul.addr %s392, 8
      %s394 = scalar_lea.vmem %s8, %s393
      %p396 = scmp.eq.s32.totalorder %s25, 0
      // Predicated region
      $region45: #{encoder_forward.1} parent=43 // pred_check
        %p397 = pneg %p396
      $region46: #{encoder_forward.1} parent=43 // pred_check_branch
        %399 = sbr.rel (%p397) target = $region48
      $region47: #{encoder_forward.1} parent=43 // pred_region
        %v400 = vld [vmem:[%s373] sm:$0xff]
        %401 = vst [vmem:[#allocation3] sm:$0xff] %v400
        %v402 = vld [vmem:[%s377] sm:$0xff]
        %403 = vst [vmem:[#allocation4] sm:$0xff] %v402
      $region48: #{encoder_forward.1} parent=43 // pred_fallthru
        _
      %v404 = vld [vmem:[%s368] sm:$0xf]
      %v405 = vld [vmem:[%s368 + $0x4] sm:$0xf]
      %v406 = vld [vmem:[%s368 + $0x8] sm:$0xf]
      %v407 = vld [vmem:[%s368 + $0xc] sm:$0xf]
      %v408 = vld [vmem:[%s368 + $0x10] sm:$0xf]
      %v409 = vld [vmem:[%s368 + $0x14] sm:$0xf]
      %v410 = vld [vmem:[%s368 + $0x18] sm:$0xf]
      %v411 = vld [vmem:[%s368 + $0x1c] sm:$0xf]
      %v412 = vld [vmem:[%s1] sm:$0xff]
      %v413 = vld [vmem:[%s1 + $0x8] sm:$0xff]
      %v414 = vld [vmem:[%s1 + $0x10] sm:$0xff]
      %v415 = vld [vmem:[%s1 + $0x18] sm:$0xff]
      %v416 = vld [vmem:[%s1 + $0x20] sm:$0xff]
      %v417 = vld [vmem:[%s1 + $0x28] sm:$0xff]
      %v418 = vld [vmem:[%s1 + $0x30] sm:$0xff]
      %v419 = vld [vmem:[%s1 + $0x38] sm:$0xff]
      %v420 = vld [vmem:[%s1 + $0x40] sm:$0xff]
      %v421 = vld [vmem:[%s1 + $0x48] sm:$0xff]
      %v422 = vld [vmem:[%s1 + $0x50] sm:$0xff]
      %v423 = vld [vmem:[%s1 + $0x58] sm:$0xff]
      %v424 = vld [vmem:[%s1 + $0x60] sm:$0xff]
      %v425 = vld [vmem:[%s1 + $0x68] sm:$0xff]
      %v426 = vld [vmem:[%s1 + $0x70] sm:$0xff]
      %v427 = vld [vmem:[%s1 + $0x78] sm:$0xff]
      %v428 = vld [vmem:[%s1 + $0x80] sm:$0xff]
      %v429 = vld [vmem:[%s1 + $0x88] sm:$0xff]
      %v430 = vld [vmem:[%s1 + $0x90] sm:$0xff]
      %v431 = vld [vmem:[%s1 + $0x98] sm:$0xff]
      %v432 = vld [vmem:[%s1 + $0xa0] sm:$0xff]
      %v433 = vld [vmem:[%s1 + $0xa8] sm:$0xff]
      %v434 = vld [vmem:[%s1 + $0xb0] sm:$0xff]
      %v435 = vld [vmem:[%s1 + $0xb8] sm:$0xff]
      %v436 = vld [vmem:[%s1 + $0xc0] sm:$0xff]
      %v437 = vld [vmem:[%s1 + $0xc8] sm:$0xff]
      %v438 = vld [vmem:[%s1 + $0xd0] sm:$0xff]
      %v439 = vld [vmem:[%s1 + $0xd8] sm:$0xff]
      %v440 = vld [vmem:[%s1 + $0xe0] sm:$0xff]
      %v441 = vld [vmem:[%s1 + $0xe8] sm:$0xff]
      %v442 = vld [vmem:[%s1 + $0xf0] sm:$0xff]
      %v443 = vld [vmem:[%s1 + $0xf8] sm:$0xff]
      %v444 = vld [vmem:[%s3] sm:$0xf]
      %v446 = vlaneseq
      %v447 = vshrl.u32 %v446, 7
      %v448 = vsub.s32 0, %v447
      %v449 = vrot.slane %v444, %v448
      %v450 = vlaneseq
      %v451 = vshrl.u32 %v450, 7
      %v452 = vsub.s32 1, %v451
      %v453 = vrot.slane %v444, %v452
      %v454 = vlaneseq
      %v455 = vshrl.u32 %v454, 7
      %v456 = vsub.s32 2, %v455
      %v457 = vrot.slane %v444, %v456
      %v458 = vlaneseq
      %v459 = vshrl.u32 %v458, 7
      %v460 = vsub.s32 3, %v459
      %v461 = vrot.slane %v444, %v460
      %v474 = vunpack.c.l.b16 %v404
      %v475 = vunpack.c.l.b16 %v405
      %v476 = vunpack.c.l.b16 %v406
      %v477 = vunpack.c.l.b16 %v407
      %v478 = vunpack.c.l.b16 %v408
      %v479 = vunpack.c.l.b16 %v409
      %v480 = vunpack.c.l.b16 %v410
      %v481 = vunpack.c.l.b16 %v411
      %v482 = vpack.c.b16 %v475, %v474
      %v483 = vpack.c.b16 %v477, %v476
      %v484 = vpack.c.b16 %v479, %v478
      %v485 = vpack.c.b16 %v481, %v480
      %v522 = vunpack.c.l.b16 %v412
      %v523 = vunpack.c.h.b16 %v412
      %v524 = vunpack.c.l.b16 %v413
      %v525 = vunpack.c.h.b16 %v413
      %v526 = vunpack.c.l.b16 %v414
      %v527 = vunpack.c.h.b16 %v414
      %v528 = vunpack.c.l.b16 %v415
      %v529 = vunpack.c.h.b16 %v415
      %v530 = vunpack.c.l.b16 %v416
      %v531 = vunpack.c.h.b16 %v416
      %v532 = vunpack.c.l.b16 %v417
      %v533 = vunpack.c.h.b16 %v417
      %v534 = vunpack.c.l.b16 %v418
      %v535 = vunpack.c.h.b16 %v418
      %v536 = vunpack.c.l.b16 %v419
      %v537 = vunpack.c.h.b16 %v419
      %v538 = vunpack.c.l.b16 %v420
      %v539 = vunpack.c.h.b16 %v420
      %v540 = vunpack.c.l.b16 %v421
      %v541 = vunpack.c.h.b16 %v421
      %v542 = vunpack.c.l.b16 %v422
      %v543 = vunpack.c.h.b16 %v422
      %v544 = vunpack.c.l.b16 %v423
      %v545 = vunpack.c.h.b16 %v423
      %v546 = vunpack.c.l.b16 %v424
      %v547 = vunpack.c.h.b16 %v424
      %v548 = vunpack.c.l.b16 %v425
      %v549 = vunpack.c.h.b16 %v425
      %v550 = vunpack.c.l.b16 %v426
      %v551 = vunpack.c.h.b16 %v426
      %v552 = vunpack.c.l.b16 %v427
      %v553 = vunpack.c.h.b16 %v427
      %v554 = vunpack.c.l.b16 %v428
      %v555 = vunpack.c.h.b16 %v428
      %v556 = vunpack.c.l.b16 %v429
      %v557 = vunpack.c.h.b16 %v429
      %v558 = vunpack.c.l.b16 %v430
      %v559 = vunpack.c.h.b16 %v430
      %v560 = vunpack.c.l.b16 %v431
      %v561 = vunpack.c.h.b16 %v431
      %v562 = vunpack.c.l.b16 %v432
      %v563 = vunpack.c.h.b16 %v432
      %v564 = vunpack.c.l.b16 %v433
      %v565 = vunpack.c.h.b16 %v433
      %v566 = vunpack.c.l.b16 %v434
      %v567 = vunpack.c.h.b16 %v434
      %v568 = vunpack.c.l.b16 %v435
      %v569 = vunpack.c.h.b16 %v435
      %v570 = vunpack.c.l.b16 %v436
      %v571 = vunpack.c.h.b16 %v436
      %v572 = vunpack.c.l.b16 %v437
      %v573 = vunpack.c.h.b16 %v437
      %v574 = vunpack.c.l.b16 %v438
      %v575 = vunpack.c.h.b16 %v438
      %v576 = vunpack.c.l.b16 %v439
      %v577 = vunpack.c.h.b16 %v439
      %v578 = vunpack.c.l.b16 %v440
      %v579 = vunpack.c.h.b16 %v440
      %v580 = vunpack.c.l.b16 %v441
      %v581 = vunpack.c.h.b16 %v441
      %v582 = vunpack.c.l.b16 %v442
      %v583 = vunpack.c.h.b16 %v442
      %v584 = vunpack.c.l.b16 %v443
      %v585 = vunpack.c.h.b16 %v443
      %v586 = vpack.c.b16 %v526, %v522
      %v587 = vpack.c.b16 %v527, %v523
      %v588 = vpack.c.b16 %v528, %v524
      %v589 = vpack.c.b16 %v529, %v525
      %v590 = vpack.c.b16 %v534, %v530
      %v591 = vpack.c.b16 %v535, %v531
      %v592 = vpack.c.b16 %v536, %v532
      %v593 = vpack.c.b16 %v537, %v533
      %v594 = vpack.c.b16 %v542, %v538
      %v595 = vpack.c.b16 %v543, %v539
      %v596 = vpack.c.b16 %v544, %v540
      %v597 = vpack.c.b16 %v545, %v541
      %v598 = vpack.c.b16 %v550, %v546
      %v599 = vpack.c.b16 %v551, %v547
      %v600 = vpack.c.b16 %v552, %v548
      %v601 = vpack.c.b16 %v553, %v549
      %v602 = vpack.c.b16 %v558, %v554
      %v603 = vpack.c.b16 %v559, %v555
      %v604 = vpack.c.b16 %v560, %v556
      %v605 = vpack.c.b16 %v561, %v557
      %v606 = vpack.c.b16 %v566, %v562
      %v607 = vpack.c.b16 %v567, %v563
      %v608 = vpack.c.b16 %v568, %v564
      %v609 = vpack.c.b16 %v569, %v565
      %v610 = vpack.c.b16 %v574, %v570
      %v611 = vpack.c.b16 %v575, %v571
      %v612 = vpack.c.b16 %v576, %v572
      %v613 = vpack.c.b16 %v577, %v573
      %v614 = vpack.c.b16 %v582, %v578
      %v615 = vpack.c.b16 %v583, %v579
      %v616 = vpack.c.b16 %v584, %v580
      %v617 = vpack.c.b16 %v585, %v581
      %650 = vmatprep.subr.bf16.mxu0 %v587
      %651 = vmatpush1.bf16.msra.mxu0 %v586
      %652 = vmatprep.subr.bf16.mxu0 %v591
      %653 = vmatpush1.bf16.msra.mxu0 %v590
      %654 = vmatprep.subr.bf16.mxu0 %v595
      %655 = vmatpush1.bf16.msra.mxu0 %v594
      %656 = vmatprep.subr.bf16.mxu0 %v599
      %657 = vmatpush1.bf16.msra.mxu0 %v598
      %658 = vmatprep.subr.bf16.mxu0 %v603
      %659 = vmatpush1.bf16.msra.mxu0 %v602
      %660 = vmatprep.subr.bf16.mxu0 %v607
      %661 = vmatpush1.bf16.msra.mxu0 %v606
      %662 = vmatprep.subr.bf16.mxu0 %v611
      %663 = vmatpush1.bf16.msra.mxu0 %v610
      %664 = vmatprep.subr.bf16.mxu0 %v615
      %665 = vmatpush1.bf16.msra.mxu0 %v614
      %666 = vmatprep.subr.bf16.mxu0 0
      %667 = vmatpush1.bf16.msra.mxu0 0
      %668 = vmatprep.subr.bf16.mxu0 0
      %669 = vmatpush1.bf16.msra.mxu0 0
      %670 = vmatprep.subr.bf16.mxu0 0
      %671 = vmatpush1.bf16.msra.mxu0 0
      %672 = vmatprep.subr.bf16.mxu0 0
      %673 = vmatpush1.bf16.msra.mxu0 0
      %674 = vmatprep.subr.bf16.mxu0 0
      %675 = vmatpush1.bf16.msra.mxu0 0
      %676 = vmatprep.subr.bf16.mxu0 0
      %677 = vmatpush1.bf16.msra.mxu0 0
      %678 = vmatprep.subr.bf16.mxu0 0
      %679 = vmatpush1.bf16.msra.mxu0 0
      %680 = vmatprep.subr.bf16.mxu0 0
      %681 = vmatpush1.bf16.msra.mxu0 0
      %682 = vmatprep.mubr.bf16.mxu0 0
      %683 = vmatmul.mubr.bf16.gmra.mrb[0].mxu0 %v482
      %v684 = vpop.f32.mrb[0].mxu0
      %v685 = vadd.f32 %v449, %v684
      %v686 = vpop.f32.mrb[0].mxu0
      %v687 = vadd.f32 %v453, %v686
      %v688 = vpop.f32.mrb[0].mxu0
      %v689 = vadd.f32 %v449, %v688
      %v690 = vpop.f32.mrb[0].mxu0
      %v691 = vadd.f32 %v453, %v690
      %692 = vmatprep.mubr.bf16.mxu0 0
      %693 = vmatmul.mubr.bf16.gmra.mrb[0].mxu0 %v483
      %v694 = vpop.f32.mrb[0].mxu0
      %v695 = vadd.f32 %v449, %v694
      %v696 = vpop.f32.mrb[0].mxu0
      %v697 = vadd.f32 %v453, %v696
      %v698 = vpop.f32.mrb[0].mxu0
      %v699 = vadd.f32 %v449, %v698
      %v700 = vpop.f32.mrb[0].mxu0
      %v701 = vadd.f32 %v453, %v700
      %702 = vmatprep.mubr.bf16.mxu0 0
      %703 = vmatmul.mubr.bf16.gmra.mrb[0].mxu0 %v484
      %v704 = vpop.f32.mrb[0].mxu0
      %v705 = vadd.f32 %v449, %v704
      %v706 = vpop.f32.mrb[0].mxu0
      %v707 = vadd.f32 %v453, %v706
      %v708 = vpop.f32.mrb[0].mxu0
      %v709 = vadd.f32 %v449, %v708
      %v710 = vpop.f32.mrb[0].mxu0
      %v711 = vadd.f32 %v453, %v710
      %712 = vmatprep.mubr.bf16.mxu0 0
      %713 = vmatmul.mubr.bf16.gmra.mrb[0].mxu0 %v485
      %v714 = vpop.f32.mrb[0].mxu0
      %v715 = vadd.f32 %v449, %v714
      %v716 = vpop.f32.mrb[0].mxu0
      %v717 = vadd.f32 %v453, %v716
      %v718 = vpop.f32.mrb[0].mxu0
      %v719 = vadd.f32 %v449, %v718
      %v720 = vpop.f32.mrb[0].mxu0
      %v721 = vadd.f32 %v453, %v720
      %722 = vdwg.mxu0
      %723 = vmatprep.subr.bf16.mxu0 %v589
      %724 = vmatpush1.bf16.msra.mxu0 %v588
      %725 = vmatprep.subr.bf16.mxu0 %v593
      %726 = vmatpush1.bf16.msra.mxu0 %v592
      %727 = vmatprep.subr.bf16.mxu0 %v597
      %728 = vmatpush1.bf16.msra.mxu0 %v596
      %729 = vmatprep.subr.bf16.mxu0 %v601
      %730 = vmatpush1.bf16.msra.mxu0 %v600
      %731 = vmatprep.subr.bf16.mxu0 %v605
      %732 = vmatpush1.bf16.msra.mxu0 %v604
      %733 = vmatprep.subr.bf16.mxu0 %v609
      %734 = vmatpush1.bf16.msra.mxu0 %v608
      %735 = vmatprep.subr.bf16.mxu0 %v613
      %736 = vmatpush1.bf16.msra.mxu0 %v612
      %737 = vmatprep.subr.bf16.mxu0 %v617
      %738 = vmatpush1.bf16.msra.mxu0 %v616
      %739 = vmatprep.subr.bf16.mxu0 0
      %740 = vmatpush1.bf16.msra.mxu0 0
      %741 = vmatprep.subr.bf16.mxu0 0
      %742 = vmatpush1.bf16.msra.mxu0 0
      %743 = vmatprep.subr.bf16.mxu0 0
      %744 = vmatpush1.bf16.msra.mxu0 0
      %745 = vmatprep.subr.bf16.mxu0 0
      %746 = vmatpush1.bf16.msra.mxu0 0
      %747 = vmatprep.subr.bf16.mxu0 0
      %748 = vmatpush1.bf16.msra.mxu0 0
      %749 = vmatprep.subr.bf16.mxu0 0
      %750 = vmatpush1.bf16.msra.mxu0 0
      %751 = vmatprep.subr.bf16.mxu0 0
      %752 = vmatpush1.bf16.msra.mxu0 0
      %753 = vmatprep.subr.bf16.mxu0 0
      %754 = vmatpush1.bf16.msra.mxu0 0
      %755 = vmatprep.mubr.bf16.mxu0 0
      %756 = vmatmul.mubr.bf16.gmra.mrb[0].mxu0 %v482
      %v757 = vpop.f32.mrb[0].mxu0
      %v758 = vadd.f32 %v457, %v757
      %v759 = vpop.f32.mrb[0].mxu0
      %v760 = vadd.f32 %v461, %v759
      %v761 = vpop.f32.mrb[0].mxu0
      %v762 = vadd.f32 %v457, %v761
      %v763 = vpop.f32.mrb[0].mxu0
      %v764 = vadd.f32 %v461, %v763
      %765 = vmatprep.mubr.bf16.mxu0 0
      %766 = vmatmul.mubr.bf16.gmra.mrb[0].mxu0 %v483
      %v767 = vpop.f32.mrb[0].mxu0
      %v768 = vadd.f32 %v457, %v767
      %v769 = vpop.f32.mrb[0].mxu0
      %v770 = vadd.f32 %v461, %v769
      %v771 = vpop.f32.mrb[0].mxu0
      %v772 = vadd.f32 %v457, %v771
      %v773 = vpop.f32.mrb[0].mxu0
      %v774 = vadd.f32 %v461, %v773
      %775 = vmatprep.mubr.bf16.mxu0 0
      %776 = vmatmul.mubr.bf16.gmra.mrb[0].mxu0 %v484
      %v777 = vpop.f32.mrb[0].mxu0
      %v778 = vadd.f32 %v457, %v777
      %v779 = vpop.f32.mrb[0].mxu0
      %v780 = vadd.f32 %v461, %v779
      %v781 = vpop.f32.mrb[0].mxu0
      %v782 = vadd.f32 %v457, %v781
      %v783 = vpop.f32.mrb[0].mxu0
      %v784 = vadd.f32 %v461, %v783
      %785 = vmatprep.mubr.bf16.mxu0 0
      %786 = vmatmul.mubr.bf16.gmra.mrb[0].mxu0 %v485
      %v787 = vpop.f32.mrb[0].mxu0
      %v788 = vadd.f32 %v457, %v787
      %v789 = vpop.f32.mrb[0].mxu0
      %v790 = vadd.f32 %v461, %v789
      %v791 = vpop.f32.mrb[0].mxu0
      %v792 = vadd.f32 %v457, %v791
      %v793 = vpop.f32.mrb[0].mxu0
      %v794 = vadd.f32 %v461, %v793
      %795 = vdwg.mxu0
      %796 = vst [vmem:[#allocation2] sm:$0xff] %v685
      %797 = vst [vmem:[#allocation2 + $0x8] sm:$0xff] %v687
      %798 = vst [vmem:[#allocation2 + $0x10] sm:$0xff] %v758
      %799 = vst [vmem:[#allocation2 + $0x18] sm:$0xff] %v760
      %800 = vst [vmem:[#allocation2 + $0x20] sm:$0xff] %v689
      %801 = vst [vmem:[#allocation2 + $0x28] sm:$0xff] %v691
      %802 = vst [vmem:[#allocation2 + $0x30] sm:$0xff] %v762
      %803 = vst [vmem:[#allocation2 + $0x38] sm:$0xff] %v764
      %804 = vst [vmem:[#allocation2 + $0x40] sm:$0xff] %v695
      %805 = vst [vmem:[#allocation2 + $0x48] sm:$0xff] %v697
      %806 = vst [vmem:[#allocation2 + $0x50] sm:$0xff] %v768
      %807 = vst [vmem:[#allocation2 + $0x58] sm:$0xff] %v770
      %808 = vst [vmem:[#allocation2 + $0x60] sm:$0xff] %v699
      %809 = vst [vmem:[#allocation2 + $0x68] sm:$0xff] %v701
      %810 = vst [vmem:[#allocation2 + $0x70] sm:$0xff] %v772
      %811 = vst [vmem:[#allocation2 + $0x78] sm:$0xff] %v774
      %812 = vst [vmem:[#allocation2 + $0x80] sm:$0xff] %v705
      %813 = vst [vmem:[#allocation2 + $0x88] sm:$0xff] %v707
      %814 = vst [vmem:[#allocation2 + $0x90] sm:$0xff] %v778
      %815 = vst [vmem:[#allocation2 + $0x98] sm:$0xff] %v780
      %816 = vst [vmem:[#allocation2 + $0xa0] sm:$0xff] %v709
      %817 = vst [vmem:[#allocation2 + $0xa8] sm:$0xff] %v711
      %818 = vst [vmem:[#allocation2 + $0xb0] sm:$0xff] %v782
      %819 = vst [vmem:[#allocation2 + $0xb8] sm:$0xff] %v784
      %820 = vst [vmem:[#allocation2 + $0xc0] sm:$0xff] %v715
      %821 = vst [vmem:[#allocation2 + $0xc8] sm:$0xff] %v717
      %822 = vst [vmem:[#allocation2 + $0xd0] sm:$0xff] %v788
      %823 = vst [vmem:[#allocation2 + $0xd8] sm:$0xff] %v790
      %824 = vst [vmem:[#allocation2 + $0xe0] sm:$0xff] %v719
      %825 = vst [vmem:[#allocation2 + $0xe8] sm:$0xff] %v721
      %826 = vst [vmem:[#allocation2 + $0xf0] sm:$0xff] %v792
      %827 = vst [vmem:[#allocation2 + $0xf8] sm:$0xff] %v794
      %v828 = vld [vmem:[#allocation3] sm:$0xff]
      %v829 = vld [vmem:[#allocation4] sm:$0xff]
      %v830 = vld [vmem:[#allocation2] sm:$0xff]
      %v831 = vld [vmem:[#allocation2 + $0x8] sm:$0xff]
      %v832 = vld [vmem:[#allocation2 + $0x10] sm:$0xff]
      %v833 = vld [vmem:[#allocation2 + $0x18] sm:$0xff]
      %v834 = vpack.c.bf16 %v828, %v828
      %v835 = vld [vmem:[%s2] sm:$0xff]
      %v836 = vld [vmem:[%s2 + $0x8] sm:$0xff]
      %v837 = vld [vmem:[%s2 + $0x10] sm:$0xff]
      %v838 = vld [vmem:[%s2 + $0x18] sm:$0xff]
      %v839 = vld [vmem:[%s2 + $0x20] sm:$0xff]
      %v840 = vld [vmem:[%s2 + $0x28] sm:$0xff]
      %v841 = vld [vmem:[%s2 + $0x30] sm:$0xff]
      %v842 = vld [vmem:[%s2 + $0x38] sm:$0xff]
      %v843 = vld [vmem:[%s2 + $0x40] sm:$0xff]
      %v844 = vld [vmem:[%s2 + $0x48] sm:$0xff]
      %v845 = vld [vmem:[%s2 + $0x50] sm:$0xff]
      %v846 = vld [vmem:[%s2 + $0x58] sm:$0xff]
      %v847 = vld [vmem:[%s2 + $0x60] sm:$0xff]
      %v848 = vld [vmem:[%s2 + $0x68] sm:$0xff]
      %v849 = vld [vmem:[%s2 + $0x70] sm:$0xff]
      %v850 = vld [vmem:[%s2 + $0x78] sm:$0xff]
      %v851 = vld [vmem:[%s2 + $0x80] sm:$0xff]
      %v852 = vld [vmem:[%s2 + $0x88] sm:$0xff]
      %v853 = vld [vmem:[%s2 + $0x90] sm:$0xff]
      %v854 = vld [vmem:[%s2 + $0x98] sm:$0xff]
      %v855 = vld [vmem:[%s2 + $0xa0] sm:$0xff]
      %v856 = vld [vmem:[%s2 + $0xa8] sm:$0xff]
      %v857 = vld [vmem:[%s2 + $0xb0] sm:$0xff]
      %v858 = vld [vmem:[%s2 + $0xb8] sm:$0xff]
      %v859 = vld [vmem:[%s2 + $0xc0] sm:$0xff]
      %v860 = vld [vmem:[%s2 + $0xc8] sm:$0xff]
      %v861 = vld [vmem:[%s2 + $0xd0] sm:$0xff]
      %v862 = vld [vmem:[%s2 + $0xd8] sm:$0xff]
      %v863 = vld [vmem:[%s2 + $0xe0] sm:$0xff]
      %v864 = vld [vmem:[%s2 + $0xe8] sm:$0xff]
      %v865 = vld [vmem:[%s2 + $0xf0] sm:$0xff]
      %v866 = vld [vmem:[%s2 + $0xf8] sm:$0xff]
      %v899 = vunpack.c.l.b16 %v835
      %v900 = vunpack.c.h.b16 %v835
      %v901 = vunpack.c.l.b16 %v836
      %v902 = vunpack.c.h.b16 %v836
      %v903 = vunpack.c.l.b16 %v837
      %v904 = vunpack.c.h.b16 %v837
      %v905 = vunpack.c.l.b16 %v838
      %v906 = vunpack.c.h.b16 %v838
      %v907 = vunpack.c.l.b16 %v839
      %v908 = vunpack.c.h.b16 %v839
      %v909 = vunpack.c.l.b16 %v840
      %v910 = vunpack.c.h.b16 %v840
      %v911 = vunpack.c.l.b16 %v841
      %v912 = vunpack.c.h.b16 %v841
      %v913 = vunpack.c.l.b16 %v842
      %v914 = vunpack.c.h.b16 %v842
      %v915 = vunpack.c.l.b16 %v843
      %v916 = vunpack.c.h.b16 %v843
      %v917 = vunpack.c.l.b16 %v844
      %v918 = vunpack.c.h.b16 %v844
      %v919 = vunpack.c.l.b16 %v845
      %v920 = vunpack.c.h.b16 %v845
      %v921 = vunpack.c.l.b16 %v846
      %v922 = vunpack.c.h.b16 %v846
      %v923 = vunpack.c.l.b16 %v847
      %v924 = vunpack.c.h.b16 %v847
      %v925 = vunpack.c.l.b16 %v848
      %v926 = vunpack.c.h.b16 %v848
      %v927 = vunpack.c.l.b16 %v849
      %v928 = vunpack.c.h.b16 %v849
      %v929 = vunpack.c.l.b16 %v850
      %v930 = vunpack.c.h.b16 %v850
      %v931 = vunpack.c.l.b16 %v851
      %v932 = vunpack.c.h.b16 %v851
      %v933 = vunpack.c.l.b16 %v852
      %v934 = vunpack.c.h.b16 %v852
      %v935 = vunpack.c.l.b16 %v853
      %v936 = vunpack.c.h.b16 %v853
      %v937 = vunpack.c.l.b16 %v854
      %v938 = vunpack.c.h.b16 %v854
      %v939 = vunpack.c.l.b16 %v855
      %v940 = vunpack.c.h.b16 %v855
      %v941 = vunpack.c.l.b16 %v856
      %v942 = vunpack.c.h.b16 %v856
      %v943 = vunpack.c.l.b16 %v857
      %v944 = vunpack.c.h.b16 %v857
      %v945 = vunpack.c.l.b16 %v858
      %v946 = vunpack.c.h.b16 %v858
      %v947 = vunpack.c.l.b16 %v859
      %v948 = vunpack.c.h.b16 %v859
      %v949 = vunpack.c.l.b16 %v860
      %v950 = vunpack.c.h.b16 %v860
      %v951 = vunpack.c.l.b16 %v861
      %v952 = vunpack.c.h.b16 %v861
      %v953 = vunpack.c.l.b16 %v862
      %v954 = vunpack.c.h.b16 %v862
      %v955 = vunpack.c.l.b16 %v863
      %v956 = vunpack.c.h.b16 %v863
      %v957 = vunpack.c.l.b16 %v864
      %v958 = vunpack.c.h.b16 %v864
      %v959 = vunpack.c.l.b16 %v865
      %v960 = vunpack.c.h.b16 %v865
      %v961 = vunpack.c.l.b16 %v866
      %v962 = vunpack.c.h.b16 %v866
      %v963 = vpack.c.b16 %v903, %v899
      %v964 = vpack.c.b16 %v904, %v900
      %v965 = vpack.c.b16 %v905, %v901
      %v966 = vpack.c.b16 %v906, %v902
      %v967 = vpack.c.b16 %v911, %v907
      %v968 = vpack.c.b16 %v912, %v908
      %v969 = vpack.c.b16 %v913, %v909
      %v970 = vpack.c.b16 %v914, %v910
      %v971 = vpack.c.b16 %v919, %v915
      %v972 = vpack.c.b16 %v920, %v916
      %v973 = vpack.c.b16 %v921, %v917
      %v974 = vpack.c.b16 %v922, %v918
      %v975 = vpack.c.b16 %v927, %v923
      %v976 = vpack.c.b16 %v928, %v924
      %v977 = vpack.c.b16 %v929, %v925
      %v978 = vpack.c.b16 %v930, %v926
      %v979 = vpack.c.b16 %v935, %v931
      %v980 = vpack.c.b16 %v936, %v932
      %v981 = vpack.c.b16 %v937, %v933
      %v982 = vpack.c.b16 %v938, %v934
      %v983 = vpack.c.b16 %v943, %v939
      %v984 = vpack.c.b16 %v944, %v940
      %v985 = vpack.c.b16 %v945, %v941
      %v986 = vpack.c.b16 %v946, %v942
      %v987 = vpack.c.b16 %v951, %v947
      %v988 = vpack.c.b16 %v952, %v948
      %v989 = vpack.c.b16 %v953, %v949
      %v990 = vpack.c.b16 %v954, %v950
      %v991 = vpack.c.b16 %v959, %v955
      %v992 = vpack.c.b16 %v960, %v956
      %v993 = vpack.c.b16 %v961, %v957
      %v994 = vpack.c.b16 %v962, %v958
      %1027 = vmatprep.subr.bf16.mxu0 %v964
      %1028 = vmatpush1.bf16.msra.mxu0 %v963
      %1029 = vmatprep.subr.bf16.mxu0 %v968
      %1030 = vmatpush1.bf16.msra.mxu0 %v967
      %1031 = vmatprep.subr.bf16.mxu0 %v972
      %1032 = vmatpush1.bf16.msra.mxu0 %v971
      %1033 = vmatprep.subr.bf16.mxu0 %v976
      %1034 = vmatpush1.bf16.msra.mxu0 %v975
      %1035 = vmatprep.subr.bf16.mxu0 %v980
      %1036 = vmatpush1.bf16.msra.mxu0 %v979
      %1037 = vmatprep.subr.bf16.mxu0 %v984
      %1038 = vmatpush1.bf16.msra.mxu0 %v983
      %1039 = vmatprep.subr.bf16.mxu0 %v988
      %1040 = vmatpush1.bf16.msra.mxu0 %v987
      %1041 = vmatprep.subr.bf16.mxu0 %v992
      %1042 = vmatpush1.bf16.msra.mxu0 %v991
      %1043 = vmatprep.subr.bf16.mxu0 0
      %1044 = vmatpush1.bf16.msra.mxu0 0
      %1045 = vmatprep.subr.bf16.mxu0 0
      %1046 = vmatpush1.bf16.msra.mxu0 0
      %1047 = vmatprep.subr.bf16.mxu0 0
      %1048 = vmatpush1.bf16.msra.mxu0 0
      %1049 = vmatprep.subr.bf16.mxu0 0
      %1050 = vmatpush1.bf16.msra.mxu0 0
      %1051 = vmatprep.subr.bf16.mxu0 0
      %1052 = vmatpush1.bf16.msra.mxu0 0
      %1053 = vmatprep.subr.bf16.mxu0 0
      %1054 = vmatpush1.bf16.msra.mxu0 0
      %1055 = vmatprep.subr.bf16.mxu0 0
      %1056 = vmatpush1.bf16.msra.mxu0 0
      %1057 = vmatprep.subr.bf16.mxu0 0
      %1058 = vmatpush1.bf16.msra.mxu0 0
      %1059 = vmatprep.mubr.bf16.mxu0 0
      %1060 = vmatmul.mubr.bf16.gmra.mrb[0].mxu0 %v834
      %v1061 = vpop.f32.mrb[0].mxu0
      %v1062 = vadd.f32 0.0, %v1061
      %v1063 = vpop.f32.mrb[0].mxu0
      %v1064 = vadd.f32 0.0, %v1063
      %v1065 = vpop.f32.mrb[0].mxu0
      %v1066 = vpop.f32.mrb[0].mxu0
      %1067 = vdwg.mxu0
      %1068 = vmatprep.subr.bf16.mxu0 %v966
      %1069 = vmatpush1.bf16.msra.mxu0 %v965
      %1070 = vmatprep.subr.bf16.mxu0 %v970
      %1071 = vmatpush1.bf16.msra.mxu0 %v969
      %1072 = vmatprep.subr.bf16.mxu0 %v974
      %1073 = vmatpush1.bf16.msra.mxu0 %v973
      %1074 = vmatprep.subr.bf16.mxu0 %v978
      %1075 = vmatpush1.bf16.msra.mxu0 %v977
      %1076 = vmatprep.subr.bf16.mxu0 %v982
      %1077 = vmatpush1.bf16.msra.mxu0 %v981
      %1078 = vmatprep.subr.bf16.mxu0 %v986
      %1079 = vmatpush1.bf16.msra.mxu0 %v985
      %1080 = vmatprep.subr.bf16.mxu0 %v990
      %1081 = vmatpush1.bf16.msra.mxu0 %v989
      %1082 = vmatprep.subr.bf16.mxu0 %v994
      %1083 = vmatpush1.bf16.msra.mxu0 %v993
      %1084 = vmatprep.subr.bf16.mxu0 0
      %1085 = vmatpush1.bf16.msra.mxu0 0
      %1086 = vmatprep.subr.bf16.mxu0 0
      %1087 = vmatpush1.bf16.msra.mxu0 0
      %1088 = vmatprep.subr.bf16.mxu0 0
      %1089 = vmatpush1.bf16.msra.mxu0 0
      %1090 = vmatprep.subr.bf16.mxu0 0
      %1091 = vmatpush1.bf16.msra.mxu0 0
      %1092 = vmatprep.subr.bf16.mxu0 0
      %1093 = vmatpush1.bf16.msra.mxu0 0
      %1094 = vmatprep.subr.bf16.mxu0 0
      %1095 = vmatpush1.bf16.msra.mxu0 0
      %1096 = vmatprep.subr.bf16.mxu0 0
      %1097 = vmatpush1.bf16.msra.mxu0 0
      %1098 = vmatprep.subr.bf16.mxu0 0
      %1099 = vmatpush1.bf16.msra.mxu0 0
      %1100 = vmatprep.mubr.bf16.mxu0 0
      %1101 = vmatmul.mubr.bf16.gmra.mrb[0].mxu0 %v834
      %v1102 = vpop.f32.mrb[0].mxu0
      %v1103 = vadd.f32 0.0, %v1102
      %v1104 = vpop.f32.mrb[0].mxu0
      %v1105 = vadd.f32 0.0, %v1104
      %v1106 = vpop.f32.mrb[0].mxu0
      %v1107 = vpop.f32.mrb[0].mxu0
      %1108 = vdwg.mxu0
      %v1109 = vadd.f32 %v830, %v1062
      %v1110 = vadd.f32 %v831, %v1064
      %v1111 = vadd.f32 %v832, %v1103
      %v1112 = vadd.f32 %v833, %v1105
      %v1113 = vmul.f32 %v1109, 0.5
      %v1114 = vtanh.pop %v1113
      %v1115 = vmul.f32 %v1114, 0.5
      %v1116 = vadd.f32 %v1115, 0.5
      %v1117 = vmul.f32 %v1110, 0.5
      %v1118 = vtanh.pop %v1117
      %v1119 = vmul.f32 %v1118, 0.5
      %v1120 = vadd.f32 %v1119, 0.5
      %v1121 = vtanh.pop %v1111
      %v1122 = vmul.f32 %v1112, 0.5
      %v1123 = vtanh.pop %v1122
      %v1124 = vmul.f32 %v1123, 0.5
      %v1125 = vadd.f32 %v1124, 0.5
      %v1126 = vmul.f32 %v1120, %v829
      %v1127 = vmul.f32 %v1116, %v1121
      %v1128 = vadd.f32 %v1126, %v1127
      %v1129 = vtanh.pop %v1128
      %v1130 = vmul.f32 %v1125, %v1129
      %1131 = vst [vmem:[%s385] sm:$0xff] %v1130
      %s1132 = scalar_lea.vmem [#allocation2], 32
      %v1133 = vld [vmem:[%s1132] sm:$0xff]
      %v1134 = vld [vmem:[%s1132 + $0x8] sm:$0xff]
      %v1135 = vld [vmem:[%s1132 + $0x10] sm:$0xff]
      %v1136 = vld [vmem:[%s1132 + $0x18] sm:$0xff]
      %v1137 = vpack.c.bf16 %v1130, %v1130
      %v1138 = vld [vmem:[%s2] sm:$0xff]
      %v1139 = vld [vmem:[%s2 + $0x8] sm:$0xff]
      %v1140 = vld [vmem:[%s2 + $0x10] sm:$0xff]
      %v1141 = vld [vmem:[%s2 + $0x18] sm:$0xff]
      %v1142 = vld [vmem:[%s2 + $0x20] sm:$0xff]
      %v1143 = vld [vmem:[%s2 + $0x28] sm:$0xff]
      %v1144 = vld [vmem:[%s2 + $0x30] sm:$0xff]
      %v1145 = vld [vmem:[%s2 + $0x38] sm:$0xff]
      %v1146 = vld [vmem:[%s2 + $0x40] sm:$0xff]
      %v1147 = vld [vmem:[%s2 + $0x48] sm:$0xff]
      %v1148 = vld [vmem:[%s2 + $0x50] sm:$0xff]
      %v1149 = vld [vmem:[%s2 + $0x58] sm:$0xff]
      %v1150 = vld [vmem:[%s2 + $0x60] sm:$0xff]
      %v1151 = vld [vmem:[%s2 + $0x68] sm:$0xff]
      %v1152 = vld [vmem:[%s2 + $0x70] sm:$0xff]
      %v1153 = vld [vmem:[%s2 + $0x78] sm:$0xff]
      %v1154 = vld [vmem:[%s2 + $0x80] sm:$0xff]
      %v1155 = vld [vmem:[%s2 + $0x88] sm:$0xff]
      %v1156 = vld [vmem:[%s2 + $0x90] sm:$0xff]
      %v1157 = vld [vmem:[%s2 + $0x98] sm:$0xff]
      %v1158 = vld [vmem:[%s2 + $0xa0] sm:$0xff]
      %v1159 = vld [vmem:[%s2 + $0xa8] sm:$0xff]
      %v1160 = vld [vmem:[%s2 + $0xb0] sm:$0xff]
      %v1161 = vld [vmem:[%s2 + $0xb8] sm:$0xff]
      %v1162 = vld [vmem:[%s2 + $0xc0] sm:$0xff]
      %v1163 = vld [vmem:[%s2 + $0xc8] sm:$0xff]
      %v1164 = vld [vmem:[%s2 + $0xd0] sm:$0xff]
      %v1165 = vld [vmem:[%s2 + $0xd8] sm:$0xff]
      %v1166 = vld [vmem:[%s2 + $0xe0] sm:$0xff]
      %v1167 = vld [vmem:[%s2 + $0xe8] sm:$0xff]
      %v1168 = vld [vmem:[%s2 + $0xf0] sm:$0xff]
      %v1169 = vld [vmem:[%s2 + $0xf8] sm:$0xff]
      %v1202 = vunpack.c.l.b16 %v1138
      %v1203 = vunpack.c.h.b16 %v1138
      %v1204 = vunpack.c.l.b16 %v1139
      %v1205 = vunpack.c.h.b16 %v1139
      %v1206 = vunpack.c.l.b16 %v1140
      %v1207 = vunpack.c.h.b16 %v1140
      %v1208 = vunpack.c.l.b16 %v1141
      %v1209 = vunpack.c.h.b16 %v1141
      %v1210 = vunpack.c.l.b16 %v1142
      %v1211 = vunpack.c.h.b16 %v1142
      %v1212 = vunpack.c.l.b16 %v1143
      %v1213 = vunpack.c.h.b16 %v1143
      %v1214 = vunpack.c.l.b16 %v1144
      %v1215 = vunpack.c.h.b16 %v1144
      %v1216 = vunpack.c.l.b16 %v1145
      %v1217 = vunpack.c.h.b16 %v1145
      %v1218 = vunpack.c.l.b16 %v1146
      %v1219 = vunpack.c.h.b16 %v1146
      %v1220 = vunpack.c.l.b16 %v1147
      %v1221 = vunpack.c.h.b16 %v1147
      %v1222 = vunpack.c.l.b16 %v1148
      %v1223 = vunpack.c.h.b16 %v1148
      %v1224 = vunpack.c.l.b16 %v1149
      %v1225 = vunpack.c.h.b16 %v1149
      %v1226 = vunpack.c.l.b16 %v1150
      %v1227 = vunpack.c.h.b16 %v1150
      %v1228 = vunpack.c.l.b16 %v1151
      %v1229 = vunpack.c.h.b16 %v1151
      %v1230 = vunpack.c.l.b16 %v1152
      %v1231 = vunpack.c.h.b16 %v1152
      %v1232 = vunpack.c.l.b16 %v1153
      %v1233 = vunpack.c.h.b16 %v1153
      %v1234 = vunpack.c.l.b16 %v1154
      %v1235 = vunpack.c.h.b16 %v1154
      %v1236 = vunpack.c.l.b16 %v1155
      %v1237 = vunpack.c.h.b16 %v1155
      %v1238 = vunpack.c.l.b16 %v1156
      %v1239 = vunpack.c.h.b16 %v1156
      %v1240 = vunpack.c.l.b16 %v1157
      %v1241 = vunpack.c.h.b16 %v1157
      %v1242 = vunpack.c.l.b16 %v1158
      %v1243 = vunpack.c.h.b16 %v1158
      %v1244 = vunpack.c.l.b16 %v1159
      %v1245 = vunpack.c.h.b16 %v1159
      %v1246 = vunpack.c.l.b16 %v1160
      %v1247 = vunpack.c.h.b16 %v1160
      %v1248 = vunpack.c.l.b16 %v1161
      %v1249 = vunpack.c.h.b16 %v1161
      %v1250 = vunpack.c.l.b16 %v1162
      %v1251 = vunpack.c.h.b16 %v1162
      %v1252 = vunpack.c.l.b16 %v1163
      %v1253 = vunpack.c.h.b16 %v1163
      %v1254 = vunpack.c.l.b16 %v1164
      %v1255 = vunpack.c.h.b16 %v1164
      %v1256 = vunpack.c.l.b16 %v1165
      %v1257 = vunpack.c.h.b16 %v1165
      %v1258 = vunpack.c.l.b16 %v1166
      %v1259 = vunpack.c.h.b16 %v1166
      %v1260 = vunpack.c.l.b16 %v1167
      %v1261 = vunpack.c.h.b16 %v1167
      %v1262 = vunpack.c.l.b16 %v1168
      %v1263 = vunpack.c.h.b16 %v1168
      %v1264 = vunpack.c.l.b16 %v1169
      %v1265 = vunpack.c.h.b16 %v1169
      %v1266 = vpack.c.b16 %v1206, %v1202
      %v1267 = vpack.c.b16 %v1207, %v1203
      %v1268 = vpack.c.b16 %v1208, %v1204
      %v1269 = vpack.c.b16 %v1209, %v1205
      %v1270 = vpack.c.b16 %v1214, %v1210
      %v1271 = vpack.c.b16 %v1215, %v1211
      %v1272 = vpack.c.b16 %v1216, %v1212
      %v1273 = vpack.c.b16 %v1217, %v1213
      %v1274 = vpack.c.b16 %v1222, %v1218
      %v1275 = vpack.c.b16 %v1223, %v1219
      %v1276 = vpack.c.b16 %v1224, %v1220
      %v1277 = vpack.c.b16 %v1225, %v1221
      %v1278 = vpack.c.b16 %v1230, %v1226
      %v1279 = vpack.c.b16 %v1231, %v1227
      %v1280 = vpack.c.b16 %v1232, %v1228
      %v1281 = vpack.c.b16 %v1233, %v1229
      %v1282 = vpack.c.b16 %v1238, %v1234
      %v1283 = vpack.c.b16 %v1239, %v1235
      %v1284 = vpack.c.b16 %v1240, %v1236
      %v1285 = vpack.c.b16 %v1241, %v1237
      %v1286 = vpack.c.b16 %v1246, %v1242
      %v1287 = vpack.c.b16 %v1247, %v1243
      %v1288 = vpack.c.b16 %v1248, %v1244
      %v1289 = vpack.c.b16 %v1249, %v1245
      %v1290 = vpack.c.b16 %v1254, %v1250
      %v1291 = vpack.c.b16 %v1255, %v1251
      %v1292 = vpack.c.b16 %v1256, %v1252
      %v1293 = vpack.c.b16 %v1257, %v1253
      %v1294 = vpack.c.b16 %v1262, %v1258
      %v1295 = vpack.c.b16 %v1263, %v1259
      %v1296 = vpack.c.b16 %v1264, %v1260
      %v1297 = vpack.c.b16 %v1265, %v1261
      %1330 = vmatprep.subr.bf16.mxu0 %v1267
      %1331 = vmatpush1.bf16.msra.mxu0 %v1266
      %1332 = vmatprep.subr.bf16.mxu0 %v1271
      %1333 = vmatpush1.bf16.msra.mxu0 %v1270
      %1334 = vmatprep.subr.bf16.mxu0 %v1275
      %1335 = vmatpush1.bf16.msra.mxu0 %v1274
      %1336 = vmatprep.subr.bf16.mxu0 %v1279
      %1337 = vmatpush1.bf16.msra.mxu0 %v1278
      %1338 = vmatprep.subr.bf16.mxu0 %v1283
      %1339 = vmatpush1.bf16.msra.mxu0 %v1282
      %1340 = vmatprep.subr.bf16.mxu0 %v1287
      %1341 = vmatpush1.bf16.msra.mxu0 %v1286
      %1342 = vmatprep.subr.bf16.mxu0 %v1291
      %1343 = vmatpush1.bf16.msra.mxu0 %v1290
      %1344 = vmatprep.subr.bf16.mxu0 %v1295
      %1345 = vmatpush1.bf16.msra.mxu0 %v1294
      %1346 = vmatprep.subr.bf16.mxu0 0
      %1347 = vmatpush1.bf16.msra.mxu0 0
      %1348 = vmatprep.subr.bf16.mxu0 0
      %1349 = vmatpush1.bf16.msra.mxu0 0
      %1350 = vmatprep.subr.bf16.mxu0 0
      %1351 = vmatpush1.bf16.msra.mxu0 0
      %1352 = vmatprep.subr.bf16.mxu0 0
      %1353 = vmatpush1.bf16.msra.mxu0 0
      %1354 = vmatprep.subr.bf16.mxu0 0
      %1355 = vmatpush1.bf16.msra.mxu0 0
      %1356 = vmatprep.subr.bf16.mxu0 0
      %1357 = vmatpush1.bf16.msra.mxu0 0
      %1358 = vmatprep.subr.bf16.mxu0 0
      %1359 = vmatpush1.bf16.msra.mxu0 0
      %1360 = vmatprep.subr.bf16.mxu0 0
      %1361 = vmatpush1.bf16.msra.mxu0 0
      %1362 = vmatprep.mubr.bf16.mxu0 0
      %1363 = vmatmul.mubr.bf16.gmra.mrb[0].mxu0 %v1137
      %v1364 = vpop.f32.mrb[0].mxu0
      %v1365 = vadd.f32 0.0, %v1364
      %v1366 = vpop.f32.mrb[0].mxu0
      %v1367 = vadd.f32 0.0, %v1366
      %v1368 = vpop.f32.mrb[0].mxu0
      %v1369 = vpop.f32.mrb[0].mxu0
      %1370 = vdwg.mxu0
      %1371 = vmatprep.subr.bf16.mxu0 %v1269
      %1372 = vmatpush1.bf16.msra.mxu0 %v1268
      %1373 = vmatprep.subr.bf16.mxu0 %v1273
      %1374 = vmatpush1.bf16.msra.mxu0 %v1272
      %1375 = vmatprep.subr.bf16.mxu0 %v1277
      %1376 = vmatpush1.bf16.msra.mxu0 %v1276
      %1377 = vmatprep.subr.bf16.mxu0 %v1281
      %1378 = vmatpush1.bf16.msra.mxu0 %v1280
      %1379 = vmatprep.subr.bf16.mxu0 %v1285
      %1380 = vmatpush1.bf16.msra.mxu0 %v1284
      %1381 = vmatprep.subr.bf16.mxu0 %v1289
      %1382 = vmatpush1.bf16.msra.mxu0 %v1288
      %1383 = vmatprep.subr.bf16.mxu0 %v1293
      %1384 = vmatpush1.bf16.msra.mxu0 %v1292
      %1385 = vmatprep.subr.bf16.mxu0 %v1297
      %1386 = vmatpush1.bf16.msra.mxu0 %v1296
      %1387 = vmatprep.subr.bf16.mxu0 0
      %1388 = vmatpush1.bf16.msra.mxu0 0
      %1389 = vmatprep.subr.bf16.mxu0 0
      %1390 = vmatpush1.bf16.msra.mxu0 0
      %1391 = vmatprep.subr.bf16.mxu0 0
      %1392 = vmatpush1.bf16.msra.mxu0 0
      %1393 = vmatprep.subr.bf16.mxu0 0
      %1394 = vmatpush1.bf16.msra.mxu0 0
      %1395 = vmatprep.subr.bf16.mxu0 0
      %1396 = vmatpush1.bf16.msra.mxu0 0
      %1397 = vmatprep.subr.bf16.mxu0 0
      %1398 = vmatpush1.bf16.msra.mxu0 0
      %1399 = vmatprep.subr.bf16.mxu0 0
      %1400 = vmatpush1.bf16.msra.mxu0 0
      %1401 = vmatprep.subr.bf16.mxu0 0
      %1402 = vmatpush1.bf16.msra.mxu0 0
      %1403 = vmatprep.mubr.bf16.mxu0 0
      %1404 = vmatmul.mubr.bf16.gmra.mrb[0].mxu0 %v1137
      %v1405 = vpop.f32.mrb[0].mxu0
      %v1406 = vadd.f32 0.0, %v1405
      %v1407 = vpop.f32.mrb[0].mxu0
      %v1408 = vadd.f32 0.0, %v1407
      %v1409 = vpop.f32.mrb[0].mxu0
      %v1410 = vpop.f32.mrb[0].mxu0
      %1411 = vdwg.mxu0
      %v1412 = vadd.f32 %v1133, %v1365
      %v1413 = vadd.f32 %v1134, %v1367
      %v1414 = vadd.f32 %v1135, %v1406
      %v1415 = vadd.f32 %v1136, %v1408
      %v1416 = vmul.f32 %v1412, 0.5
      %v1417 = vtanh.pop %v1416
      %v1418 = vmul.f32 %v1417, 0.5
      %v1419 = vadd.f32 %v1418, 0.5
      %v1420 = vmul.f32 %v1413, 0.5
      %v1421 = vtanh.pop %v1420
      %v1422 = vmul.f32 %v1421, 0.5
      %v1423 = vadd.f32 %v1422, 0.5
      %v1424 = vtanh.pop %v1414
      %v1425 = vmul.f32 %v1415, 0.5
      %v1426 = vtanh.pop %v1425
      %v1427 = vmul.f32 %v1426, 0.5
      %v1428 = vadd.f32 %v1427, 0.5
      %v1429 = vmul.f32 %v1423, %v1128
      %v1430 = vmul.f32 %v1419, %v1424
      %v1431 = vadd.f32 %v1429, %v1430
      %v1432 = vtanh.pop %v1431
      %v1433 = vmul.f32 %v1428, %v1432
      %s1434 = scalar_lea.vmem %s385, 8
      %1435 = vst [vmem:[%s1434] sm:$0xff] %v1433
      %s1436 = scalar_lea.vmem [#allocation2], 64
      %v1437 = vld [vmem:[%s1436] sm:$0xff]
      %v1438 = vld [vmem:[%s1436 + $0x8] sm:$0xff]
      %v1439 = vld [vmem:[%s1436 + $0x10] sm:$0xff]
      %v1440 = vld [vmem:[%s1436 + $0x18] sm:$0xff]
      %v1441 = vpack.c.bf16 %v1433, %v1433
      %v1442 = vld [vmem:[%s2] sm:$0xff]
      %v1443 = vld [vmem:[%s2 + $0x8] sm:$0xff]
      %v1444 = vld [vmem:[%s2 + $0x10] sm:$0xff]
      %v1445 = vld [vmem:[%s2 + $0x18] sm:$0xff]
      %v1446 = vld [vmem:[%s2 + $0x20] sm:$0xff]
      %v1447 = vld [vmem:[%s2 + $0x28] sm:$0xff]
      %v1448 = vld [vmem:[%s2 + $0x30] sm:$0xff]
      %v1449 = vld [vmem:[%s2 + $0x38] sm:$0xff]
      %v1450 = vld [vmem:[%s2 + $0x40] sm:$0xff]
      %v1451 = vld [vmem:[%s2 + $0x48] sm:$0xff]
      %v1452 = vld [vmem:[%s2 + $0x50] sm:$0xff]
      %v1453 = vld [vmem:[%s2 + $0x58] sm:$0xff]
      %v1454 = vld [vmem:[%s2 + $0x60] sm:$0xff]
      %v1455 = vld [vmem:[%s2 + $0x68] sm:$0xff]
      %v1456 = vld [vmem:[%s2 + $0x70] sm:$0xff]
      %v1457 = vld [vmem:[%s2 + $0x78] sm:$0xff]
      %v1458 = vld [vmem:[%s2 + $0x80] sm:$0xff]
      %v1459 = vld [vmem:[%s2 + $0x88] sm:$0xff]
      %v1460 = vld [vmem:[%s2 + $0x90] sm:$0xff]
      %v1461 = vld [vmem:[%s2 + $0x98] sm:$0xff]
      %v1462 = vld [vmem:[%s2 + $0xa0] sm:$0xff]
      %v1463 = vld [vmem:[%s2 + $0xa8] sm:$0xff]
      %v1464 = vld [vmem:[%s2 + $0xb0] sm:$0xff]
      %v1465 = vld [vmem:[%s2 + $0xb8] sm:$0xff]
      %v1466 = vld [vmem:[%s2 + $0xc0] sm:$0xff]
      %v1467 = vld [vmem:[%s2 + $0xc8] sm:$0xff]
      %v1468 = vld [vmem:[%s2 + $0xd0] sm:$0xff]
      %v1469 = vld [vmem:[%s2 + $0xd8] sm:$0xff]
      %v1470 = vld [vmem:[%s2 + $0xe0] sm:$0xff]
      %v1471 = vld [vmem:[%s2 + $0xe8] sm:$0xff]
      %v1472 = vld [vmem:[%s2 + $0xf0] sm:$0xff]
      %v1473 = vld [vmem:[%s2 + $0xf8] sm:$0xff]
      %v1506 = vunpack.c.l.b16 %v1442
      %v1507 = vunpack.c.h.b16 %v1442
      %v1508 = vunpack.c.l.b16 %v1443
      %v1509 = vunpack.c.h.b16 %v1443
      %v1510 = vunpack.c.l.b16 %v1444
      %v1511 = vunpack.c.h.b16 %v1444
      %v1512 = vunpack.c.l.b16 %v1445
      %v1513 = vunpack.c.h.b16 %v1445
      %v1514 = vunpack.c.l.b16 %v1446
      %v1515 = vunpack.c.h.b16 %v1446
      %v1516 = vunpack.c.l.b16 %v1447
      %v1517 = vunpack.c.h.b16 %v1447
      %v1518 = vunpack.c.l.b16 %v1448
      %v1519 = vunpack.c.h.b16 %v1448
      %v1520 = vunpack.c.l.b16 %v1449
      %v1521 = vunpack.c.h.b16 %v1449
      %v1522 = vunpack.c.l.b16 %v1450
      %v1523 = vunpack.c.h.b16 %v1450
      %v1524 = vunpack.c.l.b16 %v1451
      %v1525 = vunpack.c.h.b16 %v1451
      %v1526 = vunpack.c.l.b16 %v1452
      %v1527 = vunpack.c.h.b16 %v1452
      %v1528 = vunpack.c.l.b16 %v1453
      %v1529 = vunpack.c.h.b16 %v1453
      %v1530 = vunpack.c.l.b16 %v1454
      %v1531 = vunpack.c.h.b16 %v1454
      %v1532 = vunpack.c.l.b16 %v1455
      %v1533 = vunpack.c.h.b16 %v1455
      %v1534 = vunpack.c.l.b16 %v1456
      %v1535 = vunpack.c.h.b16 %v1456
      %v1536 = vunpack.c.l.b16 %v1457
      %v1537 = vunpack.c.h.b16 %v1457
      %v1538 = vunpack.c.l.b16 %v1458
      %v1539 = vunpack.c.h.b16 %v1458
      %v1540 = vunpack.c.l.b16 %v1459
      %v1541 = vunpack.c.h.b16 %v1459
      %v1542 = vunpack.c.l.b16 %v1460
      %v1543 = vunpack.c.h.b16 %v1460
      %v1544 = vunpack.c.l.b16 %v1461
      %v1545 = vunpack.c.h.b16 %v1461
      %v1546 = vunpack.c.l.b16 %v1462
      %v1547 = vunpack.c.h.b16 %v1462
      %v1548 = vunpack.c.l.b16 %v1463
      %v1549 = vunpack.c.h.b16 %v1463
      %v1550 = vunpack.c.l.b16 %v1464
      %v1551 = vunpack.c.h.b16 %v1464
      %v1552 = vunpack.c.l.b16 %v1465
      %v1553 = vunpack.c.h.b16 %v1465
      %v1554 = vunpack.c.l.b16 %v1466
      %v1555 = vunpack.c.h.b16 %v1466
      %v1556 = vunpack.c.l.b16 %v1467
      %v1557 = vunpack.c.h.b16 %v1467
      %v1558 = vunpack.c.l.b16 %v1468
      %v1559 = vunpack.c.h.b16 %v1468
      %v1560 = vunpack.c.l.b16 %v1469
      %v1561 = vunpack.c.h.b16 %v1469
      %v1562 = vunpack.c.l.b16 %v1470
      %v1563 = vunpack.c.h.b16 %v1470
      %v1564 = vunpack.c.l.b16 %v1471
      %v1565 = vunpack.c.h.b16 %v1471
      %v1566 = vunpack.c.l.b16 %v1472
      %v1567 = vunpack.c.h.b16 %v1472
      %v1568 = vunpack.c.l.b16 %v1473
      %v1569 = vunpack.c.h.b16 %v1473
      %v1570 = vpack.c.b16 %v1510, %v1506
      %v1571 = vpack.c.b16 %v1511, %v1507
      %v1572 = vpack.c.b16 %v1512, %v1508
      %v1573 = vpack.c.b16 %v1513, %v1509
      %v1574 = vpack.c.b16 %v1518, %v1514
      %v1575 = vpack.c.b16 %v1519, %v1515
      %v1576 = vpack.c.b16 %v1520, %v1516
      %v1577 = vpack.c.b16 %v1521, %v1517
      %v1578 = vpack.c.b16 %v1526, %v1522
      %v1579 = vpack.c.b16 %v1527, %v1523
      %v1580 = vpack.c.b16 %v1528, %v1524
      %v1581 = vpack.c.b16 %v1529, %v1525
      %v1582 = vpack.c.b16 %v1534, %v1530
      %v1583 = vpack.c.b16 %v1535, %v1531
      %v1584 = vpack.c.b16 %v1536, %v1532
      %v1585 = vpack.c.b16 %v1537, %v1533
      %v1586 = vpack.c.b16 %v1542, %v1538
      %v1587 = vpack.c.b16 %v1543, %v1539
      %v1588 = vpack.c.b16 %v1544, %v1540
      %v1589 = vpack.c.b16 %v1545, %v1541
      %v1590 = vpack.c.b16 %v1550, %v1546
      %v1591 = vpack.c.b16 %v1551, %v1547
      %v1592 = vpack.c.b16 %v1552, %v1548
      %v1593 = vpack.c.b16 %v1553, %v1549
      %v1594 = vpack.c.b16 %v1558, %v1554
      %v1595 = vpack.c.b16 %v1559, %v1555
      %v1596 = vpack.c.b16 %v1560, %v1556
      %v1597 = vpack.c.b16 %v1561, %v1557
      %v1598 = vpack.c.b16 %v1566, %v1562
      %v1599 = vpack.c.b16 %v1567, %v1563
      %v1600 = vpack.c.b16 %v1568, %v1564
      %v1601 = vpack.c.b16 %v1569, %v1565
      %1634 = vmatprep.subr.bf16.mxu0 %v1571
      %1635 = vmatpush1.bf16.msra.mxu0 %v1570
      %1636 = vmatprep.subr.bf16.mxu0 %v1575
      %1637 = vmatpush1.bf16.msra.mxu0 %v1574
      %1638 = vmatprep.subr.bf16.mxu0 %v1579
      %1639 = vmatpush1.bf16.msra.mxu0 %v1578
      %1640 = vmatprep.subr.bf16.mxu0 %v1583
      %1641 = vmatpush1.bf16.msra.mxu0 %v1582
      %1642 = vmatprep.subr.bf16.mxu0 %v1587
      %1643 = vmatpush1.bf16.msra.mxu0 %v1586
      %1644 = vmatprep.subr.bf16.mxu0 %v1591
      %1645 = vmatpush1.bf16.msra.mxu0 %v1590
      %1646 = vmatprep.subr.bf16.mxu0 %v1595
      %1647 = vmatpush1.bf16.msra.mxu0 %v1594
      %1648 = vmatprep.subr.bf16.mxu0 %v1599
      %1649 = vmatpush1.bf16.msra.mxu0 %v1598
      %1650 = vmatprep.subr.bf16.mxu0 0
      %1651 = vmatpush1.bf16.msra.mxu0 0
      %1652 = vmatprep.subr.bf16.mxu0 0
      %1653 = vmatpush1.bf16.msra.mxu0 0
      %1654 = vmatprep.subr.bf16.mxu0 0
      %1655 = vmatpush1.bf16.msra.mxu0 0
      %1656 = vmatprep.subr.bf16.mxu0 0
      %1657 = vmatpush1.bf16.msra.mxu0 0
      %1658 = vmatprep.subr.bf16.mxu0 0
      %1659 = vmatpush1.bf16.msra.mxu0 0
      %1660 = vmatprep.subr.bf16.mxu0 0
      %1661 = vmatpush1.bf16.msra.mxu0 0
      %1662 = vmatprep.subr.bf16.mxu0 0
      %1663 = vmatpush1.bf16.msra.mxu0 0
      %1664 = vmatprep.subr.bf16.mxu0 0
      %1665 = vmatpush1.bf16.msra.mxu0 0
      %1666 = vmatprep.mubr.bf16.mxu0 0
      %1667 = vmatmul.mubr.bf16.gmra.mrb[0].mxu0 %v1441
      %v1668 = vpop.f32.mrb[0].mxu0
      %v1669 = vadd.f32 0.0, %v1668
      %v1670 = vpop.f32.mrb[0].mxu0
      %v1671 = vadd.f32 0.0, %v1670
      %v1672 = vpop.f32.mrb[0].mxu0
      %v1673 = vpop.f32.mrb[0].mxu0
      %1674 = vdwg.mxu0
      %1675 = vmatprep.subr.bf16.mxu0 %v1573
      %1676 = vmatpush1.bf16.msra.mxu0 %v1572
      %1677 = vmatprep.subr.bf16.mxu0 %v1577
      %1678 = vmatpush1.bf16.msra.mxu0 %v1576
      %1679 = vmatprep.subr.bf16.mxu0 %v1581
      %1680 = vmatpush1.bf16.msra.mxu0 %v1580
      %1681 = vmatprep.subr.bf16.mxu0 %v1585
      %1682 = vmatpush1.bf16.msra.mxu0 %v1584
      %1683 = vmatprep.subr.bf16.mxu0 %v1589
      %1684 = vmatpush1.bf16.msra.mxu0 %v1588
      %1685 = vmatprep.subr.bf16.mxu0 %v1593
      %1686 = vmatpush1.bf16.msra.mxu0 %v1592
      %1687 = vmatprep.subr.bf16.mxu0 %v1597
      %1688 = vmatpush1.bf16.msra.mxu0 %v1596
      %1689 = vmatprep.subr.bf16.mxu0 %v1601
      %1690 = vmatpush1.bf16.msra.mxu0 %v1600
      %1691 = vmatprep.subr.bf16.mxu0 0
      %1692 = vmatpush1.bf16.msra.mxu0 0
      %1693 = vmatprep.subr.bf16.mxu0 0
      %1694 = vmatpush1.bf16.msra.mxu0 0
      %1695 = vmatprep.subr.bf16.mxu0 0
      %1696 = vmatpush1.bf16.msra.mxu0 0
      %1697 = vmatprep.subr.bf16.mxu0 0
      %1698 = vmatpush1.bf16.msra.mxu0 0
      %1699 = vmatprep.subr.bf16.mxu0 0
      %1700 = vmatpush1.bf16.msra.mxu0 0
      %1701 = vmatprep.subr.bf16.mxu0 0
      %1702 = vmatpush1.bf16.msra.mxu0 0
      %1703 = vmatprep.subr.bf16.mxu0 0
      %1704 = vmatpush1.bf16.msra.mxu0 0
      %1705 = vmatprep.subr.bf16.mxu0 0
      %1706 = vmatpush1.bf16.msra.mxu0 0
      %1707 = vmatprep.mubr.bf16.mxu0 0
      %1708 = vmatmul.mubr.bf16.gmra.mrb[0].mxu0 %v1441
      %v1709 = vpop.f32.mrb[0].mxu0
      %v1710 = vadd.f32 0.0, %v1709
      %v1711 = vpop.f32.mrb[0].mxu0
      %v1712 = vadd.f32 0.0, %v1711
      %v1713 = vpop.f32.mrb[0].mxu0
      %v1714 = vpop.f32.mrb[0].mxu0
      %1715 = vdwg.mxu0
      %v1716 = vadd.f32 %v1437, %v1669
      %v1717 = vadd.f32 %v1438, %v1671
      %v1718 = vadd.f32 %v1439, %v1710
      %v1719 = vadd.f32 %v1440, %v1712
      %v1720 = vmul.f32 %v1716, 0.5
      %v1721 = vtanh.pop %v1720
      %v1722 = vmul.f32 %v1721, 0.5
      %v1723 = vadd.f32 %v1722, 0.5
      %v1724 = vmul.f32 %v1717, 0.5
      %v1725 = vtanh.pop %v1724
      %v1726 = vmul.f32 %v1725, 0.5
      %v1727 = vadd.f32 %v1726, 0.5
      %v1728 = vtanh.pop %v1718
      %v1729 = vmul.f32 %v1719, 0.5
      %v1730 = vtanh.pop %v1729
      %v1731 = vmul.f32 %v1730, 0.5
      %v1732 = vadd.f32 %v1731, 0.5
      %v1733 = vmul.f32 %v1727, %v1431
      %v1734 = vmul.f32 %v1723, %v1728
      %v1735 = vadd.f32 %v1733, %v1734
      %v1736 = vtanh.pop %v1735
      %v1737 = vmul.f32 %v1732, %v1736
      %s1738 = scalar_lea.vmem %s385, 16
      %1739 = vst [vmem:[%s1738] sm:$0xff] %v1737
      %s1740 = scalar_lea.vmem [#allocation2], 96
      %v1741 = vld [vmem:[%s1740] sm:$0xff]
      %v1742 = vld [vmem:[%s1740 + $0x8] sm:$0xff]
      %v1743 = vld [vmem:[%s1740 + $0x10] sm:$0xff]
      %v1744 = vld [vmem:[%s1740 + $0x18] sm:$0xff]
      %v1745 = vpack.c.bf16 %v1737, %v1737
      %v1746 = vld [vmem:[%s2] sm:$0xff]
      %v1747 = vld [vmem:[%s2 + $0x8] sm:$0xff]
      %v1748 = vld [vmem:[%s2 + $0x10] sm:$0xff]
      %v1749 = vld [vmem:[%s2 + $0x18] sm:$0xff]
      %v1750 = vld [vmem:[%s2 + $0x20] sm:$0xff]
      %v1751 = vld [vmem:[%s2 + $0x28] sm:$0xff]
      %v1752 = vld [vmem:[%s2 + $0x30] sm:$0xff]
      %v1753 = vld [vmem:[%s2 + $0x38] sm:$0xff]
      %v1754 = vld [vmem:[%s2 + $0x40] sm:$0xff]
      %v1755 = vld [vmem:[%s2 + $0x48] sm:$0xff]
      %v1756 = vld [vmem:[%s2 + $0x50] sm:$0xff]
      %v1757 = vld [vmem:[%s2 + $0x58] sm:$0xff]
      %v1758 = vld [vmem:[%s2 + $0x60] sm:$0xff]
      %v1759 = vld [vmem:[%s2 + $0x68] sm:$0xff]
      %v1760 = vld [vmem:[%s2 + $0x70] sm:$0xff]
      %v1761 = vld [vmem:[%s2 + $0x78] sm:$0xff]
      %v1762 = vld [vmem:[%s2 + $0x80] sm:$0xff]
      %v1763 = vld [vmem:[%s2 + $0x88] sm:$0xff]
      %v1764 = vld [vmem:[%s2 + $0x90] sm:$0xff]
      %v1765 = vld [vmem:[%s2 + $0x98] sm:$0xff]
      %v1766 = vld [vmem:[%s2 + $0xa0] sm:$0xff]
      %v1767 = vld [vmem:[%s2 + $0xa8] sm:$0xff]
      %v1768 = vld [vmem:[%s2 + $0xb0] sm:$0xff]
      %v1769 = vld [vmem:[%s2 + $0xb8] sm:$0xff]
      %v1770 = vld [vmem:[%s2 + $0xc0] sm:$0xff]
      %v1771 = vld [vmem:[%s2 + $0xc8] sm:$0xff]
      %v1772 = vld [vmem:[%s2 + $0xd0] sm:$0xff]
      %v1773 = vld [vmem:[%s2 + $0xd8] sm:$0xff]
      %v1774 = vld [vmem:[%s2 + $0xe0] sm:$0xff]
      %v1775 = vld [vmem:[%s2 + $0xe8] sm:$0xff]
      %v1776 = vld [vmem:[%s2 + $0xf0] sm:$0xff]
      %v1777 = vld [vmem:[%s2 + $0xf8] sm:$0xff]
      %v1810 = vunpack.c.l.b16 %v1746
      %v1811 = vunpack.c.h.b16 %v1746
      %v1812 = vunpack.c.l.b16 %v1747
      %v1813 = vunpack.c.h.b16 %v1747
      %v1814 = vunpack.c.l.b16 %v1748
      %v1815 = vunpack.c.h.b16 %v1748
      %v1816 = vunpack.c.l.b16 %v1749
      %v1817 = vunpack.c.h.b16 %v1749
      %v1818 = vunpack.c.l.b16 %v1750
      %v1819 = vunpack.c.h.b16 %v1750
      %v1820 = vunpack.c.l.b16 %v1751
      %v1821 = vunpack.c.h.b16 %v1751
      %v1822 = vunpack.c.l.b16 %v1752
      %v1823 = vunpack.c.h.b16 %v1752
      %v1824 = vunpack.c.l.b16 %v1753
      %v1825 = vunpack.c.h.b16 %v1753
      %v1826 = vunpack.c.l.b16 %v1754
      %v1827 = vunpack.c.h.b16 %v1754
      %v1828 = vunpack.c.l.b16 %v1755
      %v1829 = vunpack.c.h.b16 %v1755
      %v1830 = vunpack.c.l.b16 %v1756
      %v1831 = vunpack.c.h.b16 %v1756
      %v1832 = vunpack.c.l.b16 %v1757
      %v1833 = vunpack.c.h.b16 %v1757
      %v1834 = vunpack.c.l.b16 %v1758
      %v1835 = vunpack.c.h.b16 %v1758
      %v1836 = vunpack.c.l.b16 %v1759
      %v1837 = vunpack.c.h.b16 %v1759
      %v1838 = vunpack.c.l.b16 %v1760
      %v1839 = vunpack.c.h.b16 %v1760
      %v1840 = vunpack.c.l.b16 %v1761
      %v1841 = vunpack.c.h.b16 %v1761
      %v1842 = vunpack.c.l.b16 %v1762
      %v1843 = vunpack.c.h.b16 %v1762
      %v1844 = vunpack.c.l.b16 %v1763
      %v1845 = vunpack.c.h.b16 %v1763
      %v1846 = vunpack.c.l.b16 %v1764
      %v1847 = vunpack.c.h.b16 %v1764
      %v1848 = vunpack.c.l.b16 %v1765
      %v1849 = vunpack.c.h.b16 %v1765
      %v1850 = vunpack.c.l.b16 %v1766
      %v1851 = vunpack.c.h.b16 %v1766
      %v1852 = vunpack.c.l.b16 %v1767
      %v1853 = vunpack.c.h.b16 %v1767
      %v1854 = vunpack.c.l.b16 %v1768
      %v1855 = vunpack.c.h.b16 %v1768
      %v1856 = vunpack.c.l.b16 %v1769
      %v1857 = vunpack.c.h.b16 %v1769
      %v1858 = vunpack.c.l.b16 %v1770
      %v1859 = vunpack.c.h.b16 %v1770
      %v1860 = vunpack.c.l.b16 %v1771
      %v1861 = vunpack.c.h.b16 %v1771
      %v1862 = vunpack.c.l.b16 %v1772
      %v1863 = vunpack.c.h.b16 %v1772
      %v1864 = vunpack.c.l.b16 %v1773
      %v1865 = vunpack.c.h.b16 %v1773
      %v1866 = vunpack.c.l.b16 %v1774
      %v1867 = vunpack.c.h.b16 %v1774
      %v1868 = vunpack.c.l.b16 %v1775
      %v1869 = vunpack.c.h.b16 %v1775
      %v1870 = vunpack.c.l.b16 %v1776
      %v1871 = vunpack.c.h.b16 %v1776
      %v1872 = vunpack.c.l.b16 %v1777
      %v1873 = vunpack.c.h.b16 %v1777
      %v1874 = vpack.c.b16 %v1814, %v1810
      %v1875 = vpack.c.b16 %v1815, %v1811
      %v1876 = vpack.c.b16 %v1816, %v1812
      %v1877 = vpack.c.b16 %v1817, %v1813
      %v1878 = vpack.c.b16 %v1822, %v1818
      %v1879 = vpack.c.b16 %v1823, %v1819
      %v1880 = vpack.c.b16 %v1824, %v1820
      %v1881 = vpack.c.b16 %v1825, %v1821
      %v1882 = vpack.c.b16 %v1830, %v1826
      %v1883 = vpack.c.b16 %v1831, %v1827
      %v1884 = vpack.c.b16 %v1832, %v1828
      %v1885 = vpack.c.b16 %v1833, %v1829
      %v1886 = vpack.c.b16 %v1838, %v1834
      %v1887 = vpack.c.b16 %v1839, %v1835
      %v1888 = vpack.c.b16 %v1840, %v1836
      %v1889 = vpack.c.b16 %v1841, %v1837
      %v1890 = vpack.c.b16 %v1846, %v1842
      %v1891 = vpack.c.b16 %v1847, %v1843
      %v1892 = vpack.c.b16 %v1848, %v1844
      %v1893 = vpack.c.b16 %v1849, %v1845
      %v1894 = vpack.c.b16 %v1854, %v1850
      %v1895 = vpack.c.b16 %v1855, %v1851
      %v1896 = vpack.c.b16 %v1856, %v1852
      %v1897 = vpack.c.b16 %v1857, %v1853
      %v1898 = vpack.c.b16 %v1862, %v1858
      %v1899 = vpack.c.b16 %v1863, %v1859
      %v1900 = vpack.c.b16 %v1864, %v1860
      %v1901 = vpack.c.b16 %v1865, %v1861
      %v1902 = vpack.c.b16 %v1870, %v1866
      %v1903 = vpack.c.b16 %v1871, %v1867
      %v1904 = vpack.c.b16 %v1872, %v1868
      %v1905 = vpack.c.b16 %v1873, %v1869
      %1938 = vmatprep.subr.bf16.mxu0 %v1875
      %1939 = vmatpush1.bf16.msra.mxu0 %v1874
      %1940 = vmatprep.subr.bf16.mxu0 %v1879
      %1941 = vmatpush1.bf16.msra.mxu0 %v1878
      %1942 = vmatprep.subr.bf16.mxu0 %v1883
      %1943 = vmatpush1.bf16.msra.mxu0 %v1882
      %1944 = vmatprep.subr.bf16.mxu0 %v1887
      %1945 = vmatpush1.bf16.msra.mxu0 %v1886
      %1946 = vmatprep.subr.bf16.mxu0 %v1891
      %1947 = vmatpush1.bf16.msra.mxu0 %v1890
      %1948 = vmatprep.subr.bf16.mxu0 %v1895
      %1949 = vmatpush1.bf16.msra.mxu0 %v1894
      %1950 = vmatprep.subr.bf16.mxu0 %v1899
      %1951 = vmatpush1.bf16.msra.mxu0 %v1898
      %1952 = vmatprep.subr.bf16.mxu0 %v1903
      %1953 = vmatpush1.bf16.msra.mxu0 %v1902
      %1954 = vmatprep.subr.bf16.mxu0 0
      %1955 = vmatpush1.bf16.msra.mxu0 0
      %1956 = vmatprep.subr.bf16.mxu0 0
      %1957 = vmatpush1.bf16.msra.mxu0 0
      %1958 = vmatprep.subr.bf16.mxu0 0
      %1959 = vmatpush1.bf16.msra.mxu0 0
      %1960 = vmatprep.subr.bf16.mxu0 0
      %1961 = vmatpush1.bf16.msra.mxu0 0
      %1962 = vmatprep.subr.bf16.mxu0 0
      %1963 = vmatpush1.bf16.msra.mxu0 0
      %1964 = vmatprep.subr.bf16.mxu0 0
      %1965 = vmatpush1.bf16.msra.mxu0 0
      %1966 = vmatprep.subr.bf16.mxu0 0
      %1967 = vmatpush1.bf16.msra.mxu0 0
      %1968 = vmatprep.subr.bf16.mxu0 0
      %1969 = vmatpush1.bf16.msra.mxu0 0
      %1970 = vmatprep.mubr.bf16.mxu0 0
      %1971 = vmatmul.mubr.bf16.gmra.mrb[0].mxu0 %v1745
      %v1972 = vpop.f32.mrb[0].mxu0
      %v1973 = vadd.f32 0.0, %v1972
      %v1974 = vpop.f32.mrb[0].mxu0
      %v1975 = vadd.f32 0.0, %v1974
      %v1976 = vpop.f32.mrb[0].mxu0
      %v1977 = vpop.f32.mrb[0].mxu0
      %1978 = vdwg.mxu0
      %1979 = vmatprep.subr.bf16.mxu0 %v1877
      %1980 = vmatpush1.bf16.msra.mxu0 %v1876
      %1981 = vmatprep.subr.bf16.mxu0 %v1881
      %1982 = vmatpush1.bf16.msra.mxu0 %v1880
      %1983 = vmatprep.subr.bf16.mxu0 %v1885
      %1984 = vmatpush1.bf16.msra.mxu0 %v1884
      %1985 = vmatprep.subr.bf16.mxu0 %v1889
      %1986 = vmatpush1.bf16.msra.mxu0 %v1888
      %1987 = vmatprep.subr.bf16.mxu0 %v1893
      %1988 = vmatpush1.bf16.msra.mxu0 %v1892
      %1989 = vmatprep.subr.bf16.mxu0 %v1897
      %1990 = vmatpush1.bf16.msra.mxu0 %v1896
      %1991 = vmatprep.subr.bf16.mxu0 %v1901
      %1992 = vmatpush1.bf16.msra.mxu0 %v1900
      %1993 = vmatprep.subr.bf16.mxu0 %v1905
      %1994 = vmatpush1.bf16.msra.mxu0 %v1904
      %1995 = vmatprep.subr.bf16.mxu0 0
      %1996 = vmatpush1.bf16.msra.mxu0 0
      %1997 = vmatprep.subr.bf16.mxu0 0
      %1998 = vmatpush1.bf16.msra.mxu0 0
      %1999 = vmatprep.subr.bf16.mxu0 0
      %2000 = vmatpush1.bf16.msra.mxu0 0
      %2001 = vmatprep.subr.bf16.mxu0 0
      %2002 = vmatpush1.bf16.msra.mxu0 0
      %2003 = vmatprep.subr.bf16.mxu0 0
      %2004 = vmatpush1.bf16.msra.mxu0 0
      %2005 = vmatprep.subr.bf16.mxu0 0
      %2006 = vmatpush1.bf16.msra.mxu0 0
      %2007 = vmatprep.subr.bf16.mxu0 0
      %2008 = vmatpush1.bf16.msra.mxu0 0
      %2009 = vmatprep.subr.bf16.mxu0 0
      %2010 = vmatpush1.bf16.msra.mxu0 0
      %2011 = vmatprep.mubr.bf16.mxu0 0
      %2012 = vmatmul.mubr.bf16.gmra.mrb[0].mxu0 %v1745
      %v2013 = vpop.f32.mrb[0].mxu0
      %v2014 = vadd.f32 0.0, %v2013
      %v2015 = vpop.f32.mrb[0].mxu0
      %v2016 = vadd.f32 0.0, %v2015
      %v2017 = vpop.f32.mrb[0].mxu0
      %v2018 = vpop.f32.mrb[0].mxu0
      %2019 = vdwg.mxu0
      %v2020 = vadd.f32 %v1741, %v1973
      %v2021 = vadd.f32 %v1742, %v1975
      %v2022 = vadd.f32 %v1743, %v2014
      %v2023 = vadd.f32 %v1744, %v2016
      %v2024 = vmul.f32 %v2020, 0.5
      %v2025 = vtanh.pop %v2024
      %v2026 = vmul.f32 %v2025, 0.5
      %v2027 = vadd.f32 %v2026, 0.5
      %v2028 = vmul.f32 %v2021, 0.5
      %v2029 = vtanh.pop %v2028
      %v2030 = vmul.f32 %v2029, 0.5
      %v2031 = vadd.f32 %v2030, 0.5
      %v2032 = vtanh.pop %v2022
      %v2033 = vmul.f32 %v2023, 0.5
      %v2034 = vtanh.pop %v2033
      %v2035 = vmul.f32 %v2034, 0.5
      %v2036 = vadd.f32 %v2035, 0.5
      %v2037 = vmul.f32 %v2031, %v1735
      %v2038 = vmul.f32 %v2027, %v2032
      %v2039 = vadd.f32 %v2037, %v2038
      %v2040 = vtanh.pop %v2039
      %v2041 = vmul.f32 %v2036, %v2040
      %s2042 = scalar_lea.vmem %s385, 24
      %2043 = vst [vmem:[%s2042] sm:$0xff] %v2041
      %s2044 = scalar_lea.vmem [#allocation2], 128
      %v2045 = vld [vmem:[%s2044] sm:$0xff]
      %v2046 = vld [vmem:[%s2044 + $0x8] sm:$0xff]
      %v2047 = vld [vmem:[%s2044 + $0x10] sm:$0xff]
      %v2048 = vld [vmem:[%s2044 + $0x18] sm:$0xff]
      %v2049 = vpack.c.bf16 %v2041, %v2041
      %v2050 = vld [vmem:[%s2] sm:$0xff]
      %v2051 = vld [vmem:[%s2 + $0x8] sm:$0xff]
      %v2052 = vld [vmem:[%s2 + $0x10] sm:$0xff]
      %v2053 = vld [vmem:[%s2 + $0x18] sm:$0xff]
      %v2054 = vld [vmem:[%s2 + $0x20] sm:$0xff]
      %v2055 = vld [vmem:[%s2 + $0x28] sm:$0xff]
      %v2056 = vld [vmem:[%s2 + $0x30] sm:$0xff]
      %v2057 = vld [vmem:[%s2 + $0x38] sm:$0xff]
      %v2058 = vld [vmem:[%s2 + $0x40] sm:$0xff]
      %v2059 = vld [vmem:[%s2 + $0x48] sm:$0xff]
      %v2060 = vld [vmem:[%s2 + $0x50] sm:$0xff]
      %v2061 = vld [vmem:[%s2 + $0x58] sm:$0xff]
      %v2062 = vld [vmem:[%s2 + $0x60] sm:$0xff]
      %v2063 = vld [vmem:[%s2 + $0x68] sm:$0xff]
      %v2064 = vld [vmem:[%s2 + $0x70] sm:$0xff]
      %v2065 = vld [vmem:[%s2 + $0x78] sm:$0xff]
      %v2066 = vld [vmem:[%s2 + $0x80] sm:$0xff]
      %v2067 = vld [vmem:[%s2 + $0x88] sm:$0xff]
      %v2068 = vld [vmem:[%s2 + $0x90] sm:$0xff]
      %v2069 = vld [vmem:[%s2 + $0x98] sm:$0xff]
      %v2070 = vld [vmem:[%s2 + $0xa0] sm:$0xff]
      %v2071 = vld [vmem:[%s2 + $0xa8] sm:$0xff]
      %v2072 = vld [vmem:[%s2 + $0xb0] sm:$0xff]
      %v2073 = vld [vmem:[%s2 + $0xb8] sm:$0xff]
      %v2074 = vld [vmem:[%s2 + $0xc0] sm:$0xff]
      %v2075 = vld [vmem:[%s2 + $0xc8] sm:$0xff]
      %v2076 = vld [vmem:[%s2 + $0xd0] sm:$0xff]
      %v2077 = vld [vmem:[%s2 + $0xd8] sm:$0xff]
      %v2078 = vld [vmem:[%s2 + $0xe0] sm:$0xff]
      %v2079 = vld [vmem:[%s2 + $0xe8] sm:$0xff]
      %v2080 = vld [vmem:[%s2 + $0xf0] sm:$0xff]
      %v2081 = vld [vmem:[%s2 + $0xf8] sm:$0xff]
      %v2114 = vunpack.c.l.b16 %v2050
      %v2115 = vunpack.c.h.b16 %v2050
      %v2116 = vunpack.c.l.b16 %v2051
      %v2117 = vunpack.c.h.b16 %v2051
      %v2118 = vunpack.c.l.b16 %v2052
      %v2119 = vunpack.c.h.b16 %v2052
      %v2120 = vunpack.c.l.b16 %v2053
      %v2121 = vunpack.c.h.b16 %v2053
      %v2122 = vunpack.c.l.b16 %v2054
      %v2123 = vunpack.c.h.b16 %v2054
      %v2124 = vunpack.c.l.b16 %v2055
      %v2125 = vunpack.c.h.b16 %v2055
      %v2126 = vunpack.c.l.b16 %v2056
      %v2127 = vunpack.c.h.b16 %v2056
      %v2128 = vunpack.c.l.b16 %v2057
      %v2129 = vunpack.c.h.b16 %v2057
      %v2130 = vunpack.c.l.b16 %v2058
      %v2131 = vunpack.c.h.b16 %v2058
      %v2132 = vunpack.c.l.b16 %v2059
      %v2133 = vunpack.c.h.b16 %v2059
      %v2134 = vunpack.c.l.b16 %v2060
      %v2135 = vunpack.c.h.b16 %v2060
      %v2136 = vunpack.c.l.b16 %v2061
      %v2137 = vunpack.c.h.b16 %v2061
      %v2138 = vunpack.c.l.b16 %v2062
      %v2139 = vunpack.c.h.b16 %v2062
      %v2140 = vunpack.c.l.b16 %v2063
      %v2141 = vunpack.c.h.b16 %v2063
      %v2142 = vunpack.c.l.b16 %v2064
      %v2143 = vunpack.c.h.b16 %v2064
      %v2144 = vunpack.c.l.b16 %v2065
      %v2145 = vunpack.c.h.b16 %v2065
      %v2146 = vunpack.c.l.b16 %v2066
      %v2147 = vunpack.c.h.b16 %v2066
      %v2148 = vunpack.c.l.b16 %v2067
      %v2149 = vunpack.c.h.b16 %v2067
      %v2150 = vunpack.c.l.b16 %v2068
      %v2151 = vunpack.c.h.b16 %v2068
      %v2152 = vunpack.c.l.b16 %v2069
      %v2153 = vunpack.c.h.b16 %v2069
      %v2154 = vunpack.c.l.b16 %v2070
      %v2155 = vunpack.c.h.b16 %v2070
      %v2156 = vunpack.c.l.b16 %v2071
      %v2157 = vunpack.c.h.b16 %v2071
      %v2158 = vunpack.c.l.b16 %v2072
      %v2159 = vunpack.c.h.b16 %v2072
      %v2160 = vunpack.c.l.b16 %v2073
      %v2161 = vunpack.c.h.b16 %v2073
      %v2162 = vunpack.c.l.b16 %v2074
      %v2163 = vunpack.c.h.b16 %v2074
      %v2164 = vunpack.c.l.b16 %v2075
      %v2165 = vunpack.c.h.b16 %v2075
      %v2166 = vunpack.c.l.b16 %v2076
      %v2167 = vunpack.c.h.b16 %v2076
      %v2168 = vunpack.c.l.b16 %v2077
      %v2169 = vunpack.c.h.b16 %v2077
      %v2170 = vunpack.c.l.b16 %v2078
      %v2171 = vunpack.c.h.b16 %v2078
      %v2172 = vunpack.c.l.b16 %v2079
      %v2173 = vunpack.c.h.b16 %v2079
      %v2174 = vunpack.c.l.b16 %v2080
      %v2175 = vunpack.c.h.b16 %v2080
      %v2176 = vunpack.c.l.b16 %v2081
      %v2177 = vunpack.c.h.b16 %v2081
      %v2178 = vpack.c.b16 %v2118, %v2114
      %v2179 = vpack.c.b16 %v2119, %v2115
      %v2180 = vpack.c.b16 %v2120, %v2116
      %v2181 = vpack.c.b16 %v2121, %v2117
      %v2182 = vpack.c.b16 %v2126, %v2122
      %v2183 = vpack.c.b16 %v2127, %v2123
      %v2184 = vpack.c.b16 %v2128, %v2124
      %v2185 = vpack.c.b16 %v2129, %v2125
      %v2186 = vpack.c.b16 %v2134, %v2130
      %v2187 = vpack.c.b16 %v2135, %v2131
      %v2188 = vpack.c.b16 %v2136, %v2132
      %v2189 = vpack.c.b16 %v2137, %v2133
      %v2190 = vpack.c.b16 %v2142, %v2138
      %v2191 = vpack.c.b16 %v2143, %v2139
      %v2192 = vpack.c.b16 %v2144, %v2140
      %v2193 = vpack.c.b16 %v2145, %v2141
      %v2194 = vpack.c.b16 %v2150, %v2146
      %v2195 = vpack.c.b16 %v2151, %v2147
      %v2196 = vpack.c.b16 %v2152, %v2148
      %v2197 = vpack.c.b16 %v2153, %v2149
      %v2198 = vpack.c.b16 %v2158, %v2154
      %v2199 = vpack.c.b16 %v2159, %v2155
      %v2200 = vpack.c.b16 %v2160, %v2156
      %v2201 = vpack.c.b16 %v2161, %v2157
      %v2202 = vpack.c.b16 %v2166, %v2162
      %v2203 = vpack.c.b16 %v2167, %v2163
      %v2204 = vpack.c.b16 %v2168, %v2164
      %v2205 = vpack.c.b16 %v2169, %v2165
      %v2206 = vpack.c.b16 %v2174, %v2170
      %v2207 = vpack.c.b16 %v2175, %v2171
      %v2208 = vpack.c.b16 %v2176, %v2172
      %v2209 = vpack.c.b16 %v2177, %v2173
      %2242 = vmatprep.subr.bf16.mxu0 %v2179
      %2243 = vmatpush1.bf16.msra.mxu0 %v2178
      %2244 = vmatprep.subr.bf16.mxu0 %v2183
      %2245 = vmatpush1.bf16.msra.mxu0 %v2182
      %2246 = vmatprep.subr.bf16.mxu0 %v2187
      %2247 = vmatpush1.bf16.msra.mxu0 %v2186
      %2248 = vmatprep.subr.bf16.mxu0 %v2191
      %2249 = vmatpush1.bf16.msra.mxu0 %v2190
      %2250 = vmatprep.subr.bf16.mxu0 %v2195
      %2251 = vmatpush1.bf16.msra.mxu0 %v2194
      %2252 = vmatprep.subr.bf16.mxu0 %v2199
      %2253 = vmatpush1.bf16.msra.mxu0 %v2198
      %2254 = vmatprep.subr.bf16.mxu0 %v2203
      %2255 = vmatpush1.bf16.msra.mxu0 %v2202
      %2256 = vmatprep.subr.bf16.mxu0 %v2207
      %2257 = vmatpush1.bf16.msra.mxu0 %v2206
      %2258 = vmatprep.subr.bf16.mxu0 0
      %2259 = vmatpush1.bf16.msra.mxu0 0
      %2260 = vmatprep.subr.bf16.mxu0 0
      %2261 = vmatpush1.bf16.msra.mxu0 0
      %2262 = vmatprep.subr.bf16.mxu0 0
      %2263 = vmatpush1.bf16.msra.mxu0 0
      %2264 = vmatprep.subr.bf16.mxu0 0
      %2265 = vmatpush1.bf16.msra.mxu0 0
      %2266 = vmatprep.subr.bf16.mxu0 0
      %2267 = vmatpush1.bf16.msra.mxu0 0
      %2268 = vmatprep.subr.bf16.mxu0 0
      %2269 = vmatpush1.bf16.msra.mxu0 0
      %2270 = vmatprep.subr.bf16.mxu0 0
      %2271 = vmatpush1.bf16.msra.mxu0 0
      %2272 = vmatprep.subr.bf16.mxu0 0
      %2273 = vmatpush1.bf16.msra.mxu0 0
      %2274 = vmatprep.mubr.bf16.mxu0 0
      %2275 = vmatmul.mubr.bf16.gmra.mrb[0].mxu0 %v2049
      %v2276 = vpop.f32.mrb[0].mxu0
      %v2277 = vadd.f32 0.0, %v2276
      %v2278 = vpop.f32.mrb[0].mxu0
      %v2279 = vadd.f32 0.0, %v2278
      %v2280 = vpop.f32.mrb[0].mxu0
      %v2281 = vpop.f32.mrb[0].mxu0
      %2282 = vdwg.mxu0
      %2283 = vmatprep.subr.bf16.mxu0 %v2181
      %2284 = vmatpush1.bf16.msra.mxu0 %v2180
      %2285 = vmatprep.subr.bf16.mxu0 %v2185
      %2286 = vmatpush1.bf16.msra.mxu0 %v2184
      %2287 = vmatprep.subr.bf16.mxu0 %v2189
      %2288 = vmatpush1.bf16.msra.mxu0 %v2188
      %2289 = vmatprep.subr.bf16.mxu0 %v2193
      %2290 = vmatpush1.bf16.msra.mxu0 %v2192
      %2291 = vmatprep.subr.bf16.mxu0 %v2197
      %2292 = vmatpush1.bf16.msra.mxu0 %v2196
      %2293 = vmatprep.subr.bf16.mxu0 %v2201
      %2294 = vmatpush1.bf16.msra.mxu0 %v2200
      %2295 = vmatprep.subr.bf16.mxu0 %v2205
      %2296 = vmatpush1.bf16.msra.mxu0 %v2204
      %2297 = vmatprep.subr.bf16.mxu0 %v2209
      %2298 = vmatpush1.bf16.msra.mxu0 %v2208
      %2299 = vmatprep.subr.bf16.mxu0 0
      %2300 = vmatpush1.bf16.msra.mxu0 0
      %2301 = vmatprep.subr.bf16.mxu0 0
      %2302 = vmatpush1.bf16.msra.mxu0 0
      %2303 = vmatprep.subr.bf16.mxu0 0
      %2304 = vmatpush1.bf16.msra.mxu0 0
      %2305 = vmatprep.subr.bf16.mxu0 0
      %2306 = vmatpush1.bf16.msra.mxu0 0
      %2307 = vmatprep.subr.bf16.mxu0 0
      %2308 = vmatpush1.bf16.msra.mxu0 0
      %2309 = vmatprep.subr.bf16.mxu0 0
      %2310 = vmatpush1.bf16.msra.mxu0 0
      %2311 = vmatprep.subr.bf16.mxu0 0
      %2312 = vmatpush1.bf16.msra.mxu0 0
      %2313 = vmatprep.subr.bf16.mxu0 0
      %2314 = vmatpush1.bf16.msra.mxu0 0
      %2315 = vmatprep.mubr.bf16.mxu0 0
      %2316 = vmatmul.mubr.bf16.gmra.mrb[0].mxu0 %v2049
      %v2317 = vpop.f32.mrb[0].mxu0
      %v2318 = vadd.f32 0.0, %v2317
      %v2319 = vpop.f32.mrb[0].mxu0
      %v2320 = vadd.f32 0.0, %v2319
      %v2321 = vpop.f32.mrb[0].mxu0
      %v2322 = vpop.f32.mrb[0].mxu0
      %2323 = vdwg.mxu0
      %v2324 = vadd.f32 %v2045, %v2277
      %v2325 = vadd.f32 %v2046, %v2279
      %v2326 = vadd.f32 %v2047, %v2318
      %v2327 = vadd.f32 %v2048, %v2320
      %v2328 = vmul.f32 %v2324, 0.5
      %v2329 = vtanh.pop %v2328
      %v2330 = vmul.f32 %v2329, 0.5
      %v2331 = vadd.f32 %v2330, 0.5
      %v2332 = vmul.f32 %v2325, 0.5
      %v2333 = vtanh.pop %v2332
      %v2334 = vmul.f32 %v2333, 0.5
      %v2335 = vadd.f32 %v2334, 0.5
      %v2336 = vtanh.pop %v2326
      %v2337 = vmul.f32 %v2327, 0.5
      %v2338 = vtanh.pop %v2337
      %v2339 = vmul.f32 %v2338, 0.5
      %v2340 = vadd.f32 %v2339, 0.5
      %v2341 = vmul.f32 %v2335, %v2039
      %v2342 = vmul.f32 %v2331, %v2336
      %v2343 = vadd.f32 %v2341, %v2342
      %v2344 = vtanh.pop %v2343
      %v2345 = vmul.f32 %v2340, %v2344
      %s2346 = scalar_lea.vmem %s385, 32
      %2347 = vst [vmem:[%s2346] sm:$0xff] %v2345
      %s2348 = scalar_lea.vmem [#allocation2], 160
      %v2349 = vld [vmem:[%s2348] sm:$0xff]
      %v2350 = vld [vmem:[%s2348 + $0x8] sm:$0xff]
      %v2351 = vld [vmem:[%s2348 + $0x10] sm:$0xff]
      %v2352 = vld [vmem:[%s2348 + $0x18] sm:$0xff]
      %v2353 = vpack.c.bf16 %v2345, %v2345
      %v2354 = vld [vmem:[%s2] sm:$0xff]
      %v2355 = vld [vmem:[%s2 + $0x8] sm:$0xff]
      %v2356 = vld [vmem:[%s2 + $0x10] sm:$0xff]
      %v2357 = vld [vmem:[%s2 + $0x18] sm:$0xff]
      %v2358 = vld [vmem:[%s2 + $0x20] sm:$0xff]
      %v2359 = vld [vmem:[%s2 + $0x28] sm:$0xff]
      %v2360 = vld [vmem:[%s2 + $0x30] sm:$0xff]
      %v2361 = vld [vmem:[%s2 + $0x38] sm:$0xff]
      %v2362 = vld [vmem:[%s2 + $0x40] sm:$0xff]
      %v2363 = vld [vmem:[%s2 + $0x48] sm:$0xff]
      %v2364 = vld [vmem:[%s2 + $0x50] sm:$0xff]
      %v2365 = vld [vmem:[%s2 + $0x58] sm:$0xff]
      %v2366 = vld [vmem:[%s2 + $0x60] sm:$0xff]
      %v2367 = vld [vmem:[%s2 + $0x68] sm:$0xff]
      %v2368 = vld [vmem:[%s2 + $0x70] sm:$0xff]
      %v2369 = vld [vmem:[%s2 + $0x78] sm:$0xff]
      %v2370 = vld [vmem:[%s2 + $0x80] sm:$0xff]
      %v2371 = vld [vmem:[%s2 + $0x88] sm:$0xff]
      %v2372 = vld [vmem:[%s2 + $0x90] sm:$0xff]
      %v2373 = vld [vmem:[%s2 + $0x98] sm:$0xff]
      %v2374 = vld [vmem:[%s2 + $0xa0] sm:$0xff]
      %v2375 = vld [vmem:[%s2 + $0xa8] sm:$0xff]
      %v2376 = vld [vmem:[%s2 + $0xb0] sm:$0xff]
      %v2377 = vld [vmem:[%s2 + $0xb8] sm:$0xff]
      %v2378 = vld [vmem:[%s2 + $0xc0] sm:$0xff]
      %v2379 = vld [vmem:[%s2 + $0xc8] sm:$0xff]
      %v2380 = vld [vmem:[%s2 + $0xd0] sm:$0xff]
      %v2381 = vld [vmem:[%s2 + $0xd8] sm:$0xff]
      %v2382 = vld [vmem:[%s2 + $0xe0] sm:$0xff]
      %v2383 = vld [vmem:[%s2 + $0xe8] sm:$0xff]
      %v2384 = vld [vmem:[%s2 + $0xf0] sm:$0xff]
      %v2385 = vld [vmem:[%s2 + $0xf8] sm:$0xff]
      %v2418 = vunpack.c.l.b16 %v2354
      %v2419 = vunpack.c.h.b16 %v2354
      %v2420 = vunpack.c.l.b16 %v2355
      %v2421 = vunpack.c.h.b16 %v2355
      %v2422 = vunpack.c.l.b16 %v2356
      %v2423 = vunpack.c.h.b16 %v2356
      %v2424 = vunpack.c.l.b16 %v2357
      %v2425 = vunpack.c.h.b16 %v2357
      %v2426 = vunpack.c.l.b16 %v2358
      %v2427 = vunpack.c.h.b16 %v2358
      %v2428 = vunpack.c.l.b16 %v2359
      %v2429 = vunpack.c.h.b16 %v2359
      %v2430 = vunpack.c.l.b16 %v2360
      %v2431 = vunpack.c.h.b16 %v2360
      %v2432 = vunpack.c.l.b16 %v2361
      %v2433 = vunpack.c.h.b16 %v2361
      %v2434 = vunpack.c.l.b16 %v2362
      %v2435 = vunpack.c.h.b16 %v2362
      %v2436 = vunpack.c.l.b16 %v2363
      %v2437 = vunpack.c.h.b16 %v2363
      %v2438 = vunpack.c.l.b16 %v2364
      %v2439 = vunpack.c.h.b16 %v2364
      %v2440 = vunpack.c.l.b16 %v2365
      %v2441 = vunpack.c.h.b16 %v2365
      %v2442 = vunpack.c.l.b16 %v2366
      %v2443 = vunpack.c.h.b16 %v2366
      %v2444 = vunpack.c.l.b16 %v2367
      %v2445 = vunpack.c.h.b16 %v2367
      %v2446 = vunpack.c.l.b16 %v2368
      %v2447 = vunpack.c.h.b16 %v2368
      %v2448 = vunpack.c.l.b16 %v2369
      %v2449 = vunpack.c.h.b16 %v2369
      %v2450 = vunpack.c.l.b16 %v2370
      %v2451 = vunpack.c.h.b16 %v2370
      %v2452 = vunpack.c.l.b16 %v2371
      %v2453 = vunpack.c.h.b16 %v2371
      %v2454 = vunpack.c.l.b16 %v2372
      %v2455 = vunpack.c.h.b16 %v2372
      %v2456 = vunpack.c.l.b16 %v2373
      %v2457 = vunpack.c.h.b16 %v2373
      %v2458 = vunpack.c.l.b16 %v2374
      %v2459 = vunpack.c.h.b16 %v2374
      %v2460 = vunpack.c.l.b16 %v2375
      %v2461 = vunpack.c.h.b16 %v2375
      %v2462 = vunpack.c.l.b16 %v2376
      %v2463 = vunpack.c.h.b16 %v2376
      %v2464 = vunpack.c.l.b16 %v2377
      %v2465 = vunpack.c.h.b16 %v2377
      %v2466 = vunpack.c.l.b16 %v2378
      %v2467 = vunpack.c.h.b16 %v2378
      %v2468 = vunpack.c.l.b16 %v2379
      %v2469 = vunpack.c.h.b16 %v2379
      %v2470 = vunpack.c.l.b16 %v2380
      %v2471 = vunpack.c.h.b16 %v2380
      %v2472 = vunpack.c.l.b16 %v2381
      %v2473 = vunpack.c.h.b16 %v2381
      %v2474 = vunpack.c.l.b16 %v2382
      %v2475 = vunpack.c.h.b16 %v2382
      %v2476 = vunpack.c.l.b16 %v2383
      %v2477 = vunpack.c.h.b16 %v2383
      %v2478 = vunpack.c.l.b16 %v2384
      %v2479 = vunpack.c.h.b16 %v2384
      %v2480 = vunpack.c.l.b16 %v2385
      %v2481 = vunpack.c.h.b16 %v2385
      %v2482 = vpack.c.b16 %v2422, %v2418
      %v2483 = vpack.c.b16 %v2423, %v2419
      %v2484 = vpack.c.b16 %v2424, %v2420
      %v2485 = vpack.c.b16 %v2425, %v2421
      %v2486 = vpack.c.b16 %v2430, %v2426
      %v2487 = vpack.c.b16 %v2431, %v2427
      %v2488 = vpack.c.b16 %v2432, %v2428
      %v2489 = vpack.c.b16 %v2433, %v2429
      %v2490 = vpack.c.b16 %v2438, %v2434
      %v2491 = vpack.c.b16 %v2439, %v2435
      %v2492 = vpack.c.b16 %v2440, %v2436
      %v2493 = vpack.c.b16 %v2441, %v2437
      %v2494 = vpack.c.b16 %v2446, %v2442
      %v2495 = vpack.c.b16 %v2447, %v2443
      %v2496 = vpack.c.b16 %v2448, %v2444
      %v2497 = vpack.c.b16 %v2449, %v2445
      %v2498 = vpack.c.b16 %v2454, %v2450
      %v2499 = vpack.c.b16 %v2455, %v2451
      %v2500 = vpack.c.b16 %v2456, %v2452
      %v2501 = vpack.c.b16 %v2457, %v2453
      %v2502 = vpack.c.b16 %v2462, %v2458
      %v2503 = vpack.c.b16 %v2463, %v2459
      %v2504 = vpack.c.b16 %v2464, %v2460
      %v2505 = vpack.c.b16 %v2465, %v2461
      %v2506 = vpack.c.b16 %v2470, %v2466
      %v2507 = vpack.c.b16 %v2471, %v2467
      %v2508 = vpack.c.b16 %v2472, %v2468
      %v2509 = vpack.c.b16 %v2473, %v2469
      %v2510 = vpack.c.b16 %v2478, %v2474
      %v2511 = vpack.c.b16 %v2479, %v2475
      %v2512 = vpack.c.b16 %v2480, %v2476
      %v2513 = vpack.c.b16 %v2481, %v2477
      %2546 = vmatprep.subr.bf16.mxu0 %v2483
      %2547 = vmatpush1.bf16.msra.mxu0 %v2482
      %2548 = vmatprep.subr.bf16.mxu0 %v2487
      %2549 = vmatpush1.bf16.msra.mxu0 %v2486
      %2550 = vmatprep.subr.bf16.mxu0 %v2491
      %2551 = vmatpush1.bf16.msra.mxu0 %v2490
      %2552 = vmatprep.subr.bf16.mxu0 %v2495
      %2553 = vmatpush1.bf16.msra.mxu0 %v2494
      %2554 = vmatprep.subr.bf16.mxu0 %v2499
      %2555 = vmatpush1.bf16.msra.mxu0 %v2498
      %2556 = vmatprep.subr.bf16.mxu0 %v2503
      %2557 = vmatpush1.bf16.msra.mxu0 %v2502
      %2558 = vmatprep.subr.bf16.mxu0 %v2507
      %2559 = vmatpush1.bf16.msra.mxu0 %v2506
      %2560 = vmatprep.subr.bf16.mxu0 %v2511
      %2561 = vmatpush1.bf16.msra.mxu0 %v2510
      %2562 = vmatprep.subr.bf16.mxu0 0
      %2563 = vmatpush1.bf16.msra.mxu0 0
      %2564 = vmatprep.subr.bf16.mxu0 0
      %2565 = vmatpush1.bf16.msra.mxu0 0
      %2566 = vmatprep.subr.bf16.mxu0 0
      %2567 = vmatpush1.bf16.msra.mxu0 0
      %2568 = vmatprep.subr.bf16.mxu0 0
      %2569 = vmatpush1.bf16.msra.mxu0 0
      %2570 = vmatprep.subr.bf16.mxu0 0
      %2571 = vmatpush1.bf16.msra.mxu0 0
      %2572 = vmatprep.subr.bf16.mxu0 0
      %2573 = vmatpush1.bf16.msra.mxu0 0
      %2574 = vmatprep.subr.bf16.mxu0 0
      %2575 = vmatpush1.bf16.msra.mxu0 0
      %2576 = vmatprep.subr.bf16.mxu0 0
      %2577 = vmatpush1.bf16.msra.mxu0 0
      %2578 = vmatprep.mubr.bf16.mxu0 0
      %2579 = vmatmul.mubr.bf16.gmra.mrb[0].mxu0 %v2353
      %v2580 = vpop.f32.mrb[0].mxu0
      %v2581 = vadd.f32 0.0, %v2580
      %v2582 = vpop.f32.mrb[0].mxu0
      %v2583 = vadd.f32 0.0, %v2582
      %v2584 = vpop.f32.mrb[0].mxu0
      %v2585 = vpop.f32.mrb[0].mxu0
      %2586 = vdwg.mxu0
      %2587 = vmatprep.subr.bf16.mxu0 %v2485
      %2588 = vmatpush1.bf16.msra.mxu0 %v2484
      %2589 = vmatprep.subr.bf16.mxu0 %v2489
      %2590 = vmatpush1.bf16.msra.mxu0 %v2488
      %2591 = vmatprep.subr.bf16.mxu0 %v2493
      %2592 = vmatpush1.bf16.msra.mxu0 %v2492
      %2593 = vmatprep.subr.bf16.mxu0 %v2497
      %2594 = vmatpush1.bf16.msra.mxu0 %v2496
      %2595 = vmatprep.subr.bf16.mxu0 %v2501
      %2596 = vmatpush1.bf16.msra.mxu0 %v2500
      %2597 = vmatprep.subr.bf16.mxu0 %v2505
      %2598 = vmatpush1.bf16.msra.mxu0 %v2504
      %2599 = vmatprep.subr.bf16.mxu0 %v2509
      %2600 = vmatpush1.bf16.msra.mxu0 %v2508
      %2601 = vmatprep.subr.bf16.mxu0 %v2513
      %2602 = vmatpush1.bf16.msra.mxu0 %v2512
      %2603 = vmatprep.subr.bf16.mxu0 0
      %2604 = vmatpush1.bf16.msra.mxu0 0
      %2605 = vmatprep.subr.bf16.mxu0 0
      %2606 = vmatpush1.bf16.msra.mxu0 0
      %2607 = vmatprep.subr.bf16.mxu0 0
      %2608 = vmatpush1.bf16.msra.mxu0 0
      %2609 = vmatprep.subr.bf16.mxu0 0
      %2610 = vmatpush1.bf16.msra.mxu0 0
      %2611 = vmatprep.subr.bf16.mxu0 0
      %2612 = vmatpush1.bf16.msra.mxu0 0
      %2613 = vmatprep.subr.bf16.mxu0 0
      %2614 = vmatpush1.bf16.msra.mxu0 0
      %2615 = vmatprep.subr.bf16.mxu0 0
      %2616 = vmatpush1.bf16.msra.mxu0 0
      %2617 = vmatprep.subr.bf16.mxu0 0
      %2618 = vmatpush1.bf16.msra.mxu0 0
      %2619 = vmatprep.mubr.bf16.mxu0 0
      %2620 = vmatmul.mubr.bf16.gmra.mrb[0].mxu0 %v2353
      %v2621 = vpop.f32.mrb[0].mxu0
      %v2622 = vadd.f32 0.0, %v2621
      %v2623 = vpop.f32.mrb[0].mxu0
      %v2624 = vadd.f32 0.0, %v2623
      %v2625 = vpop.f32.mrb[0].mxu0
      %v2626 = vpop.f32.mrb[0].mxu0
      %2627 = vdwg.mxu0
      %v2628 = vadd.f32 %v2349, %v2581
      %v2629 = vadd.f32 %v2350, %v2583
      %v2630 = vadd.f32 %v2351, %v2622
      %v2631 = vadd.f32 %v2352, %v2624
      %v2632 = vmul.f32 %v2628, 0.5
      %v2633 = vtanh.pop %v2632
      %v2634 = vmul.f32 %v2633, 0.5
      %v2635 = vadd.f32 %v2634, 0.5
      %v2636 = vmul.f32 %v2629, 0.5
      %v2637 = vtanh.pop %v2636
      %v2638 = vmul.f32 %v2637, 0.5
      %v2639 = vadd.f32 %v2638, 0.5
      %v2640 = vtanh.pop %v2630
      %v2641 = vmul.f32 %v2631, 0.5
      %v2642 = vtanh.pop %v2641
      %v2643 = vmul.f32 %v2642, 0.5
      %v2644 = vadd.f32 %v2643, 0.5
      %v2645 = vmul.f32 %v2639, %v2343
      %v2646 = vmul.f32 %v2635, %v2640
      %v2647 = vadd.f32 %v2645, %v2646
      %v2648 = vtanh.pop %v2647
      %v2649 = vmul.f32 %v2644, %v2648
      %s2650 = scalar_lea.vmem %s385, 40
      %2651 = vst [vmem:[%s2650] sm:$0xff] %v2649
      %s2652 = scalar_lea.vmem [#allocation2], 192
      %v2653 = vld [vmem:[%s2652] sm:$0xff]
      %v2654 = vld [vmem:[%s2652 + $0x8] sm:$0xff]
      %v2655 = vld [vmem:[%s2652 + $0x10] sm:$0xff]
      %v2656 = vld [vmem:[%s2652 + $0x18] sm:$0xff]
      %v2657 = vpack.c.bf16 %v2649, %v2649
      %v2658 = vld [vmem:[%s2] sm:$0xff]
      %v2659 = vld [vmem:[%s2 + $0x8] sm:$0xff]
      %v2660 = vld [vmem:[%s2 + $0x10] sm:$0xff]
      %v2661 = vld [vmem:[%s2 + $0x18] sm:$0xff]
      %v2662 = vld [vmem:[%s2 + $0x20] sm:$0xff]
      %v2663 = vld [vmem:[%s2 + $0x28] sm:$0xff]
      %v2664 = vld [vmem:[%s2 + $0x30] sm:$0xff]
      %v2665 = vld [vmem:[%s2 + $0x38] sm:$0xff]
      %v2666 = vld [vmem:[%s2 + $0x40] sm:$0xff]
      %v2667 = vld [vmem:[%s2 + $0x48] sm:$0xff]
      %v2668 = vld [vmem:[%s2 + $0x50] sm:$0xff]
      %v2669 = vld [vmem:[%s2 + $0x58] sm:$0xff]
      %v2670 = vld [vmem:[%s2 + $0x60] sm:$0xff]
      %v2671 = vld [vmem:[%s2 + $0x68] sm:$0xff]
      %v2672 = vld [vmem:[%s2 + $0x70] sm:$0xff]
      %v2673 = vld [vmem:[%s2 + $0x78] sm:$0xff]
      %v2674 = vld [vmem:[%s2 + $0x80] sm:$0xff]
      %v2675 = vld [vmem:[%s2 + $0x88] sm:$0xff]
      %v2676 = vld [vmem:[%s2 + $0x90] sm:$0xff]
      %v2677 = vld [vmem:[%s2 + $0x98] sm:$0xff]
      %v2678 = vld [vmem:[%s2 + $0xa0] sm:$0xff]
      %v2679 = vld [vmem:[%s2 + $0xa8] sm:$0xff]
      %v2680 = vld [vmem:[%s2 + $0xb0] sm:$0xff]
      %v2681 = vld [vmem:[%s2 + $0xb8] sm:$0xff]
      %v2682 = vld [vmem:[%s2 + $0xc0] sm:$0xff]
      %v2683 = vld [vmem:[%s2 + $0xc8] sm:$0xff]
      %v2684 = vld [vmem:[%s2 + $0xd0] sm:$0xff]
      %v2685 = vld [vmem:[%s2 + $0xd8] sm:$0xff]
      %v2686 = vld [vmem:[%s2 + $0xe0] sm:$0xff]
      %v2687 = vld [vmem:[%s2 + $0xe8] sm:$0xff]
      %v2688 = vld [vmem:[%s2 + $0xf0] sm:$0xff]
      %v2689 = vld [vmem:[%s2 + $0xf8] sm:$0xff]
      %v2722 = vunpack.c.l.b16 %v2658
      %v2723 = vunpack.c.h.b16 %v2658
      %v2724 = vunpack.c.l.b16 %v2659
      %v2725 = vunpack.c.h.b16 %v2659
      %v2726 = vunpack.c.l.b16 %v2660
      %v2727 = vunpack.c.h.b16 %v2660
      %v2728 = vunpack.c.l.b16 %v2661
      %v2729 = vunpack.c.h.b16 %v2661
      %v2730 = vunpack.c.l.b16 %v2662
      %v2731 = vunpack.c.h.b16 %v2662
      %v2732 = vunpack.c.l.b16 %v2663
      %v2733 = vunpack.c.h.b16 %v2663
      %v2734 = vunpack.c.l.b16 %v2664
      %v2735 = vunpack.c.h.b16 %v2664
      %v2736 = vunpack.c.l.b16 %v2665
      %v2737 = vunpack.c.h.b16 %v2665
      %v2738 = vunpack.c.l.b16 %v2666
      %v2739 = vunpack.c.h.b16 %v2666
      %v2740 = vunpack.c.l.b16 %v2667
      %v2741 = vunpack.c.h.b16 %v2667
      %v2742 = vunpack.c.l.b16 %v2668
      %v2743 = vunpack.c.h.b16 %v2668
      %v2744 = vunpack.c.l.b16 %v2669
      %v2745 = vunpack.c.h.b16 %v2669
      %v2746 = vunpack.c.l.b16 %v2670
      %v2747 = vunpack.c.h.b16 %v2670
      %v2748 = vunpack.c.l.b16 %v2671
      %v2749 = vunpack.c.h.b16 %v2671
      %v2750 = vunpack.c.l.b16 %v2672
      %v2751 = vunpack.c.h.b16 %v2672
      %v2752 = vunpack.c.l.b16 %v2673
      %v2753 = vunpack.c.h.b16 %v2673
      %v2754 = vunpack.c.l.b16 %v2674
      %v2755 = vunpack.c.h.b16 %v2674
      %v2756 = vunpack.c.l.b16 %v2675
      %v2757 = vunpack.c.h.b16 %v2675
      %v2758 = vunpack.c.l.b16 %v2676
      %v2759 = vunpack.c.h.b16 %v2676
      %v2760 = vunpack.c.l.b16 %v2677
      %v2761 = vunpack.c.h.b16 %v2677
      %v2762 = vunpack.c.l.b16 %v2678
      %v2763 = vunpack.c.h.b16 %v2678
      %v2764 = vunpack.c.l.b16 %v2679
      %v2765 = vunpack.c.h.b16 %v2679
      %v2766 = vunpack.c.l.b16 %v2680
      %v2767 = vunpack.c.h.b16 %v2680
      %v2768 = vunpack.c.l.b16 %v2681
      %v2769 = vunpack.c.h.b16 %v2681
      %v2770 = vunpack.c.l.b16 %v2682
      %v2771 = vunpack.c.h.b16 %v2682
      %v2772 = vunpack.c.l.b16 %v2683
      %v2773 = vunpack.c.h.b16 %v2683
      %v2774 = vunpack.c.l.b16 %v2684
      %v2775 = vunpack.c.h.b16 %v2684
      %v2776 = vunpack.c.l.b16 %v2685
      %v2777 = vunpack.c.h.b16 %v2685
      %v2778 = vunpack.c.l.b16 %v2686
      %v2779 = vunpack.c.h.b16 %v2686
      %v2780 = vunpack.c.l.b16 %v2687
      %v2781 = vunpack.c.h.b16 %v2687
      %v2782 = vunpack.c.l.b16 %v2688
      %v2783 = vunpack.c.h.b16 %v2688
      %v2784 = vunpack.c.l.b16 %v2689
      %v2785 = vunpack.c.h.b16 %v2689
      %v2786 = vpack.c.b16 %v2726, %v2722
      %v2787 = vpack.c.b16 %v2727, %v2723
      %v2788 = vpack.c.b16 %v2728, %v2724
      %v2789 = vpack.c.b16 %v2729, %v2725
      %v2790 = vpack.c.b16 %v2734, %v2730
      %v2791 = vpack.c.b16 %v2735, %v2731
      %v2792 = vpack.c.b16 %v2736, %v2732
      %v2793 = vpack.c.b16 %v2737, %v2733
      %v2794 = vpack.c.b16 %v2742, %v2738
      %v2795 = vpack.c.b16 %v2743, %v2739
      %v2796 = vpack.c.b16 %v2744, %v2740
      %v2797 = vpack.c.b16 %v2745, %v2741
      %v2798 = vpack.c.b16 %v2750, %v2746
      %v2799 = vpack.c.b16 %v2751, %v2747
      %v2800 = vpack.c.b16 %v2752, %v2748
      %v2801 = vpack.c.b16 %v2753, %v2749
      %v2802 = vpack.c.b16 %v2758, %v2754
      %v2803 = vpack.c.b16 %v2759, %v2755
      %v2804 = vpack.c.b16 %v2760, %v2756
      %v2805 = vpack.c.b16 %v2761, %v2757
      %v2806 = vpack.c.b16 %v2766, %v2762
      %v2807 = vpack.c.b16 %v2767, %v2763
      %v2808 = vpack.c.b16 %v2768, %v2764
      %v2809 = vpack.c.b16 %v2769, %v2765
      %v2810 = vpack.c.b16 %v2774, %v2770
      %v2811 = vpack.c.b16 %v2775, %v2771
      %v2812 = vpack.c.b16 %v2776, %v2772
      %v2813 = vpack.c.b16 %v2777, %v2773
      %v2814 = vpack.c.b16 %v2782, %v2778
      %v2815 = vpack.c.b16 %v2783, %v2779
      %v2816 = vpack.c.b16 %v2784, %v2780
      %v2817 = vpack.c.b16 %v2785, %v2781
      %2850 = vmatprep.subr.bf16.mxu0 %v2787
      %2851 = vmatpush1.bf16.msra.mxu0 %v2786
      %2852 = vmatprep.subr.bf16.mxu0 %v2791
      %2853 = vmatpush1.bf16.msra.mxu0 %v2790
      %2854 = vmatprep.subr.bf16.mxu0 %v2795
      %2855 = vmatpush1.bf16.msra.mxu0 %v2794
      %2856 = vmatprep.subr.bf16.mxu0 %v2799
      %2857 = vmatpush1.bf16.msra.mxu0 %v2798
      %2858 = vmatprep.subr.bf16.mxu0 %v2803
      %2859 = vmatpush1.bf16.msra.mxu0 %v2802
      %2860 = vmatprep.subr.bf16.mxu0 %v2807
      %2861 = vmatpush1.bf16.msra.mxu0 %v2806
      %2862 = vmatprep.subr.bf16.mxu0 %v2811
      %2863 = vmatpush1.bf16.msra.mxu0 %v2810
      %2864 = vmatprep.subr.bf16.mxu0 %v2815
      %2865 = vmatpush1.bf16.msra.mxu0 %v2814
      %2866 = vmatprep.subr.bf16.mxu0 0
      %2867 = vmatpush1.bf16.msra.mxu0 0
      %2868 = vmatprep.subr.bf16.mxu0 0
      %2869 = vmatpush1.bf16.msra.mxu0 0
      %2870 = vmatprep.subr.bf16.mxu0 0
      %2871 = vmatpush1.bf16.msra.mxu0 0
      %2872 = vmatprep.subr.bf16.mxu0 0
      %2873 = vmatpush1.bf16.msra.mxu0 0
      %2874 = vmatprep.subr.bf16.mxu0 0
      %2875 = vmatpush1.bf16.msra.mxu0 0
      %2876 = vmatprep.subr.bf16.mxu0 0
      %2877 = vmatpush1.bf16.msra.mxu0 0
      %2878 = vmatprep.subr.bf16.mxu0 0
      %2879 = vmatpush1.bf16.msra.mxu0 0
      %2880 = vmatprep.subr.bf16.mxu0 0
      %2881 = vmatpush1.bf16.msra.mxu0 0
      %2882 = vmatprep.mubr.bf16.mxu0 0
      %2883 = vmatmul.mubr.bf16.gmra.mrb[0].mxu0 %v2657
      %v2884 = vpop.f32.mrb[0].mxu0
      %v2885 = vadd.f32 0.0, %v2884
      %v2886 = vpop.f32.mrb[0].mxu0
      %v2887 = vadd.f32 0.0, %v2886
      %v2888 = vpop.f32.mrb[0].mxu0
      %v2889 = vpop.f32.mrb[0].mxu0
      %2890 = vdwg.mxu0
      %2891 = vmatprep.subr.bf16.mxu0 %v2789
      %2892 = vmatpush1.bf16.msra.mxu0 %v2788
      %2893 = vmatprep.subr.bf16.mxu0 %v2793
      %2894 = vmatpush1.bf16.msra.mxu0 %v2792
      %2895 = vmatprep.subr.bf16.mxu0 %v2797
      %2896 = vmatpush1.bf16.msra.mxu0 %v2796
      %2897 = vmatprep.subr.bf16.mxu0 %v2801
      %2898 = vmatpush1.bf16.msra.mxu0 %v2800
      %2899 = vmatprep.subr.bf16.mxu0 %v2805
      %2900 = vmatpush1.bf16.msra.mxu0 %v2804
      %2901 = vmatprep.subr.bf16.mxu0 %v2809
      %2902 = vmatpush1.bf16.msra.mxu0 %v2808
      %2903 = vmatprep.subr.bf16.mxu0 %v2813
      %2904 = vmatpush1.bf16.msra.mxu0 %v2812
      %2905 = vmatprep.subr.bf16.mxu0 %v2817
      %2906 = vmatpush1.bf16.msra.mxu0 %v2816
      %2907 = vmatprep.subr.bf16.mxu0 0
      %2908 = vmatpush1.bf16.msra.mxu0 0
      %2909 = vmatprep.subr.bf16.mxu0 0
      %2910 = vmatpush1.bf16.msra.mxu0 0
      %2911 = vmatprep.subr.bf16.mxu0 0
      %2912 = vmatpush1.bf16.msra.mxu0 0
      %2913 = vmatprep.subr.bf16.mxu0 0
      %2914 = vmatpush1.bf16.msra.mxu0 0
      %2915 = vmatprep.subr.bf16.mxu0 0
      %2916 = vmatpush1.bf16.msra.mxu0 0
      %2917 = vmatprep.subr.bf16.mxu0 0
      %2918 = vmatpush1.bf16.msra.mxu0 0
      %2919 = vmatprep.subr.bf16.mxu0 0
      %2920 = vmatpush1.bf16.msra.mxu0 0
      %2921 = vmatprep.subr.bf16.mxu0 0
      %2922 = vmatpush1.bf16.msra.mxu0 0
      %2923 = vmatprep.mubr.bf16.mxu0 0
      %2924 = vmatmul.mubr.bf16.gmra.mrb[0].mxu0 %v2657
      %v2925 = vpop.f32.mrb[0].mxu0
      %v2926 = vadd.f32 0.0, %v2925
      %v2927 = vpop.f32.mrb[0].mxu0
      %v2928 = vadd.f32 0.0, %v2927
      %v2929 = vpop.f32.mrb[0].mxu0
      %v2930 = vpop.f32.mrb[0].mxu0
      %2931 = vdwg.mxu0
      %v2932 = vadd.f32 %v2653, %v2885
      %v2933 = vadd.f32 %v2654, %v2887
      %v2934 = vadd.f32 %v2655, %v2926
      %v2935 = vadd.f32 %v2656, %v2928
      %v2936 = vmul.f32 %v2932, 0.5
      %v2937 = vtanh.pop %v2936
      %v2938 = vmul.f32 %v2937, 0.5
      %v2939 = vadd.f32 %v2938, 0.5
      %v2940 = vmul.f32 %v2933, 0.5
      %v2941 = vtanh.pop %v2940
      %v2942 = vmul.f32 %v2941, 0.5
      %v2943 = vadd.f32 %v2942, 0.5
      %v2944 = vtanh.pop %v2934
      %v2945 = vmul.f32 %v2935, 0.5
      %v2946 = vtanh.pop %v2945
      %v2947 = vmul.f32 %v2946, 0.5
      %v2948 = vadd.f32 %v2947, 0.5
      %v2949 = vmul.f32 %v2943, %v2647
      %v2950 = vmul.f32 %v2939, %v2944
      %v2951 = vadd.f32 %v2949, %v2950
      %v2952 = vtanh.pop %v2951
      %v2953 = vmul.f32 %v2948, %v2952
      %s2954 = scalar_lea.vmem %s385, 48
      %2955 = vst [vmem:[%s2954] sm:$0xff] %v2953
      %s2956 = scalar_lea.vmem [#allocation2], 224
      %v2957 = vld [vmem:[%s2956] sm:$0xff]
      %v2958 = vld [vmem:[%s2956 + $0x8] sm:$0xff]
      %v2959 = vld [vmem:[%s2956 + $0x10] sm:$0xff]
      %v2960 = vld [vmem:[%s2956 + $0x18] sm:$0xff]
      %v2961 = vpack.c.bf16 %v2953, %v2953
      %v2962 = vld [vmem:[%s2] sm:$0xff]
      %v2963 = vld [vmem:[%s2 + $0x8] sm:$0xff]
      %v2964 = vld [vmem:[%s2 + $0x10] sm:$0xff]
      %v2965 = vld [vmem:[%s2 + $0x18] sm:$0xff]
      %v2966 = vld [vmem:[%s2 + $0x20] sm:$0xff]
      %v2967 = vld [vmem:[%s2 + $0x28] sm:$0xff]
      %v2968 = vld [vmem:[%s2 + $0x30] sm:$0xff]
      %v2969 = vld [vmem:[%s2 + $0x38] sm:$0xff]
      %v2970 = vld [vmem:[%s2 + $0x40] sm:$0xff]
      %v2971 = vld [vmem:[%s2 + $0x48] sm:$0xff]
      %v2972 = vld [vmem:[%s2 + $0x50] sm:$0xff]
      %v2973 = vld [vmem:[%s2 + $0x58] sm:$0xff]
      %v2974 = vld [vmem:[%s2 + $0x60] sm:$0xff]
      %v2975 = vld [vmem:[%s2 + $0x68] sm:$0xff]
      %v2976 = vld [vmem:[%s2 + $0x70] sm:$0xff]
      %v2977 = vld [vmem:[%s2 + $0x78] sm:$0xff]
      %v2978 = vld [vmem:[%s2 + $0x80] sm:$0xff]
      %v2979 = vld [vmem:[%s2 + $0x88] sm:$0xff]
      %v2980 = vld [vmem:[%s2 + $0x90] sm:$0xff]
      %v2981 = vld [vmem:[%s2 + $0x98] sm:$0xff]
      %v2982 = vld [vmem:[%s2 + $0xa0] sm:$0xff]
      %v2983 = vld [vmem:[%s2 + $0xa8] sm:$0xff]
      %v2984 = vld [vmem:[%s2 + $0xb0] sm:$0xff]
      %v2985 = vld [vmem:[%s2 + $0xb8] sm:$0xff]
      %v2986 = vld [vmem:[%s2 + $0xc0] sm:$0xff]
      %v2987 = vld [vmem:[%s2 + $0xc8] sm:$0xff]
      %v2988 = vld [vmem:[%s2 + $0xd0] sm:$0xff]
      %v2989 = vld [vmem:[%s2 + $0xd8] sm:$0xff]
      %v2990 = vld [vmem:[%s2 + $0xe0] sm:$0xff]
      %v2991 = vld [vmem:[%s2 + $0xe8] sm:$0xff]
      %v2992 = vld [vmem:[%s2 + $0xf0] sm:$0xff]
      %v2993 = vld [vmem:[%s2 + $0xf8] sm:$0xff]
      %v3026 = vunpack.c.l.b16 %v2962
      %v3027 = vunpack.c.h.b16 %v2962
      %v3028 = vunpack.c.l.b16 %v2963
      %v3029 = vunpack.c.h.b16 %v2963
      %v3030 = vunpack.c.l.b16 %v2964
      %v3031 = vunpack.c.h.b16 %v2964
      %v3032 = vunpack.c.l.b16 %v2965
      %v3033 = vunpack.c.h.b16 %v2965
      %v3034 = vunpack.c.l.b16 %v2966
      %v3035 = vunpack.c.h.b16 %v2966
      %v3036 = vunpack.c.l.b16 %v2967
      %v3037 = vunpack.c.h.b16 %v2967
      %v3038 = vunpack.c.l.b16 %v2968
      %v3039 = vunpack.c.h.b16 %v2968
      %v3040 = vunpack.c.l.b16 %v2969
      %v3041 = vunpack.c.h.b16 %v2969
      %v3042 = vunpack.c.l.b16 %v2970
      %v3043 = vunpack.c.h.b16 %v2970
      %v3044 = vunpack.c.l.b16 %v2971
      %v3045 = vunpack.c.h.b16 %v2971
      %v3046 = vunpack.c.l.b16 %v2972
      %v3047 = vunpack.c.h.b16 %v2972
      %v3048 = vunpack.c.l.b16 %v2973
      %v3049 = vunpack.c.h.b16 %v2973
      %v3050 = vunpack.c.l.b16 %v2974
      %v3051 = vunpack.c.h.b16 %v2974
      %v3052 = vunpack.c.l.b16 %v2975
      %v3053 = vunpack.c.h.b16 %v2975
      %v3054 = vunpack.c.l.b16 %v2976
      %v3055 = vunpack.c.h.b16 %v2976
      %v3056 = vunpack.c.l.b16 %v2977
      %v3057 = vunpack.c.h.b16 %v2977
      %v3058 = vunpack.c.l.b16 %v2978
      %v3059 = vunpack.c.h.b16 %v2978
      %v3060 = vunpack.c.l.b16 %v2979
      %v3061 = vunpack.c.h.b16 %v2979
      %v3062 = vunpack.c.l.b16 %v2980
      %v3063 = vunpack.c.h.b16 %v2980
      %v3064 = vunpack.c.l.b16 %v2981
      %v3065 = vunpack.c.h.b16 %v2981
      %v3066 = vunpack.c.l.b16 %v2982
      %v3067 = vunpack.c.h.b16 %v2982
      %v3068 = vunpack.c.l.b16 %v2983
      %v3069 = vunpack.c.h.b16 %v2983
      %v3070 = vunpack.c.l.b16 %v2984
      %v3071 = vunpack.c.h.b16 %v2984
      %v3072 = vunpack.c.l.b16 %v2985
      %v3073 = vunpack.c.h.b16 %v2985
      %v3074 = vunpack.c.l.b16 %v2986
      %v3075 = vunpack.c.h.b16 %v2986
      %v3076 = vunpack.c.l.b16 %v2987
      %v3077 = vunpack.c.h.b16 %v2987
      %v3078 = vunpack.c.l.b16 %v2988
      %v3079 = vunpack.c.h.b16 %v2988
      %v3080 = vunpack.c.l.b16 %v2989
      %v3081 = vunpack.c.h.b16 %v2989
      %v3082 = vunpack.c.l.b16 %v2990
      %v3083 = vunpack.c.h.b16 %v2990
      %v3084 = vunpack.c.l.b16 %v2991
      %v3085 = vunpack.c.h.b16 %v2991
      %v3086 = vunpack.c.l.b16 %v2992
      %v3087 = vunpack.c.h.b16 %v2992
      %v3088 = vunpack.c.l.b16 %v2993
      %v3089 = vunpack.c.h.b16 %v2993
      %v3090 = vpack.c.b16 %v3030, %v3026
      %v3091 = vpack.c.b16 %v3031, %v3027
      %v3092 = vpack.c.b16 %v3032, %v3028
      %v3093 = vpack.c.b16 %v3033, %v3029
      %v3094 = vpack.c.b16 %v3038, %v3034
      %v3095 = vpack.c.b16 %v3039, %v3035
      %v3096 = vpack.c.b16 %v3040, %v3036
      %v3097 = vpack.c.b16 %v3041, %v3037
      %v3098 = vpack.c.b16 %v3046, %v3042
      %v3099 = vpack.c.b16 %v3047, %v3043
      %v3100 = vpack.c.b16 %v3048, %v3044
      %v3101 = vpack.c.b16 %v3049, %v3045
      %v3102 = vpack.c.b16 %v3054, %v3050
      %v3103 = vpack.c.b16 %v3055, %v3051
      %v3104 = vpack.c.b16 %v3056, %v3052
      %v3105 = vpack.c.b16 %v3057, %v3053
      %v3106 = vpack.c.b16 %v3062, %v3058
      %v3107 = vpack.c.b16 %v3063, %v3059
      %v3108 = vpack.c.b16 %v3064, %v3060
      %v3109 = vpack.c.b16 %v3065, %v3061
      %v3110 = vpack.c.b16 %v3070, %v3066
      %v3111 = vpack.c.b16 %v3071, %v3067
      %v3112 = vpack.c.b16 %v3072, %v3068
      %v3113 = vpack.c.b16 %v3073, %v3069
      %v3114 = vpack.c.b16 %v3078, %v3074
      %v3115 = vpack.c.b16 %v3079, %v3075
      %v3116 = vpack.c.b16 %v3080, %v3076
      %v3117 = vpack.c.b16 %v3081, %v3077
      %v3118 = vpack.c.b16 %v3086, %v3082
      %v3119 = vpack.c.b16 %v3087, %v3083
      %v3120 = vpack.c.b16 %v3088, %v3084
      %v3121 = vpack.c.b16 %v3089, %v3085
      %3154 = vmatprep.subr.bf16.mxu0 %v3091
      %3155 = vmatpush1.bf16.msra.mxu0 %v3090
      %3156 = vmatprep.subr.bf16.mxu0 %v3095
      %3157 = vmatpush1.bf16.msra.mxu0 %v3094
      %3158 = vmatprep.subr.bf16.mxu0 %v3099
      %3159 = vmatpush1.bf16.msra.mxu0 %v3098
      %3160 = vmatprep.subr.bf16.mxu0 %v3103
      %3161 = vmatpush1.bf16.msra.mxu0 %v3102
      %3162 = vmatprep.subr.bf16.mxu0 %v3107
      %3163 = vmatpush1.bf16.msra.mxu0 %v3106
      %3164 = vmatprep.subr.bf16.mxu0 %v3111
      %3165 = vmatpush1.bf16.msra.mxu0 %v3110
      %3166 = vmatprep.subr.bf16.mxu0 %v3115
      %3167 = vmatpush1.bf16.msra.mxu0 %v3114
      %3168 = vmatprep.subr.bf16.mxu0 %v3119
      %3169 = vmatpush1.bf16.msra.mxu0 %v3118
      %3170 = vmatprep.subr.bf16.mxu0 0
      %3171 = vmatpush1.bf16.msra.mxu0 0
      %3172 = vmatprep.subr.bf16.mxu0 0
      %3173 = vmatpush1.bf16.msra.mxu0 0
      %3174 = vmatprep.subr.bf16.mxu0 0
      %3175 = vmatpush1.bf16.msra.mxu0 0
      %3176 = vmatprep.subr.bf16.mxu0 0
      %3177 = vmatpush1.bf16.msra.mxu0 0
      %3178 = vmatprep.subr.bf16.mxu0 0
      %3179 = vmatpush1.bf16.msra.mxu0 0
      %3180 = vmatprep.subr.bf16.mxu0 0
      %3181 = vmatpush1.bf16.msra.mxu0 0
      %3182 = vmatprep.subr.bf16.mxu0 0
      %3183 = vmatpush1.bf16.msra.mxu0 0
      %3184 = vmatprep.subr.bf16.mxu0 0
      %3185 = vmatpush1.bf16.msra.mxu0 0
      %3186 = vmatprep.mubr.bf16.mxu0 0
      %3187 = vmatmul.mubr.bf16.gmra.mrb[0].mxu0 %v2961
      %v3188 = vpop.f32.mrb[0].mxu0
      %v3189 = vadd.f32 0.0, %v3188
      %v3190 = vpop.f32.mrb[0].mxu0
      %v3191 = vadd.f32 0.0, %v3190
      %v3192 = vpop.f32.mrb[0].mxu0
      %v3193 = vpop.f32.mrb[0].mxu0
      %3194 = vdwg.mxu0
      %3195 = vmatprep.subr.bf16.mxu0 %v3093
      %3196 = vmatpush1.bf16.msra.mxu0 %v3092
      %3197 = vmatprep.subr.bf16.mxu0 %v3097
      %3198 = vmatpush1.bf16.msra.mxu0 %v3096
      %3199 = vmatprep.subr.bf16.mxu0 %v3101
      %3200 = vmatpush1.bf16.msra.mxu0 %v3100
      %3201 = vmatprep.subr.bf16.mxu0 %v3105
      %3202 = vmatpush1.bf16.msra.mxu0 %v3104
      %3203 = vmatprep.subr.bf16.mxu0 %v3109
      %3204 = vmatpush1.bf16.msra.mxu0 %v3108
      %3205 = vmatprep.subr.bf16.mxu0 %v3113
      %3206 = vmatpush1.bf16.msra.mxu0 %v3112
      %3207 = vmatprep.subr.bf16.mxu0 %v3117
      %3208 = vmatpush1.bf16.msra.mxu0 %v3116
      %3209 = vmatprep.subr.bf16.mxu0 %v3121
      %3210 = vmatpush1.bf16.msra.mxu0 %v3120
      %3211 = vmatprep.subr.bf16.mxu0 0
      %3212 = vmatpush1.bf16.msra.mxu0 0
      %3213 = vmatprep.subr.bf16.mxu0 0
      %3214 = vmatpush1.bf16.msra.mxu0 0
      %3215 = vmatprep.subr.bf16.mxu0 0
      %3216 = vmatpush1.bf16.msra.mxu0 0
      %3217 = vmatprep.subr.bf16.mxu0 0
      %3218 = vmatpush1.bf16.msra.mxu0 0
      %3219 = vmatprep.subr.bf16.mxu0 0
      %3220 = vmatpush1.bf16.msra.mxu0 0
      %3221 = vmatprep.subr.bf16.mxu0 0
      %3222 = vmatpush1.bf16.msra.mxu0 0
      %3223 = vmatprep.subr.bf16.mxu0 0
      %3224 = vmatpush1.bf16.msra.mxu0 0
      %3225 = vmatprep.subr.bf16.mxu0 0
      %3226 = vmatpush1.bf16.msra.mxu0 0
      %3227 = vmatprep.mubr.bf16.mxu0 0
      %3228 = vmatmul.mubr.bf16.gmra.mrb[0].mxu0 %v2961
      %v3229 = vpop.f32.mrb[0].mxu0
      %v3230 = vadd.f32 0.0, %v3229
      %v3231 = vpop.f32.mrb[0].mxu0
      %v3232 = vadd.f32 0.0, %v3231
      %v3233 = vpop.f32.mrb[0].mxu0
      %v3234 = vpop.f32.mrb[0].mxu0
      %3235 = vdwg.mxu0
      %v3236 = vadd.f32 %v2957, %v3189
      %v3237 = vadd.f32 %v2958, %v3191
      %v3238 = vadd.f32 %v2959, %v3230
      %v3239 = vadd.f32 %v2960, %v3232
      %v3240 = vmul.f32 %v3236, 0.5
      %v3241 = vtanh.pop %v3240
      %v3242 = vmul.f32 %v3241, 0.5
      %v3243 = vadd.f32 %v3242, 0.5
      %v3244 = vmul.f32 %v3237, 0.5
      %v3245 = vtanh.pop %v3244
      %v3246 = vmul.f32 %v3245, 0.5
      %v3247 = vadd.f32 %v3246, 0.5
      %v3248 = vtanh.pop %v3238
      %v3249 = vmul.f32 %v3239, 0.5
      %v3250 = vtanh.pop %v3249
      %v3251 = vmul.f32 %v3250, 0.5
      %v3252 = vadd.f32 %v3251, 0.5
      %v3253 = vmul.f32 %v3247, %v2951
      %v3254 = vmul.f32 %v3243, %v3248
      %v3255 = vadd.f32 %v3253, %v3254
      %v3256 = vtanh.pop %v3255
      %v3257 = vmul.f32 %v3252, %v3256
      %s3258 = scalar_lea.vmem %s385, 56
      %3259 = vst [vmem:[%s3258] sm:$0xff] %v3257
      %3260 = vst [vmem:[#allocation3] sm:$0xff] %v3257
      %3261 = vst [vmem:[#allocation4] sm:$0xff] %v3255
      %p3262 = scmp.eq.s32.totalorder %s25, 1
      // Predicated region
      $region49: #{encoder_forward.1} parent=43 // pred_check
        %p3263 = pneg %p3262
      $region50: #{encoder_forward.1} parent=43 // pred_check_branch
        %3265 = sbr.rel (%p3263) target = $region52
      $region51: #{encoder_forward.1} parent=43 // pred_region
        %v3266 = vld [vmem:[#allocation3] sm:$0xff]
        %3267 = vst [vmem:[%s390] sm:$0xff] %v3266
        %v3268 = vld [vmem:[#allocation4] sm:$0xff]
        %3269 = vst [vmem:[%s394] sm:$0xff] %v3268
      $region52: #{encoder_forward.1} parent=43 // pred_fallthru
        _
      %s3270 = smul.u32 8, %s25
      %p3271 = scmp.lt.s32.totalorder %s3270, 15
      %s3272 = scalar_select %p3271, %s3270, 15
      %p3273 = scmp.lt.s32.totalorder %s24, 0
      %s3274 = scalar_select %p3273, %s24, 0
      %s3275 = sadd.s32 %s3274, %s3272
      %s3276 = smul.addr %s3275, 8
      %s3277 = scalar_lea.vmem %s6, %s3276
      %p3278 = scmp.lt.s32.totalorder %s24, 0
      %s3279 = scalar_select %p3278, %s24, 0
      %s3280 = smul.addr %s3279, 8
      %s3281 = scalar_lea.vmem %s7, %s3280
      %p3282 = scmp.lt.s32.totalorder %s24, 0
      %s3283 = scalar_select %p3282, %s24, 0
      %s3284 = smul.addr %s3283, 8
      %s3285 = scalar_lea.vmem %s8, %s3284
      // Predicated region
      $region53: #{encoder_forward.1} parent=43 // pred_check
        %p3286 = pneg %p195
      $region54: #{encoder_forward.1} parent=43 // pred_check_branch
        %3288 = sbr.rel (%p3286) target = $region56
      $region55: #{encoder_forward.1} parent=43 // pred_region
        %s3289 = smul.u32 8, %s25
      $region56: #{encoder_forward.1} parent=43 // pred_fallthru
        _
      // Predicated region
      $region57: #{encoder_forward.1} parent=43 // pred_check
        %p3290 = pneg %p221
      $region58: #{encoder_forward.1} parent=43 // pred_check_branch
        %3292 = sbr.rel (%p3290) target = $region60
      $region59: #{encoder_forward.1} parent=43 // pred_region
        _
      $region60: #{encoder_forward.1} parent=43 // pred_fallthru
        _
      // Predicated region
      $region61: #{encoder_forward.1} parent=43 // pred_check
        %p3293 = pneg %p247
      $region62: #{encoder_forward.1} parent=43 // pred_check_branch
        %3295 = sbr.rel (%p3293) target = $region64
      $region63: #{encoder_forward.1} parent=43 // pred_region
        _
      $region64: #{encoder_forward.1} parent=43 // pred_fallthru
        _
      // Predicated region
      $region65: #{encoder_forward.1} parent=43 // pred_check
        %p3296 = pneg %p221
      $region66: #{encoder_forward.1} parent=43 // pred_check_branch
        %3298 = sbr.rel (%p3296) target = $region68
      $region67: #{encoder_forward.1} parent=43 // pred_region
        %p3299 = scmp.lt.s32.totalorder %s24, 0
        %s3300 = scalar_select %p3299, %s24, 0
        %s3301 = smul.addr %s3300, 8
        %s3302 = scalar_lea.vmem %s7, %s3301
      $region68: #{encoder_forward.1} parent=43 // pred_fallthru
        _
      // Predicated region
      $region69: #{encoder_forward.1} parent=43 // pred_check
        %p3303 = pneg %p247
      $region70: #{encoder_forward.1} parent=43 // pred_check_branch
        %3305 = sbr.rel (%p3303) target = $region72
      $region71: #{encoder_forward.1} parent=43 // pred_region
        %p3306 = scmp.lt.s32.totalorder %s24, 0
        %s3307 = scalar_select %p3306, %s24, 0
        %s3308 = smul.addr %s3307, 8
        %s3309 = scalar_lea.vmem %s8, %s3308
      $region72: #{encoder_forward.1} parent=43 // pred_fallthru
        _
    $region44: #{encoder_forward.1} parent=5 // pred_fallthru
      _
    %p3310 = scmp.le.s32.totalorder 2, %s15
    // Predicated region
    $region73: #{encoder_forward.1} parent=5 // pred_check
      %p3311 = pneg %p3310
    $region74: #{encoder_forward.1} parent=5 // pred_check_branch
      %3313 = sbr.rel (%p3311) target = $region76
    $region75: #{encoder_forward.1} parent=5 // pred_region
      %s3314 = ssub.s32 %s15, 2
      // Predicated region
      $region77: #{encoder_forward.1} parent=75 // pred_check
        %p3315 = pneg %p201
      $region78: #{encoder_forward.1} parent=75 // pred_check_branch
        %3317 = sbr.rel (%p3315) target = $region80
      $region79: #{encoder_forward.1} parent=75 // pred_region
        %s3318 = smul.u32 8, %s27
        %p3319 = scmp.lt.s32.totalorder %s3318, 15
        %s3320 = scalar_select %p3319, %s3318, 15
        %p3321 = scmp.lt.s32.totalorder %s26, 0
        %s3322 = scalar_select %p3321, %s26, 0
        %s3323 = sadd.s32 %s3322, %s3320
        %s3324 = smul.addr %s3323, 8
        %s3325 = scalar_lea.vmem %s6, %s3324
      $region80: #{encoder_forward.1} parent=75 // pred_fallthru
        _
    $region76: #{encoder_forward.1} parent=5 // pred_fallthru
      _
  $region6: #{encoder_forward.1} parent=0 // loop_footer
    %s19 = sadd.s32 1, %s15
  $region7: #{encoder_forward.1} parent=0 // loop_footer_branch
    %14 = sbr.rel target = $region3
  $region8: #{encoder_forward.1} parent=0 // loop_exit
    _

</llo_original>
